<compile_context>
chip_gen: v5e
topology: v5e:2x2
jax: 0.10.0
libtpu: 0.0.40
codegen_flags: <defaults>
</compile_context>

<pallas_src>
import numpy as np
import jax
import jax.numpy as jnp
from jax import lax
from jax.experimental import pallas as pl
from jax.experimental.pallas import tpu as pltpu

DILATION = 2


def _taps(dilation=DILATION):
    # (dy, dx) offsets, row-major over the 3x3 kernel (t = ky*3 + kx).
    return [((ky - 1) * dilation, (kx - 1) * dilation)
            for ky in range(3) for kx in range(3)]


def _build_masks(N, H, W, dilation=DILATION):
    """Per-image zero-padding masks for the 9 dilated taps, tiled across the
    batch-folded spatial axis.  Shape (9, 1, N*H*W), float32."""
    HW = H * W
    pos = np.arange(HW)
    row, col = pos // W, pos % W
    ms = []
    for dy, dx in _taps(dilation):
        ok = ((row + dy >= 0) & (row + dy < H) &
              (col + dx >= 0) & (col + dx < W))
        ms.append(ok.astype(np.float32))
    m = np.stack(ms, axis=0)            # (9, HW)
    m = np.tile(m, (1, N))              # (9, N*HW): same mask per image block
    return m[:, None, :]                # (9, 1, N*HW)


# ------------------------------ fused kernel -------------------------------


def _make_kernel(N, C, H, W, dilation=DILATION):
    HW = H * W
    NHW = N * HW
    taps = _taps(dilation)

    def fold(ref):
        # (N, c, HW) ref -> (c, N*HW) value: per-image HW blocks side by side
        # on the lane axis (lane-aligned concat, no cross-lane shuffles).
        return jnp.concatenate([ref[n] for n in range(N)], axis=-1)

    def kernel(xc_ref, xg_ref, att_ref, mask_ref, w13_ref, w2_ref,
               oc_ref, og_ref, stash_ref):
        att = fold(att_ref)                               # (Ca, NHW) f32

        def gated_bottleneck(x_ref, b):
            # conv1: 1x1, no bias -> (C,C) bf16 @ (C, NHW) bf16 on the MXU.
            xb = fold(x_ref).astype(jnp.bfloat16)
            h = jnp.dot(w13_ref[2 * b], xb,
                        preferred_element_type=jnp.float32)   # (C, NHW) f32
            # conv2: 3x3, dilation=2, zero padding=2, no bias.  Each of the 9
            # shifted taps is an XLU lane-roll of h, zeroed by its precomputed
            # padding mask, and accumulated with a small bf16 MXU dot.
            acc = None
            for t, (dy, dx) in enumerate(taps):
                s = dy * W + dx
                shifted = h if s == 0 else pltpu.roll(h, (-s) % NHW, 1)
                masked = (shifted * mask_ref[t]).astype(jnp.bfloat16)
                d = jnp.dot(w2_ref[9 * b + t], masked,
                            preferred_element_type=jnp.float32)
                acc = d if acc is None else acc + d
            # conv3: 1x1, no bias; then Att gating + residual in f32.
            y = jnp.dot(w13_ref[2 * b + 1], acc.astype(jnp.bfloat16),
                        preferred_element_type=jnp.float32)
            return y * att + fold(x_ref)

        # Branch c is stashed in VMEM so its vregs are free while branch g runs.
        stash_ref[...] = gated_bottleneck(xc_ref, 0)
        og = gated_bottleneck(xg_ref, 1)
        oc = stash_ref[...]

        # YTMT exchange: out_c = relu(oc) + (og - relu(og)) = relu(oc)+min(og,0)
        out_c = jnp.maximum(oc, 0.0) + jnp.minimum(og, 0.0)
        out_g = jnp.maximum(og, 0.0) + jnp.minimum(oc, 0.0)

        # Un-fold back to (N, C, HW): lane-aligned static slices, full-width vst.
        for n in range(N):
            oc_ref[n] = out_c[:, n * HW:(n + 1) * HW]
            og_ref[n] = out_g[:, n * HW:(n + 1) * HW]

    return kernel


# -------------------------------- wrapper -----------------------------------


def prepare_params(params):
    """One-time packing of PyTorch-layout conv weights (done outside jit):
       w13: (4, C, C)  bf16   order [w1_c, w3_c, w1_g, w3_g]
       w2 : (18, C, C) bf16   order [branch c taps 0..8, branch g taps 0..8],
                              tap t = ky*3 + kx (row-major 3x3)."""
    def prep(block):
        C = block["w1"].shape[0]
        w1 = block["w1"].reshape(C, C)
        w3 = block["w3"].reshape(C, C)
        w2 = jnp.transpose(block["w2"], (2, 3, 0, 1)).reshape(9, C, C)
        return w1, w3, w2

    w1c, w3c, w2c = prep(params["c"])
    w1g, w3g, w2g = prep(params["g"])
    w13 = jnp.stack([w1c, w3c, w1g, w3g]).astype(jnp.bfloat16)       # (4,C,C)
    w2 = jnp.concatenate([w2c, w2g], axis=0).astype(jnp.bfloat16)    # (18,C,C)
    return w13, w2


def _full_spec(shape):
    zeros = (0,) * len(shape)
    return pl.BlockSpec(shape, lambda i, _z=zeros: _z)


@jax.jit
def ytmt_att_relu_forward(weights, input_c, input_g, att):
    """Matches YTMTAttRelu.forward.  Inputs NCHW f32; returns (out_c, out_g)."""
    w13, w2 = weights
    N, C, H, W = input_c.shape
    HW, NHW = H * W, N * H * W
    Ca = att.shape[1]                       # 1 or C; broadcast in-kernel

    xc = input_c.reshape(N, C, HW)          # free reshape: lane axis = H*W
    xg = input_g.reshape(N, C, HW)
    at = att.reshape(N, Ca, HW)
    masks = jnp.asarray(_build_masks(N, H, W))   # (9, 1, NHW), const under jit

    kernel = _make_kernel(N, C, H, W)

    flops = 2 * 2 * 11 * C * C * NHW        # 2 branches x (1 + 9 + 1) CxC dots
    bytes_accessed = (4 * (2 * N * C * HW + N * Ca * HW + 9 * NHW)   # f32 in
                      + 2 * (w13.size + w2.size)                     # bf16 w
                      + 4 * 2 * N * C * HW)                          # f32 out

    oc, og = pl.pallas_call(
        kernel,
        out_shape=(jax.ShapeDtypeStruct((N, C, HW), jnp.float32),
                   jax.ShapeDtypeStruct((N, C, HW), jnp.float32)),
        grid_spec=pltpu.PrefetchScalarGridSpec(
            num_scalar_prefetch=0,
            grid=(1,),
            in_specs=[_full_spec((N, C, HW)),       # input_c
                      _full_spec((N, C, HW)),       # input_g
                      _full_spec((N, Ca, HW)),      # Att
                      _full_spec((9, 1, NHW)),      # padding masks
                      _full_spec((4, C, C)),        # packed 1x1 weights
                      _full_spec((18, C, C))],      # packed 3x3 tap weights
            out_specs=(_full_spec((N, C, HW)), _full_spec((N, C, HW))),
            scratch_shapes=[pltpu.VMEM((C, NHW), jnp.float32)]),
        compiler_params=pltpu.CompilerParams(
            dimension_semantics=("arbitrary",)),
        cost_estimate=pl.CostEstimate(flops=flops, transcendentals=0,
                                      bytes_accessed=bytes_accessed),
    )(xc, xg, at, masks, w13, w2)

    return oc.reshape(N, C, H, W), og.reshape(N, C, H, W)


# ------------------------------ init / reference ----------------------------


def init_params(key, channels=32):
    ks = jax.random.split(key, 6)

    def conv_w(k, cout, cin, ksz):
        bound = 1.0 / float(cin * ksz * ksz) ** 0.5
        return jax.random.uniform(k, (cout, cin, ksz, ksz), jnp.float32,
                                  -bound, bound)

    return {
        "c": {"w1": conv_w(ks[0], channels, channels, 1),
              "w2": conv_w(ks[1], channels, channels, 3),
              "w3": conv_w(ks[2], channels, channels, 1)},
        "g": {"w1": conv_w(ks[3], channels, channels, 1),
              "w2": conv_w(ks[4], channels, channels, 3),
              "w3": conv_w(ks[5], channels, channels, 1)},
    }


def _ref_forward(params, input_c, input_g, att):
    """Plain-JAX reference (lax convs, zero padding, f32 HIGHEST precision)."""
    dn = ("NCHW", "OIHW", "NCHW")
    hp = lax.Precision.HIGHEST

    def bottleneck(x, p):
        y = lax.conv_general_dilated(x, p["w1"], (1, 1), "VALID",
                                     dimension_numbers=dn, precision=hp)
        y = lax.conv_general_dilated(y, p["w2"], (1, 1), ((2, 2), (2, 2)),
                                     rhs_dilation=(2, 2),
                                     dimension_numbers=dn, precision=hp)
        y = lax.conv_general_dilated(y, p["w3"], (1, 1), "VALID",
                                     dimension_numbers=dn, precision=hp)
        return y

    oc = bottleneck(input_c, params["c"]) * att + input_c
    og = bottleneck(input_g, params["g"]) * att + input_g
    out_c = jnp.maximum(oc, 0.0) + jnp.minimum(og, 0.0)
    out_g = jnp.maximum(og, 0.0) + jnp.minimum(oc, 0.0)
    return out_c, out_g


if __name__ == "__main__":
    key = jax.random.PRNGKey(0)
    k_c, k_g, k_a, k_p = jax.random.split(key, 4)

    N, C, H, W = 2, 32, 16, 16        # YTMTAttRelu fixes channels at 32
    input_c = jax.random.normal(k_c, (N, C, H, W), jnp.float32)
    input_g = jax.random.normal(k_g, (N, C, H, W), jnp.float32)
    att = jax.nn.sigmoid(jax.random.normal(k_a, (N, 1, H, W), jnp.float32))

    params = init_params(k_p, C)
    weights = prepare_params(params)

    out_c, out_g = jax.block_until_ready(
        ytmt_att_relu_forward(weights, input_c, input_g, att))

    ref_c, ref_g = _ref_forward(params, input_c, input_g, att)
    assert out_c.shape == (N, C, H, W) and out_g.shape == (N, C, H, W)
    # bf16 MXU operands -> slightly looser tolerance than pure-f32.
    assert jnp.allclose(out_c, ref_c, rtol=1e-2, atol=1e-2), "out_c mismatch"
    assert jnp.allclose(out_g, ref_g, rtol=1e-2, atol=1e-2), "out_g mismatch"

    print("KERNEL_OK")
</pallas_src>

<mosaic_0001>
module attributes {stable_mosaic.version = 11 : i64} {
  func.func @kernel(%arg0: i32, %arg1: memref<2x32x256xf32, #tpu.memory_space<vmem>>, %arg2: memref<2x32x256xf32, #tpu.memory_space<vmem>>, %arg3: memref<2x1x256xf32, #tpu.memory_space<vmem>>, %arg4: memref<9x1x512xf32, #tpu.memory_space<vmem>>, %arg5: memref<4x32x32xbf16, #tpu.memory_space<vmem>>, %arg6: memref<18x32x32xbf16, #tpu.memory_space<vmem>>, %arg7: memref<2x32x256xf32, #tpu.memory_space<vmem>>, %arg8: memref<2x32x256xf32, #tpu.memory_space<vmem>>, %arg9: memref<32x512xf32, #tpu.memory_space<vmem>>) attributes {dimension_semantics = [#tpu.dimension_semantics<arbitrary>], iteration_bounds = array<i64: 1>, scalar_prefetch = 0 : i64, scratch_operands = 1 : i64, tpu.core_type = #tpu.core_type<tc>, window_params = [{pipeline_mode = #tpu.pipeline_mode<synchronous>, transform_indices = @transform_0, window_bounds = array<i64: 2, 32, 256>}, {pipeline_mode = #tpu.pipeline_mode<synchronous>, transform_indices = @transform_1, window_bounds = array<i64: 2, 32, 256>}, {pipeline_mode = #tpu.pipeline_mode<synchronous>, transform_indices = @transform_2, window_bounds = array<i64: 2, 1, 256>}, {pipeline_mode = #tpu.pipeline_mode<synchronous>, transform_indices = @transform_3, window_bounds = array<i64: 9, 1, 512>}, {pipeline_mode = #tpu.pipeline_mode<synchronous>, transform_indices = @transform_4, window_bounds = array<i64: 4, 32, 32>}, {pipeline_mode = #tpu.pipeline_mode<synchronous>, transform_indices = @transform_5, window_bounds = array<i64: 18, 32, 32>}, {pipeline_mode = #tpu.pipeline_mode<synchronous>, transform_indices = @transform_6, window_bounds = array<i64: 2, 32, 256>}, {pipeline_mode = #tpu.pipeline_mode<synchronous>, transform_indices = @transform_7, window_bounds = array<i64: 2, 32, 256>}]} {
    %c0 = arith.constant 0 : index
    %c0_0 = arith.constant 0 : index
    %c0_1 = arith.constant 0 : index
    %0 = vector.load %arg3[%c0, %c0_0, %c0_1] : memref<2x1x256xf32, #tpu.memory_space<vmem>>, vector<1x1x256xf32>
    %1 = vector.shape_cast %0 : vector<1x1x256xf32> to vector<1x256xf32>
    %c1 = arith.constant 1 : index
    %c0_2 = arith.constant 0 : index
    %c0_3 = arith.constant 0 : index
    %2 = vector.load %arg3[%c1, %c0_2, %c0_3] : memref<2x1x256xf32, #tpu.memory_space<vmem>>, vector<1x1x256xf32>
    %3 = vector.shape_cast %2 : vector<1x1x256xf32> to vector<1x256xf32>
    %4 = tpu.concatenate %1, %3 in 1 : vector<1x256xf32>, vector<1x256xf32> -> vector<1x512xf32>
    %c0_4 = arith.constant 0 : index
    %c0_5 = arith.constant 0 : index
    %c0_6 = arith.constant 0 : index
    %5 = vector.load %arg1[%c0_4, %c0_5, %c0_6] : memref<2x32x256xf32, #tpu.memory_space<vmem>>, vector<1x32x256xf32>
    %6 = vector.shape_cast %5 : vector<1x32x256xf32> to vector<32x256xf32>
    %c1_7 = arith.constant 1 : index
    %c0_8 = arith.constant 0 : index
    %c0_9 = arith.constant 0 : index
    %7 = vector.load %arg1[%c1_7, %c0_8, %c0_9] : memref<2x32x256xf32, #tpu.memory_space<vmem>>, vector<1x32x256xf32>
    %8 = vector.shape_cast %7 : vector<1x32x256xf32> to vector<32x256xf32>
    %9 = tpu.concatenate %6, %8 in 1 : vector<32x256xf32>, vector<32x256xf32> -> vector<32x512xf32>
    %10 = arith.truncf %9 : vector<32x512xf32> to vector<32x512xbf16>
    %c0_10 = arith.constant 0 : index
    %c0_11 = arith.constant 0 : index
    %c0_12 = arith.constant 0 : index
    %11 = vector.load %arg5[%c0_10, %c0_11, %c0_12] : memref<4x32x32xbf16, #tpu.memory_space<vmem>>, vector<1x32x32xbf16>
    %12 = vector.shape_cast %11 : vector<1x32x32xbf16> to vector<32x32xbf16>
    %cst = arith.constant dense<0.000000e+00> : vector<32x512xf32>
    %13 = tpu.matmul %12, %10, %cst {dimension_numbers = #tpu.dot_dimension_numbers<[1], [0], [0], [1], [0, 0, 1, 1], [], []>} : vector<32x32xbf16>, vector<32x512xbf16>, vector<32x512xf32> -> vector<32x512xf32>
    %c34_i32 = arith.constant 34 : i32
    %14 = tpu.dynamic_rotate %13 by %c34_i32 dim 1 : vector<32x512xf32>, i32 -> vector<32x512xf32>
    %c0_13 = arith.constant 0 : index
    %c0_14 = arith.constant 0 : index
    %c0_15 = arith.constant 0 : index
    %15 = vector.load %arg4[%c0_13, %c0_14, %c0_15] : memref<9x1x512xf32, #tpu.memory_space<vmem>>, vector<1x1x512xf32>
    %16 = vector.shape_cast %15 : vector<1x1x512xf32> to vector<1x512xf32>
    %17 = vector.broadcast %16 : vector<1x512xf32> to vector<32x512xf32>
    %18 = arith.mulf %14, %17 : vector<32x512xf32>
    %19 = arith.truncf %18 : vector<32x512xf32> to vector<32x512xbf16>
    %c0_16 = arith.constant 0 : index
    %c0_17 = arith.constant 0 : index
    %c0_18 = arith.constant 0 : index
    %20 = vector.load %arg6[%c0_16, %c0_17, %c0_18] : memref<18x32x32xbf16, #tpu.memory_space<vmem>>, vector<1x32x32xbf16>
    %21 = vector.shape_cast %20 : vector<1x32x32xbf16> to vector<32x32xbf16>
    %cst_19 = arith.constant dense<0.000000e+00> : vector<32x512xf32>
    %22 = tpu.matmul %21, %19, %cst_19 {dimension_numbers = #tpu.dot_dimension_numbers<[1], [0], [0], [1], [0, 0, 1, 1], [], []>} : vector<32x32xbf16>, vector<32x512xbf16>, vector<32x512xf32> -> vector<32x512xf32>
    %c32_i32 = arith.constant 32 : i32
    %23 = tpu.dynamic_rotate %13 by %c32_i32 dim 1 : vector<32x512xf32>, i32 -> vector<32x512xf32>
    %c1_20 = arith.constant 1 : index
    %c0_21 = arith.constant 0 : index
    %c0_22 = arith.constant 0 : index
    %24 = vector.load %arg4[%c1_20, %c0_21, %c0_22] : memref<9x1x512xf32, #tpu.memory_space<vmem>>, vector<1x1x512xf32>
    %25 = vector.shape_cast %24 : vector<1x1x512xf32> to vector<1x512xf32>
    %26 = vector.broadcast %25 : vector<1x512xf32> to vector<32x512xf32>
    %27 = arith.mulf %23, %26 : vector<32x512xf32>
    %28 = arith.truncf %27 : vector<32x512xf32> to vector<32x512xbf16>
    %c1_23 = arith.constant 1 : index
    %c0_24 = arith.constant 0 : index
    %c0_25 = arith.constant 0 : index
    %29 = vector.load %arg6[%c1_23, %c0_24, %c0_25] : memref<18x32x32xbf16, #tpu.memory_space<vmem>>, vector<1x32x32xbf16>
    %30 = vector.shape_cast %29 : vector<1x32x32xbf16> to vector<32x32xbf16>
    %cst_26 = arith.constant dense<0.000000e+00> : vector<32x512xf32>
    %31 = tpu.matmul %30, %28, %cst_26 {dimension_numbers = #tpu.dot_dimension_numbers<[1], [0], [0], [1], [0, 0, 1, 1], [], []>} : vector<32x32xbf16>, vector<32x512xbf16>, vector<32x512xf32> -> vector<32x512xf32>
    %32 = arith.addf %22, %31 : vector<32x512xf32>
    %c30_i32 = arith.constant 30 : i32
    %33 = tpu.dynamic_rotate %13 by %c30_i32 dim 1 : vector<32x512xf32>, i32 -> vector<32x512xf32>
    %c2 = arith.constant 2 : index
    %c0_27 = arith.constant 0 : index
    %c0_28 = arith.constant 0 : index
    %34 = vector.load %arg4[%c2, %c0_27, %c0_28] : memref<9x1x512xf32, #tpu.memory_space<vmem>>, vector<1x1x512xf32>
    %35 = vector.shape_cast %34 : vector<1x1x512xf32> to vector<1x512xf32>
    %36 = vector.broadcast %35 : vector<1x512xf32> to vector<32x512xf32>
    %37 = arith.mulf %33, %36 : vector<32x512xf32>
    %38 = arith.truncf %37 : vector<32x512xf32> to vector<32x512xbf16>
    %c2_29 = arith.constant 2 : index
    %c0_30 = arith.constant 0 : index
    %c0_31 = arith.constant 0 : index
    %39 = vector.load %arg6[%c2_29, %c0_30, %c0_31] : memref<18x32x32xbf16, #tpu.memory_space<vmem>>, vector<1x32x32xbf16>
    %40 = vector.shape_cast %39 : vector<1x32x32xbf16> to vector<32x32xbf16>
    %cst_32 = arith.constant dense<0.000000e+00> : vector<32x512xf32>
    %41 = tpu.matmul %40, %38, %cst_32 {dimension_numbers = #tpu.dot_dimension_numbers<[1], [0], [0], [1], [0, 0, 1, 1], [], []>} : vector<32x32xbf16>, vector<32x512xbf16>, vector<32x512xf32> -> vector<32x512xf32>
    %42 = arith.addf %32, %41 : vector<32x512xf32>
    %c2_i32 = arith.constant 2 : i32
    %43 = tpu.dynamic_rotate %13 by %c2_i32 dim 1 : vector<32x512xf32>, i32 -> vector<32x512xf32>
    %c3 = arith.constant 3 : index
    %c0_33 = arith.constant 0 : index
    %c0_34 = arith.constant 0 : index
    %44 = vector.load %arg4[%c3, %c0_33, %c0_34] : memref<9x1x512xf32, #tpu.memory_space<vmem>>, vector<1x1x512xf32>
    %45 = vector.shape_cast %44 : vector<1x1x512xf32> to vector<1x512xf32>
    %46 = vector.broadcast %45 : vector<1x512xf32> to vector<32x512xf32>
    %47 = arith.mulf %43, %46 : vector<32x512xf32>
    %48 = arith.truncf %47 : vector<32x512xf32> to vector<32x512xbf16>
    %c3_35 = arith.constant 3 : index
    %c0_36 = arith.constant 0 : index
    %c0_37 = arith.constant 0 : index
    %49 = vector.load %arg6[%c3_35, %c0_36, %c0_37] : memref<18x32x32xbf16, #tpu.memory_space<vmem>>, vector<1x32x32xbf16>
    %50 = vector.shape_cast %49 : vector<1x32x32xbf16> to vector<32x32xbf16>
    %cst_38 = arith.constant dense<0.000000e+00> : vector<32x512xf32>
    %51 = tpu.matmul %50, %48, %cst_38 {dimension_numbers = #tpu.dot_dimension_numbers<[1], [0], [0], [1], [0, 0, 1, 1], [], []>} : vector<32x32xbf16>, vector<32x512xbf16>, vector<32x512xf32> -> vector<32x512xf32>
    %52 = arith.addf %42, %51 : vector<32x512xf32>
    %c4 = arith.constant 4 : index
    %c0_39 = arith.constant 0 : index
    %c0_40 = arith.constant 0 : index
    %53 = vector.load %arg4[%c4, %c0_39, %c0_40] : memref<9x1x512xf32, #tpu.memory_space<vmem>>, vector<1x1x512xf32>
    %54 = vector.shape_cast %53 : vector<1x1x512xf32> to vector<1x512xf32>
    %55 = vector.broadcast %54 : vector<1x512xf32> to vector<32x512xf32>
    %56 = arith.mulf %13, %55 : vector<32x512xf32>
    %57 = arith.truncf %56 : vector<32x512xf32> to vector<32x512xbf16>
    %c4_41 = arith.constant 4 : index
    %c0_42 = arith.constant 0 : index
    %c0_43 = arith.constant 0 : index
    %58 = vector.load %arg6[%c4_41, %c0_42, %c0_43] : memref<18x32x32xbf16, #tpu.memory_space<vmem>>, vector<1x32x32xbf16>
    %59 = vector.shape_cast %58 : vector<1x32x32xbf16> to vector<32x32xbf16>
    %cst_44 = arith.constant dense<0.000000e+00> : vector<32x512xf32>
    %60 = tpu.matmul %59, %57, %cst_44 {dimension_numbers = #tpu.dot_dimension_numbers<[1], [0], [0], [1], [0, 0, 1, 1], [], []>} : vector<32x32xbf16>, vector<32x512xbf16>, vector<32x512xf32> -> vector<32x512xf32>
    %61 = arith.addf %52, %60 : vector<32x512xf32>
    %c510_i32 = arith.constant 510 : i32
    %62 = tpu.dynamic_rotate %13 by %c510_i32 dim 1 : vector<32x512xf32>, i32 -> vector<32x512xf32>
    %c5 = arith.constant 5 : index
    %c0_45 = arith.constant 0 : index
    %c0_46 = arith.constant 0 : index
    %63 = vector.load %arg4[%c5, %c0_45, %c0_46] : memref<9x1x512xf32, #tpu.memory_space<vmem>>, vector<1x1x512xf32>
    %64 = vector.shape_cast %63 : vector<1x1x512xf32> to vector<1x512xf32>
    %65 = vector.broadcast %64 : vector<1x512xf32> to vector<32x512xf32>
    %66 = arith.mulf %62, %65 : vector<32x512xf32>
    %67 = arith.truncf %66 : vector<32x512xf32> to vector<32x512xbf16>
    %c5_47 = arith.constant 5 : index
    %c0_48 = arith.constant 0 : index
    %c0_49 = arith.constant 0 : index
    %68 = vector.load %arg6[%c5_47, %c0_48, %c0_49] : memref<18x32x32xbf16, #tpu.memory_space<vmem>>, vector<1x32x32xbf16>
    %69 = vector.shape_cast %68 : vector<1x32x32xbf16> to vector<32x32xbf16>
    %cst_50 = arith.constant dense<0.000000e+00> : vector<32x512xf32>
    %70 = tpu.matmul %69, %67, %cst_50 {dimension_numbers = #tpu.dot_dimension_numbers<[1], [0], [0], [1], [0, 0, 1, 1], [], []>} : vector<32x32xbf16>, vector<32x512xbf16>, vector<32x512xf32> -> vector<32x512xf32>
    %71 = arith.addf %61, %70 : vector<32x512xf32>
    %c482_i32 = arith.constant 482 : i32
    %72 = tpu.dynamic_rotate %13 by %c482_i32 dim 1 : vector<32x512xf32>, i32 -> vector<32x512xf32>
    %c6 = arith.constant 6 : index
    %c0_51 = arith.constant 0 : index
    %c0_52 = arith.constant 0 : index
    %73 = vector.load %arg4[%c6, %c0_51, %c0_52] : memref<9x1x512xf32, #tpu.memory_space<vmem>>, vector<1x1x512xf32>
    %74 = vector.shape_cast %73 : vector<1x1x512xf32> to vector<1x512xf32>
    %75 = vector.broadcast %74 : vector<1x512xf32> to vector<32x512xf32>
    %76 = arith.mulf %72, %75 : vector<32x512xf32>
    %77 = arith.truncf %76 : vector<32x512xf32> to vector<32x512xbf16>
    %c6_53 = arith.constant 6 : index
    %c0_54 = arith.constant 0 : index
    %c0_55 = arith.constant 0 : index
    %78 = vector.load %arg6[%c6_53, %c0_54, %c0_55] : memref<18x32x32xbf16, #tpu.memory_space<vmem>>, vector<1x32x32xbf16>
    %79 = vector.shape_cast %78 : vector<1x32x32xbf16> to vector<32x32xbf16>
    %cst_56 = arith.constant dense<0.000000e+00> : vector<32x512xf32>
    %80 = tpu.matmul %79, %77, %cst_56 {dimension_numbers = #tpu.dot_dimension_numbers<[1], [0], [0], [1], [0, 0, 1, 1], [], []>} : vector<32x32xbf16>, vector<32x512xbf16>, vector<32x512xf32> -> vector<32x512xf32>
    %81 = arith.addf %71, %80 : vector<32x512xf32>
    %c480_i32 = arith.constant 480 : i32
    %82 = tpu.dynamic_rotate %13 by %c480_i32 dim 1 : vector<32x512xf32>, i32 -> vector<32x512xf32>
    %c7 = arith.constant 7 : index
    %c0_57 = arith.constant 0 : index
    %c0_58 = arith.constant 0 : index
    %83 = vector.load %arg4[%c7, %c0_57, %c0_58] : memref<9x1x512xf32, #tpu.memory_space<vmem>>, vector<1x1x512xf32>
    %84 = vector.shape_cast %83 : vector<1x1x512xf32> to vector<1x512xf32>
    %85 = vector.broadcast %84 : vector<1x512xf32> to vector<32x512xf32>
    %86 = arith.mulf %82, %85 : vector<32x512xf32>
    %87 = arith.truncf %86 : vector<32x512xf32> to vector<32x512xbf16>
    %c7_59 = arith.constant 7 : index
    %c0_60 = arith.constant 0 : index
    %c0_61 = arith.constant 0 : index
    %88 = vector.load %arg6[%c7_59, %c0_60, %c0_61] : memref<18x32x32xbf16, #tpu.memory_space<vmem>>, vector<1x32x32xbf16>
    %89 = vector.shape_cast %88 : vector<1x32x32xbf16> to vector<32x32xbf16>
    %cst_62 = arith.constant dense<0.000000e+00> : vector<32x512xf32>
    %90 = tpu.matmul %89, %87, %cst_62 {dimension_numbers = #tpu.dot_dimension_numbers<[1], [0], [0], [1], [0, 0, 1, 1], [], []>} : vector<32x32xbf16>, vector<32x512xbf16>, vector<32x512xf32> -> vector<32x512xf32>
    %91 = arith.addf %81, %90 : vector<32x512xf32>
    %c478_i32 = arith.constant 478 : i32
    %92 = tpu.dynamic_rotate %13 by %c478_i32 dim 1 : vector<32x512xf32>, i32 -> vector<32x512xf32>
    %c8 = arith.constant 8 : index
    %c0_63 = arith.constant 0 : index
    %c0_64 = arith.constant 0 : index
    %93 = vector.load %arg4[%c8, %c0_63, %c0_64] : memref<9x1x512xf32, #tpu.memory_space<vmem>>, vector<1x1x512xf32>
    %94 = vector.shape_cast %93 : vector<1x1x512xf32> to vector<1x512xf32>
    %95 = vector.broadcast %94 : vector<1x512xf32> to vector<32x512xf32>
    %96 = arith.mulf %92, %95 : vector<32x512xf32>
    %97 = arith.truncf %96 : vector<32x512xf32> to vector<32x512xbf16>
    %c8_65 = arith.constant 8 : index
    %c0_66 = arith.constant 0 : index
    %c0_67 = arith.constant 0 : index
    %98 = vector.load %arg6[%c8_65, %c0_66, %c0_67] : memref<18x32x32xbf16, #tpu.memory_space<vmem>>, vector<1x32x32xbf16>
    %99 = vector.shape_cast %98 : vector<1x32x32xbf16> to vector<32x32xbf16>
    %cst_68 = arith.constant dense<0.000000e+00> : vector<32x512xf32>
    %100 = tpu.matmul %99, %97, %cst_68 {dimension_numbers = #tpu.dot_dimension_numbers<[1], [0], [0], [1], [0, 0, 1, 1], [], []>} : vector<32x32xbf16>, vector<32x512xbf16>, vector<32x512xf32> -> vector<32x512xf32>
    %101 = arith.addf %91, %100 : vector<32x512xf32>
    %c1_69 = arith.constant 1 : index
    %c0_70 = arith.constant 0 : index
    %c0_71 = arith.constant 0 : index
    %102 = vector.load %arg5[%c1_69, %c0_70, %c0_71] : memref<4x32x32xbf16, #tpu.memory_space<vmem>>, vector<1x32x32xbf16>
    %103 = vector.shape_cast %102 : vector<1x32x32xbf16> to vector<32x32xbf16>
    %104 = arith.truncf %101 : vector<32x512xf32> to vector<32x512xbf16>
    %cst_72 = arith.constant dense<0.000000e+00> : vector<32x512xf32>
    %105 = tpu.matmul %103, %104, %cst_72 {dimension_numbers = #tpu.dot_dimension_numbers<[1], [0], [0], [1], [0, 0, 1, 1], [], []>} : vector<32x32xbf16>, vector<32x512xbf16>, vector<32x512xf32> -> vector<32x512xf32>
    %106 = vector.broadcast %4 : vector<1x512xf32> to vector<32x512xf32>
    %107 = arith.mulf %105, %106 : vector<32x512xf32>
    %c0_73 = arith.constant 0 : index
    %c0_74 = arith.constant 0 : index
    %c0_75 = arith.constant 0 : index
    %108 = vector.load %arg1[%c0_73, %c0_74, %c0_75] : memref<2x32x256xf32, #tpu.memory_space<vmem>>, vector<1x32x256xf32>
    %109 = vector.shape_cast %108 : vector<1x32x256xf32> to vector<32x256xf32>
    %c1_76 = arith.constant 1 : index
    %c0_77 = arith.constant 0 : index
    %c0_78 = arith.constant 0 : index
    %110 = vector.load %arg1[%c1_76, %c0_77, %c0_78] : memref<2x32x256xf32, #tpu.memory_space<vmem>>, vector<1x32x256xf32>
    %111 = vector.shape_cast %110 : vector<1x32x256xf32> to vector<32x256xf32>
    %112 = tpu.concatenate %109, %111 in 1 : vector<32x256xf32>, vector<32x256xf32> -> vector<32x512xf32>
    %113 = arith.addf %107, %112 : vector<32x512xf32>
    %c0_79 = arith.constant 0 : index
    %c0_80 = arith.constant 0 : index
    %114 = vector.load %arg9[%c0_79, %c0_80] : memref<32x512xf32, #tpu.memory_space<vmem>>, vector<32x512xf32>
    tpu.vector_store %arg9[%c0_79, %c0_80], %113 {strides = array<i32>} : memref<32x512xf32, #tpu.memory_space<vmem>>, vector<32x512xf32>,
    %c0_81 = arith.constant 0 : index
    %c0_82 = arith.constant 0 : index
    %c0_83 = arith.constant 0 : index
    %115 = vector.load %arg2[%c0_81, %c0_82, %c0_83] : memref<2x32x256xf32, #tpu.memory_space<vmem>>, vector<1x32x256xf32>
    %116 = vector.shape_cast %115 : vector<1x32x256xf32> to vector<32x256xf32>
    %c1_84 = arith.constant 1 : index
    %c0_85 = arith.constant 0 : index
    %c0_86 = arith.constant 0 : index
    %117 = vector.load %arg2[%c1_84, %c0_85, %c0_86] : memref<2x32x256xf32, #tpu.memory_space<vmem>>, vector<1x32x256xf32>
    %118 = vector.shape_cast %117 : vector<1x32x256xf32> to vector<32x256xf32>
    %119 = tpu.concatenate %116, %118 in 1 : vector<32x256xf32>, vector<32x256xf32> -> vector<32x512xf32>
    %120 = arith.truncf %119 : vector<32x512xf32> to vector<32x512xbf16>
    %c2_87 = arith.constant 2 : index
    %c0_88 = arith.constant 0 : index
    %c0_89 = arith.constant 0 : index
    %121 = vector.load %arg5[%c2_87, %c0_88, %c0_89] : memref<4x32x32xbf16, #tpu.memory_space<vmem>>, vector<1x32x32xbf16>
    %122 = vector.shape_cast %121 : vector<1x32x32xbf16> to vector<32x32xbf16>
    %cst_90 = arith.constant dense<0.000000e+00> : vector<32x512xf32>
    %123 = tpu.matmul %122, %120, %cst_90 {dimension_numbers = #tpu.dot_dimension_numbers<[1], [0], [0], [1], [0, 0, 1, 1], [], []>} : vector<32x32xbf16>, vector<32x512xbf16>, vector<32x512xf32> -> vector<32x512xf32>
    %c34_i32_91 = arith.constant 34 : i32
    %124 = tpu.dynamic_rotate %123 by %c34_i32_91 dim 1 : vector<32x512xf32>, i32 -> vector<32x512xf32>
    %c0_92 = arith.constant 0 : index
    %c0_93 = arith.constant 0 : index
    %c0_94 = arith.constant 0 : index
    %125 = vector.load %arg4[%c0_92, %c0_93, %c0_94] : memref<9x1x512xf32, #tpu.memory_space<vmem>>, vector<1x1x512xf32>
    %126 = vector.shape_cast %125 : vector<1x1x512xf32> to vector<1x512xf32>
    %127 = vector.broadcast %126 : vector<1x512xf32> to vector<32x512xf32>
    %128 = arith.mulf %124, %127 : vector<32x512xf32>
    %129 = arith.truncf %128 : vector<32x512xf32> to vector<32x512xbf16>
    %c9 = arith.constant 9 : index
    %c0_95 = arith.constant 0 : index
    %c0_96 = arith.constant 0 : index
    %130 = vector.load %arg6[%c9, %c0_95, %c0_96] : memref<18x32x32xbf16, #tpu.memory_space<vmem>>, vector<1x32x32xbf16>
    %131 = vector.shape_cast %130 : vector<1x32x32xbf16> to vector<32x32xbf16>
    %cst_97 = arith.constant dense<0.000000e+00> : vector<32x512xf32>
    %132 = tpu.matmul %131, %129, %cst_97 {dimension_numbers = #tpu.dot_dimension_numbers<[1], [0], [0], [1], [0, 0, 1, 1], [], []>} : vector<32x32xbf16>, vector<32x512xbf16>, vector<32x512xf32> -> vector<32x512xf32>
    %c32_i32_98 = arith.constant 32 : i32
    %133 = tpu.dynamic_rotate %123 by %c32_i32_98 dim 1 : vector<32x512xf32>, i32 -> vector<32x512xf32>
    %c1_99 = arith.constant 1 : index
    %c0_100 = arith.constant 0 : index
    %c0_101 = arith.constant 0 : index
    %134 = vector.load %arg4[%c1_99, %c0_100, %c0_101] : memref<9x1x512xf32, #tpu.memory_space<vmem>>, vector<1x1x512xf32>
    %135 = vector.shape_cast %134 : vector<1x1x512xf32> to vector<1x512xf32>
    %136 = vector.broadcast %135 : vector<1x512xf32> to vector<32x512xf32>
    %137 = arith.mulf %133, %136 : vector<32x512xf32>
    %138 = arith.truncf %137 : vector<32x512xf32> to vector<32x512xbf16>
    %c10 = arith.constant 10 : index
    %c0_102 = arith.constant 0 : index
    %c0_103 = arith.constant 0 : index
    %139 = vector.load %arg6[%c10, %c0_102, %c0_103] : memref<18x32x32xbf16, #tpu.memory_space<vmem>>, vector<1x32x32xbf16>
    %140 = vector.shape_cast %139 : vector<1x32x32xbf16> to vector<32x32xbf16>
    %cst_104 = arith.constant dense<0.000000e+00> : vector<32x512xf32>
    %141 = tpu.matmul %140, %138, %cst_104 {dimension_numbers = #tpu.dot_dimension_numbers<[1], [0], [0], [1], [0, 0, 1, 1], [], []>} : vector<32x32xbf16>, vector<32x512xbf16>, vector<32x512xf32> -> vector<32x512xf32>
    %142 = arith.addf %132, %141 : vector<32x512xf32>
    %c30_i32_105 = arith.constant 30 : i32
    %143 = tpu.dynamic_rotate %123 by %c30_i32_105 dim 1 : vector<32x512xf32>, i32 -> vector<32x512xf32>
    %c2_106 = arith.constant 2 : index
    %c0_107 = arith.constant 0 : index
    %c0_108 = arith.constant 0 : index
    %144 = vector.load %arg4[%c2_106, %c0_107, %c0_108] : memref<9x1x512xf32, #tpu.memory_space<vmem>>, vector<1x1x512xf32>
    %145 = vector.shape_cast %144 : vector<1x1x512xf32> to vector<1x512xf32>
    %146 = vector.broadcast %145 : vector<1x512xf32> to vector<32x512xf32>
    %147 = arith.mulf %143, %146 : vector<32x512xf32>
    %148 = arith.truncf %147 : vector<32x512xf32> to vector<32x512xbf16>
    %c11 = arith.constant 11 : index
    %c0_109 = arith.constant 0 : index
    %c0_110 = arith.constant 0 : index
    %149 = vector.load %arg6[%c11, %c0_109, %c0_110] : memref<18x32x32xbf16, #tpu.memory_space<vmem>>, vector<1x32x32xbf16>
    %150 = vector.shape_cast %149 : vector<1x32x32xbf16> to vector<32x32xbf16>
    %cst_111 = arith.constant dense<0.000000e+00> : vector<32x512xf32>
    %151 = tpu.matmul %150, %148, %cst_111 {dimension_numbers = #tpu.dot_dimension_numbers<[1], [0], [0], [1], [0, 0, 1, 1], [], []>} : vector<32x32xbf16>, vector<32x512xbf16>, vector<32x512xf32> -> vector<32x512xf32>
    %152 = arith.addf %142, %151 : vector<32x512xf32>
    %c2_i32_112 = arith.constant 2 : i32
    %153 = tpu.dynamic_rotate %123 by %c2_i32_112 dim 1 : vector<32x512xf32>, i32 -> vector<32x512xf32>
    %c3_113 = arith.constant 3 : index
    %c0_114 = arith.constant 0 : index
    %c0_115 = arith.constant 0 : index
    %154 = vector.load %arg4[%c3_113, %c0_114, %c0_115] : memref<9x1x512xf32, #tpu.memory_space<vmem>>, vector<1x1x512xf32>
    %155 = vector.shape_cast %154 : vector<1x1x512xf32> to vector<1x512xf32>
    %156 = vector.broadcast %155 : vector<1x512xf32> to vector<32x512xf32>
    %157 = arith.mulf %153, %156 : vector<32x512xf32>
    %158 = arith.truncf %157 : vector<32x512xf32> to vector<32x512xbf16>
    %c12 = arith.constant 12 : index
    %c0_116 = arith.constant 0 : index
    %c0_117 = arith.constant 0 : index
    %159 = vector.load %arg6[%c12, %c0_116, %c0_117] : memref<18x32x32xbf16, #tpu.memory_space<vmem>>, vector<1x32x32xbf16>
    %160 = vector.shape_cast %159 : vector<1x32x32xbf16> to vector<32x32xbf16>
    %cst_118 = arith.constant dense<0.000000e+00> : vector<32x512xf32>
    %161 = tpu.matmul %160, %158, %cst_118 {dimension_numbers = #tpu.dot_dimension_numbers<[1], [0], [0], [1], [0, 0, 1, 1], [], []>} : vector<32x32xbf16>, vector<32x512xbf16>, vector<32x512xf32> -> vector<32x512xf32>
    %162 = arith.addf %152, %161 : vector<32x512xf32>
    %c4_119 = arith.constant 4 : index
    %c0_120 = arith.constant 0 : index
    %c0_121 = arith.constant 0 : index
    %163 = vector.load %arg4[%c4_119, %c0_120, %c0_121] : memref<9x1x512xf32, #tpu.memory_space<vmem>>, vector<1x1x512xf32>
    %164 = vector.shape_cast %163 : vector<1x1x512xf32> to vector<1x512xf32>
    %165 = vector.broadcast %164 : vector<1x512xf32> to vector<32x512xf32>
    %166 = arith.mulf %123, %165 : vector<32x512xf32>
    %167 = arith.truncf %166 : vector<32x512xf32> to vector<32x512xbf16>
    %c13 = arith.constant 13 : index
    %c0_122 = arith.constant 0 : index
    %c0_123 = arith.constant 0 : index
    %168 = vector.load %arg6[%c13, %c0_122, %c0_123] : memref<18x32x32xbf16, #tpu.memory_space<vmem>>, vector<1x32x32xbf16>
    %169 = vector.shape_cast %168 : vector<1x32x32xbf16> to vector<32x32xbf16>
    %cst_124 = arith.constant dense<0.000000e+00> : vector<32x512xf32>
    %170 = tpu.matmul %169, %167, %cst_124 {dimension_numbers = #tpu.dot_dimension_numbers<[1], [0], [0], [1], [0, 0, 1, 1], [], []>} : vector<32x32xbf16>, vector<32x512xbf16>, vector<32x512xf32> -> vector<32x512xf32>
    %171 = arith.addf %162, %170 : vector<32x512xf32>
    %c510_i32_125 = arith.constant 510 : i32
    %172 = tpu.dynamic_rotate %123 by %c510_i32_125 dim 1 : vector<32x512xf32>, i32 -> vector<32x512xf32>
    %c5_126 = arith.constant 5 : index
    %c0_127 = arith.constant 0 : index
    %c0_128 = arith.constant 0 : index
    %173 = vector.load %arg4[%c5_126, %c0_127, %c0_128] : memref<9x1x512xf32, #tpu.memory_space<vmem>>, vector<1x1x512xf32>
    %174 = vector.shape_cast %173 : vector<1x1x512xf32> to vector<1x512xf32>
    %175 = vector.broadcast %174 : vector<1x512xf32> to vector<32x512xf32>
    %176 = arith.mulf %172, %175 : vector<32x512xf32>
    %177 = arith.truncf %176 : vector<32x512xf32> to vector<32x512xbf16>
    %c14 = arith.constant 14 : index
    %c0_129 = arith.constant 0 : index
    %c0_130 = arith.constant 0 : index
    %178 = vector.load %arg6[%c14, %c0_129, %c0_130] : memref<18x32x32xbf16, #tpu.memory_space<vmem>>, vector<1x32x32xbf16>
    %179 = vector.shape_cast %178 : vector<1x32x32xbf16> to vector<32x32xbf16>
    %cst_131 = arith.constant dense<0.000000e+00> : vector<32x512xf32>
    %180 = tpu.matmul %179, %177, %cst_131 {dimension_numbers = #tpu.dot_dimension_numbers<[1], [0], [0], [1], [0, 0, 1, 1], [], []>} : vector<32x32xbf16>, vector<32x512xbf16>, vector<32x512xf32> -> vector<32x512xf32>
    %181 = arith.addf %171, %180 : vector<32x512xf32>
    %c482_i32_132 = arith.constant 482 : i32
    %182 = tpu.dynamic_rotate %123 by %c482_i32_132 dim 1 : vector<32x512xf32>, i32 -> vector<32x512xf32>
    %c6_133 = arith.constant 6 : index
    %c0_134 = arith.constant 0 : index
    %c0_135 = arith.constant 0 : index
    %183 = vector.load %arg4[%c6_133, %c0_134, %c0_135] : memref<9x1x512xf32, #tpu.memory_space<vmem>>, vector<1x1x512xf32>
    %184 = vector.shape_cast %183 : vector<1x1x512xf32> to vector<1x512xf32>
    %185 = vector.broadcast %184 : vector<1x512xf32> to vector<32x512xf32>
    %186 = arith.mulf %182, %185 : vector<32x512xf32>
    %187 = arith.truncf %186 : vector<32x512xf32> to vector<32x512xbf16>
    %c15 = arith.constant 15 : index
    %c0_136 = arith.constant 0 : index
    %c0_137 = arith.constant 0 : index
    %188 = vector.load %arg6[%c15, %c0_136, %c0_137] : memref<18x32x32xbf16, #tpu.memory_space<vmem>>, vector<1x32x32xbf16>
    %189 = vector.shape_cast %188 : vector<1x32x32xbf16> to vector<32x32xbf16>
    %cst_138 = arith.constant dense<0.000000e+00> : vector<32x512xf32>
    %190 = tpu.matmul %189, %187, %cst_138 {dimension_numbers = #tpu.dot_dimension_numbers<[1], [0], [0], [1], [0, 0, 1, 1], [], []>} : vector<32x32xbf16>, vector<32x512xbf16>, vector<32x512xf32> -> vector<32x512xf32>
    %191 = arith.addf %181, %190 : vector<32x512xf32>
    %c480_i32_139 = arith.constant 480 : i32
    %192 = tpu.dynamic_rotate %123 by %c480_i32_139 dim 1 : vector<32x512xf32>, i32 -> vector<32x512xf32>
    %c7_140 = arith.constant 7 : index
    %c0_141 = arith.constant 0 : index
    %c0_142 = arith.constant 0 : index
    %193 = vector.load %arg4[%c7_140, %c0_141, %c0_142] : memref<9x1x512xf32, #tpu.memory_space<vmem>>, vector<1x1x512xf32>
    %194 = vector.shape_cast %193 : vector<1x1x512xf32> to vector<1x512xf32>
    %195 = vector.broadcast %194 : vector<1x512xf32> to vector<32x512xf32>
    %196 = arith.mulf %192, %195 : vector<32x512xf32>
    %197 = arith.truncf %196 : vector<32x512xf32> to vector<32x512xbf16>
    %c16 = arith.constant 16 : index
    %c0_143 = arith.constant 0 : index
    %c0_144 = arith.constant 0 : index
    %198 = vector.load %arg6[%c16, %c0_143, %c0_144] : memref<18x32x32xbf16, #tpu.memory_space<vmem>>, vector<1x32x32xbf16>
    %199 = vector.shape_cast %198 : vector<1x32x32xbf16> to vector<32x32xbf16>
    %cst_145 = arith.constant dense<0.000000e+00> : vector<32x512xf32>
    %200 = tpu.matmul %199, %197, %cst_145 {dimension_numbers = #tpu.dot_dimension_numbers<[1], [0], [0], [1], [0, 0, 1, 1], [], []>} : vector<32x32xbf16>, vector<32x512xbf16>, vector<32x512xf32> -> vector<32x512xf32>
    %201 = arith.addf %191, %200 : vector<32x512xf32>
    %c478_i32_146 = arith.constant 478 : i32
    %202 = tpu.dynamic_rotate %123 by %c478_i32_146 dim 1 : vector<32x512xf32>, i32 -> vector<32x512xf32>
    %c8_147 = arith.constant 8 : index
    %c0_148 = arith.constant 0 : index
    %c0_149 = arith.constant 0 : index
    %203 = vector.load %arg4[%c8_147, %c0_148, %c0_149] : memref<9x1x512xf32, #tpu.memory_space<vmem>>, vector<1x1x512xf32>
    %204 = vector.shape_cast %203 : vector<1x1x512xf32> to vector<1x512xf32>
    %205 = vector.broadcast %204 : vector<1x512xf32> to vector<32x512xf32>
    %206 = arith.mulf %202, %205 : vector<32x512xf32>
    %207 = arith.truncf %206 : vector<32x512xf32> to vector<32x512xbf16>
    %c17 = arith.constant 17 : index
    %c0_150 = arith.constant 0 : index
    %c0_151 = arith.constant 0 : index
    %208 = vector.load %arg6[%c17, %c0_150, %c0_151] : memref<18x32x32xbf16, #tpu.memory_space<vmem>>, vector<1x32x32xbf16>
    %209 = vector.shape_cast %208 : vector<1x32x32xbf16> to vector<32x32xbf16>
    %cst_152 = arith.constant dense<0.000000e+00> : vector<32x512xf32>
    %210 = tpu.matmul %209, %207, %cst_152 {dimension_numbers = #tpu.dot_dimension_numbers<[1], [0], [0], [1], [0, 0, 1, 1], [], []>} : vector<32x32xbf16>, vector<32x512xbf16>, vector<32x512xf32> -> vector<32x512xf32>
    %211 = arith.addf %201, %210 : vector<32x512xf32>
    %c3_153 = arith.constant 3 : index
    %c0_154 = arith.constant 0 : index
    %c0_155 = arith.constant 0 : index
    %212 = vector.load %arg5[%c3_153, %c0_154, %c0_155] : memref<4x32x32xbf16, #tpu.memory_space<vmem>>, vector<1x32x32xbf16>
    %213 = vector.shape_cast %212 : vector<1x32x32xbf16> to vector<32x32xbf16>
    %214 = arith.truncf %211 : vector<32x512xf32> to vector<32x512xbf16>
    %cst_156 = arith.constant dense<0.000000e+00> : vector<32x512xf32>
    %215 = tpu.matmul %213, %214, %cst_156 {dimension_numbers = #tpu.dot_dimension_numbers<[1], [0], [0], [1], [0, 0, 1, 1], [], []>} : vector<32x32xbf16>, vector<32x512xbf16>, vector<32x512xf32> -> vector<32x512xf32>
    %216 = vector.broadcast %4 : vector<1x512xf32> to vector<32x512xf32>
    %217 = arith.mulf %215, %216 : vector<32x512xf32>
    %c0_157 = arith.constant 0 : index
    %c0_158 = arith.constant 0 : index
    %c0_159 = arith.constant 0 : index
    %218 = vector.load %arg2[%c0_157, %c0_158, %c0_159] : memref<2x32x256xf32, #tpu.memory_space<vmem>>, vector<1x32x256xf32>
    %219 = vector.shape_cast %218 : vector<1x32x256xf32> to vector<32x256xf32>
    %c1_160 = arith.constant 1 : index
    %c0_161 = arith.constant 0 : index
    %c0_162 = arith.constant 0 : index
    %220 = vector.load %arg2[%c1_160, %c0_161, %c0_162] : memref<2x32x256xf32, #tpu.memory_space<vmem>>, vector<1x32x256xf32>
    %221 = vector.shape_cast %220 : vector<1x32x256xf32> to vector<32x256xf32>
    %222 = tpu.concatenate %219, %221 in 1 : vector<32x256xf32>, vector<32x256xf32> -> vector<32x512xf32>
    %223 = arith.addf %217, %222 : vector<32x512xf32>
    %c0_163 = arith.constant 0 : index
    %c0_164 = arith.constant 0 : index
    %224 = vector.load %arg9[%c0_163, %c0_164] : memref<32x512xf32, #tpu.memory_space<vmem>>, vector<32x512xf32>
    %cst_165 = arith.constant 0.000000e+00 : f32
    %225 = vector.broadcast %cst_165 : f32 to vector<32x512xf32>
    %226 = arith.maximumf %224, %225 : vector<32x512xf32>
    %cst_166 = arith.constant 0.000000e+00 : f32
    %227 = vector.broadcast %cst_166 : f32 to vector<32x512xf32>
    %228 = arith.minimumf %223, %227 : vector<32x512xf32>
    %229 = arith.addf %226, %228 : vector<32x512xf32>
    %cst_167 = arith.constant 0.000000e+00 : f32
    %230 = vector.broadcast %cst_167 : f32 to vector<32x512xf32>
    %231 = arith.maximumf %223, %230 : vector<32x512xf32>
    %cst_168 = arith.constant 0.000000e+00 : f32
    %232 = vector.broadcast %cst_168 : f32 to vector<32x512xf32>
    %233 = arith.minimumf %224, %232 : vector<32x512xf32>
    %234 = arith.addf %231, %233 : vector<32x512xf32>
    %235 = vector.extract_strided_slice %229 {offsets = [0, 0], sizes = [32, 256], strides = [1, 1]} : vector<32x512xf32> to vector<32x256xf32>
    %c0_169 = arith.constant 0 : index
    %c0_170 = arith.constant 0 : index
    %c0_171 = arith.constant 0 : index
    %236 = vector.load %arg7[%c0_169, %c0_170, %c0_171] : memref<2x32x256xf32, #tpu.memory_space<vmem>>, vector<1x32x256xf32>
    %237 = vector.shape_cast %236 : vector<1x32x256xf32> to vector<32x256xf32>
    %238 = vector.shape_cast %235 : vector<32x256xf32> to vector<1x32x256xf32>
    tpu.vector_store %arg7[%c0_169, %c0_170, %c0_171], %238 {strides = array<i32>} : memref<2x32x256xf32, #tpu.memory_space<vmem>>, vector<1x32x256xf32>,
    %239 = vector.extract_strided_slice %234 {offsets = [0, 0], sizes = [32, 256], strides = [1, 1]} : vector<32x512xf32> to vector<32x256xf32>
    %c0_172 = arith.constant 0 : index
    %c0_173 = arith.constant 0 : index
    %c0_174 = arith.constant 0 : index
    %240 = vector.load %arg8[%c0_172, %c0_173, %c0_174] : memref<2x32x256xf32, #tpu.memory_space<vmem>>, vector<1x32x256xf32>
    %241 = vector.shape_cast %240 : vector<1x32x256xf32> to vector<32x256xf32>
    %242 = vector.shape_cast %239 : vector<32x256xf32> to vector<1x32x256xf32>
    tpu.vector_store %arg8[%c0_172, %c0_173, %c0_174], %242 {strides = array<i32>} : memref<2x32x256xf32, #tpu.memory_space<vmem>>, vector<1x32x256xf32>,
    %243 = vector.extract_strided_slice %229 {offsets = [0, 256], sizes = [32, 256], strides = [1, 1]} : vector<32x512xf32> to vector<32x256xf32>
    %c1_175 = arith.constant 1 : index
    %c0_176 = arith.constant 0 : index
    %c0_177 = arith.constant 0 : index
    %244 = vector.load %arg7[%c1_175, %c0_176, %c0_177] : memref<2x32x256xf32, #tpu.memory_space<vmem>>, vector<1x32x256xf32>
    %245 = vector.shape_cast %244 : vector<1x32x256xf32> to vector<32x256xf32>
    %246 = vector.shape_cast %243 : vector<32x256xf32> to vector<1x32x256xf32>
    tpu.vector_store %arg7[%c1_175, %c0_176, %c0_177], %246 {strides = array<i32>} : memref<2x32x256xf32, #tpu.memory_space<vmem>>, vector<1x32x256xf32>,
    %247 = vector.extract_strided_slice %234 {offsets = [0, 256], sizes = [32, 256], strides = [1, 1]} : vector<32x512xf32> to vector<32x256xf32>
    %c1_178 = arith.constant 1 : index
    %c0_179 = arith.constant 0 : index
    %c0_180 = arith.constant 0 : index
    %248 = vector.load %arg8[%c1_178, %c0_179, %c0_180] : memref<2x32x256xf32, #tpu.memory_space<vmem>>, vector<1x32x256xf32>
    %249 = vector.shape_cast %248 : vector<1x32x256xf32> to vector<32x256xf32>
    %250 = vector.shape_cast %247 : vector<32x256xf32> to vector<1x32x256xf32>
    tpu.vector_store %arg8[%c1_178, %c0_179, %c0_180], %250 {strides = array<i32>} : memref<2x32x256xf32, #tpu.memory_space<vmem>>, vector<1x32x256xf32>,
    return
  }
  func.func @transform_0(%arg0: i32) -> (i32, i32, i32) {
    %c0_i32 = arith.constant 0 : i32
    %c0_i32_0 = arith.constant 0 : i32
    %c0_i32_1 = arith.constant 0 : i32
    %c0_i32_2 = arith.constant 0 : i32
    return %c0_i32, %c0_i32_0, %c0_i32_1 : i32, i32, i32
  }
  func.func @transform_1(%arg0: i32) -> (i32, i32, i32) {
    %c0_i32 = arith.constant 0 : i32
    %c0_i32_0 = arith.constant 0 : i32
    %c0_i32_1 = arith.constant 0 : i32
    %c0_i32_2 = arith.constant 0 : i32
    return %c0_i32, %c0_i32_0, %c0_i32_1 : i32, i32, i32
  }
  func.func @transform_2(%arg0: i32) -> (i32, i32, i32) {
    %c0_i32 = arith.constant 0 : i32
    %c0_i32_0 = arith.constant 0 : i32
    %c0_i32_1 = arith.constant 0 : i32
    %c0_i32_2 = arith.constant 0 : i32
    return %c0_i32, %c0_i32_0, %c0_i32_1 : i32, i32, i32
  }
  func.func @transform_3(%arg0: i32) -> (i32, i32, i32) {
    %c0_i32 = arith.constant 0 : i32
    %c0_i32_0 = arith.constant 0 : i32
    %c0_i32_1 = arith.constant 0 : i32
    %c0_i32_2 = arith.constant 0 : i32
    return %c0_i32, %c0_i32_0, %c0_i32_1 : i32, i32, i32
  }
  func.func @transform_4(%arg0: i32) -> (i32, i32, i32) {
    %c0_i32 = arith.constant 0 : i32
    %c0_i32_0 = arith.constant 0 : i32
    %c0_i32_1 = arith.constant 0 : i32
    %c0_i32_2 = arith.constant 0 : i32
    return %c0_i32, %c0_i32_0, %c0_i32_1 : i32, i32, i32
  }
  func.func @transform_5(%arg0: i32) -> (i32, i32, i32) {
    %c0_i32 = arith.constant 0 : i32
    %c0_i32_0 = arith.constant 0 : i32
    %c0_i32_1 = arith.constant 0 : i32
    %c0_i32_2 = arith.constant 0 : i32
    return %c0_i32, %c0_i32_0, %c0_i32_1 : i32, i32, i32
  }
  func.func @transform_6(%arg0: i32) -> (i32, i32, i32) {
    %c0_i32 = arith.constant 0 : i32
    %c0_i32_0 = arith.constant 0 : i32
    %c0_i32_1 = arith.constant 0 : i32
    %c0_i32_2 = arith.constant 0 : i32
    return %c0_i32, %c0_i32_0, %c0_i32_1 : i32, i32, i32
  }
  func.func @transform_7(%arg0: i32) -> (i32, i32, i32) {
    %c0_i32 = arith.constant 0 : i32
    %c0_i32_0 = arith.constant 0 : i32
    %c0_i32_1 = arith.constant 0 : i32
    %c0_i32_2 = arith.constant 0 : i32
    return %c0_i32, %c0_i32_0, %c0_i32_1 : i32, i32, i32
  }
}

</mosaic_0001>

<llo_original>
// kernel: ytmt_att_relu_forward.1
$region0: #{ytmt_att_relu_forward.1}
  #allocation0 [shape = 'u32[]', space=smem, size = 0x4, offset = 0x4, fixed_abs, tag = 'smem constant byte address 0x4 - core index']
  #allocation1 [shape = 'u32[72,128]{1,0:T(1,128)}', space=vmem, size = 0x9000, scoped, tag = 'internal scratch']
  #allocation2 [shape = 'f32[32,512]{1,0:T(8,128)}', space=vmem, size = 0x10000, scoped, tag = 'scratch operand']
  %s0 = inlined_call_operand.vmem [shape: f32[2,32,256], index: 0, kind: input, shape index: {}]
  %s1 = inlined_call_operand.vmem [shape: f32[2,32,256], index: 1, kind: input, shape index: {}]
  %s2 = inlined_call_operand.vmem [shape: f32[2,1,256], index: 2, kind: input, shape index: {}]
  %s3 = inlined_call_operand.vmem [shape: f32[9,1,512], index: 3, kind: input, shape index: {}]
  %s4 = inlined_call_operand.vmem [shape: bf16[4,32,32], index: 4, kind: input, shape index: {}]
  %s5 = inlined_call_operand.vmem [shape: bf16[18,32,32], index: 5, kind: input, shape index: {}]
  %s6 = inlined_call_operand.vmem [shape: f32[2,32,256], index: 6, kind: output, shape index: {0}]
  %s7 = inlined_call_operand.vmem [shape: f32[2,32,256], index: 7, kind: output, shape index: {1}]
  %8 = xla_tuple %s6, %s7
  %s9 = sld [smem:[#allocation0]]
  $region42: #{ytmt_att_relu_forward.1} parent=0
    _
  %s11 = ssub.s32 1, %s9
  %s12 = scalar_select 0, %s11, %s9
  // Predicated region
  $region2: #{ytmt_att_relu_forward.1} parent=0 // pred_check
    _
  $region3: #{ytmt_att_relu_forward.1} parent=0 // pred_check_branch
    %14 = sbr.rel (0) target = $region5
  $region4: #{ytmt_att_relu_forward.1} parent=0 // pred_region
    _
  $region5: #{ytmt_att_relu_forward.1} parent=0 // pred_fallthru
    _
  // Predicated region
  $region6: #{ytmt_att_relu_forward.1} parent=0 // pred_check
    _
  $region7: #{ytmt_att_relu_forward.1} parent=0 // pred_check_branch
    %16 = sbr.rel (0) target = $region9
  $region8: #{ytmt_att_relu_forward.1} parent=0 // pred_region
    _
  $region9: #{ytmt_att_relu_forward.1} parent=0 // pred_fallthru
    _
  // Predicated region
  $region10: #{ytmt_att_relu_forward.1} parent=0 // pred_check
    _
  $region11: #{ytmt_att_relu_forward.1} parent=0 // pred_check_branch
    %18 = sbr.rel (0) target = $region13
  $region12: #{ytmt_att_relu_forward.1} parent=0 // pred_region
    _
  $region13: #{ytmt_att_relu_forward.1} parent=0 // pred_fallthru
    _
  // Predicated region
  $region14: #{ytmt_att_relu_forward.1} parent=0 // pred_check
    _
  $region15: #{ytmt_att_relu_forward.1} parent=0 // pred_check_branch
    %20 = sbr.rel (0) target = $region17
  $region16: #{ytmt_att_relu_forward.1} parent=0 // pred_region
    _
  $region17: #{ytmt_att_relu_forward.1} parent=0 // pred_fallthru
    _
  // Predicated region
  $region18: #{ytmt_att_relu_forward.1} parent=0 // pred_check
    _
  $region19: #{ytmt_att_relu_forward.1} parent=0 // pred_check_branch
    %22 = sbr.rel (0) target = $region21
  $region20: #{ytmt_att_relu_forward.1} parent=0 // pred_region
    _
  $region21: #{ytmt_att_relu_forward.1} parent=0 // pred_fallthru
    _
  // Predicated region
  $region22: #{ytmt_att_relu_forward.1} parent=0 // pred_check
    _
  $region23: #{ytmt_att_relu_forward.1} parent=0 // pred_check_branch
    %24 = sbr.rel (0) target = $region25
  $region24: #{ytmt_att_relu_forward.1} parent=0 // pred_region
    _
  $region25: #{ytmt_att_relu_forward.1} parent=0 // pred_fallthru
    _
  %v26 = vld [vmem:[%s2] sm:$0x3]
  %s27 = scalar_lea.vmem %s2, 2
  %v28 = vld [vmem:[%s27] sm:$0x3]
  %v30 = vperm.slane %v26, 0
  %v31 = vperm.slane %v26, 1
  %v35 = vperm.slane %v28, 0
  %v36 = vperm.slane %v28, 1
  %v39 = vld [vmem:[%s0] sm:$0xff]
  %v40 = vld [vmem:[%s0 + $0x8] sm:$0xff]
  %v41 = vld [vmem:[%s0 + $0x10] sm:$0xff]
  %v42 = vld [vmem:[%s0 + $0x18] sm:$0xff]
  %v43 = vld [vmem:[%s0 + $0x20] sm:$0xff]
  %v44 = vld [vmem:[%s0 + $0x28] sm:$0xff]
  %v45 = vld [vmem:[%s0 + $0x30] sm:$0xff]
  %v46 = vld [vmem:[%s0 + $0x38] sm:$0xff]
  %s47 = scalar_lea.vmem %s0, 64
  %v48 = vld [vmem:[%s47] sm:$0xff]
  %v49 = vld [vmem:[%s47 + $0x8] sm:$0xff]
  %v50 = vld [vmem:[%s47 + $0x10] sm:$0xff]
  %v51 = vld [vmem:[%s47 + $0x18] sm:$0xff]
  %v52 = vld [vmem:[%s47 + $0x20] sm:$0xff]
  %v53 = vld [vmem:[%s47 + $0x28] sm:$0xff]
  %v54 = vld [vmem:[%s47 + $0x30] sm:$0xff]
  %v55 = vld [vmem:[%s47 + $0x38] sm:$0xff]
  %v56 = vpack.c.bf16 %v41, %v39
  %v57 = vpack.c.bf16 %v42, %v40
  %v58 = vpack.c.bf16 %v50, %v48
  %v59 = vpack.c.bf16 %v51, %v49
  %v60 = vpack.c.bf16 %v45, %v43
  %v61 = vpack.c.bf16 %v46, %v44
  %v62 = vpack.c.bf16 %v54, %v52
  %v63 = vpack.c.bf16 %v55, %v53
  %v64 = vld [vmem:[%s4] sm:$0xf]
  %v65 = vld [vmem:[%s4 + $0x4] sm:$0xf]
  %v66 = vld [vmem:[%s4 + $0x8] sm:$0xf]
  %v67 = vld [vmem:[%s4 + $0xc] sm:$0xf]
  %v72 = vunpack.c.l.b16 %v64
  %v73 = vunpack.c.l.b16 %v65
  %v74 = vunpack.c.l.b16 %v66
  %v75 = vunpack.c.l.b16 %v67
  %v76 = vpack.c.b16 %v73, %v72
  %v77 = vpack.c.b16 %v75, %v74
  %vm78 = vcmask 261120
  %v80 = vsel %vm78, %v76, 0
  %v83 = vsel %vm78, %v77, 0
  %85 = vmatpush.bf16.msra.mxu0 0
  %86 = vmatpush.bf16.msra.mxu0 0
  %87 = vmatpush.bf16.msra.mxu0 0
  %88 = vmatpush.bf16.msra.mxu0 0
  %89 = vmatpush.bf16.msra.mxu0 0
  %90 = vmatpush.bf16.msra.mxu0 0
  %91 = vmatpush.bf16.msra.mxu0 %v60
  %92 = vmatpush.bf16.msra.mxu0 %v56
  %93 = vmatmul.bf16.gmra.mxu0 %v80
  %v94 = vpop.f32.mrf.mxu0
  %v95 = vadd.f32 0.0, %v94
  %v96 = vpop.f32.mrf.mxu0
  %v97 = vadd.f32 0.0, %v96
  %98 = vmatmul.bf16.gmra.mxu0 %v83
  %v99 = vpop.f32.mrf.mxu0
  %v100 = vadd.f32 0.0, %v99
  %v101 = vpop.f32.mrf.mxu0
  %v102 = vadd.f32 0.0, %v101
  %103 = vdwg.mxu0
  %104 = vmatpush.bf16.msra.mxu0 0
  %105 = vmatpush.bf16.msra.mxu0 0
  %106 = vmatpush.bf16.msra.mxu0 0
  %107 = vmatpush.bf16.msra.mxu0 0
  %108 = vmatpush.bf16.msra.mxu0 0
  %109 = vmatpush.bf16.msra.mxu0 0
  %110 = vmatpush.bf16.msra.mxu0 %v61
  %111 = vmatpush.bf16.msra.mxu0 %v57
  %112 = vmatmul.bf16.gmra.mxu0 %v80
  %v113 = vpop.f32.mrf.mxu0
  %v114 = vadd.f32 0.0, %v113
  %v115 = vpop.f32.mrf.mxu0
  %v116 = vadd.f32 0.0, %v115
  %117 = vmatmul.bf16.gmra.mxu0 %v83
  %v118 = vpop.f32.mrf.mxu0
  %v119 = vadd.f32 0.0, %v118
  %v120 = vpop.f32.mrf.mxu0
  %v121 = vadd.f32 0.0, %v120
  %122 = vdwg.mxu0
  %123 = vmatpush.bf16.msra.mxu0 0
  %124 = vmatpush.bf16.msra.mxu0 0
  %125 = vmatpush.bf16.msra.mxu0 0
  %126 = vmatpush.bf16.msra.mxu0 0
  %127 = vmatpush.bf16.msra.mxu0 0
  %128 = vmatpush.bf16.msra.mxu0 0
  %129 = vmatpush.bf16.msra.mxu0 %v62
  %130 = vmatpush.bf16.msra.mxu0 %v58
  %131 = vmatmul.bf16.gmra.mxu0 %v80
  %v132 = vpop.f32.mrf.mxu0
  %v133 = vadd.f32 0.0, %v132
  %v134 = vpop.f32.mrf.mxu0
  %v135 = vadd.f32 0.0, %v134
  %136 = vmatmul.bf16.gmra.mxu0 %v83
  %v137 = vpop.f32.mrf.mxu0
  %v138 = vadd.f32 0.0, %v137
  %v139 = vpop.f32.mrf.mxu0
  %v140 = vadd.f32 0.0, %v139
  %141 = vdwg.mxu0
  %142 = vmatpush.bf16.msra.mxu0 0
  %143 = vmatpush.bf16.msra.mxu0 0
  %144 = vmatpush.bf16.msra.mxu0 0
  %145 = vmatpush.bf16.msra.mxu0 0
  %146 = vmatpush.bf16.msra.mxu0 0
  %147 = vmatpush.bf16.msra.mxu0 0
  %148 = vmatpush.bf16.msra.mxu0 %v63
  %149 = vmatpush.bf16.msra.mxu0 %v59
  %150 = vmatmul.bf16.gmra.mxu0 %v80
  %v151 = vpop.f32.mrf.mxu0
  %v152 = vadd.f32 0.0, %v151
  %v153 = vpop.f32.mrf.mxu0
  %v154 = vadd.f32 0.0, %v153
  %155 = vmatmul.bf16.gmra.mxu0 %v83
  %v156 = vpop.f32.mrf.mxu0
  %v157 = vadd.f32 0.0, %v156
  %v158 = vpop.f32.mrf.mxu0
  %v159 = vadd.f32 0.0, %v158
  %160 = vdwg.mxu0
  %161 = vrot.lane.b32.xlu0 %v95, 34
  %v162 = vpop.permute.xlu0 %161
  %163 = vrot.lane.b32.xlu0 %v97, 34
  %v164 = vpop.permute.xlu0 %163
  %165 = vrot.lane.b32.xlu0 %v100, 34
  %v166 = vpop.permute.xlu0 %165
  %167 = vrot.lane.b32.xlu0 %v102, 34
  %v168 = vpop.permute.xlu0 %167
  %169 = vrot.lane.b32.xlu0 %v114, 34
  %v170 = vpop.permute.xlu0 %169
  %171 = vrot.lane.b32.xlu0 %v116, 34
  %v172 = vpop.permute.xlu0 %171
  %173 = vrot.lane.b32.xlu0 %v119, 34
  %v174 = vpop.permute.xlu0 %173
  %175 = vrot.lane.b32.xlu0 %v121, 34
  %v176 = vpop.permute.xlu0 %175
  %177 = vrot.lane.b32.xlu0 %v133, 34
  %v178 = vpop.permute.xlu0 %177
  %179 = vrot.lane.b32.xlu0 %v135, 34
  %v180 = vpop.permute.xlu0 %179
  %181 = vrot.lane.b32.xlu0 %v138, 34
  %v182 = vpop.permute.xlu0 %181
  %183 = vrot.lane.b32.xlu0 %v140, 34
  %v184 = vpop.permute.xlu0 %183
  %185 = vrot.lane.b32.xlu0 %v152, 34
  %v186 = vpop.permute.xlu0 %185
  %187 = vrot.lane.b32.xlu0 %v154, 34
  %v188 = vpop.permute.xlu0 %187
  %189 = vrot.lane.b32.xlu0 %v157, 34
  %v190 = vpop.permute.xlu0 %189
  %191 = vrot.lane.b32.xlu0 %v159, 34
  %v192 = vpop.permute.xlu0 %191
  %v193 = vlaneseq
  %v194 = vand.u32 %v193, 127
  %vm195 = vcmp.lt.s32.totalorder %v194, 34
  %v196 = vsel %vm195, %v178, %v186
  %v197 = vsel %vm195, %v180, %v188
  %v198 = vsel %vm195, %v182, %v190
  %v199 = vsel %vm195, %v184, %v192
  %v200 = vsel %vm195, %v170, %v178
  %v201 = vsel %vm195, %v172, %v180
  %v202 = vsel %vm195, %v174, %v182
  %v203 = vsel %vm195, %v176, %v184
  %v204 = vsel %vm195, %v162, %v170
  %v205 = vsel %vm195, %v164, %v172
  %v206 = vsel %vm195, %v166, %v174
  %v207 = vsel %vm195, %v168, %v176
  %v208 = vsel %vm195, %v186, %v162
  %v209 = vsel %vm195, %v188, %v164
  %v210 = vsel %vm195, %v190, %v166
  %v211 = vsel %vm195, %v192, %v168
  %v212 = vld [vmem:[%s3] sm:$0xf]
  %v214 = vperm.slane %v212, 0
  %v215 = vperm.slane %v212, 1
  %v216 = vperm.slane %v212, 2
  %v217 = vperm.slane %v212, 3
  %v222 = vmul.f32 %v208, %v214
  %v223 = vmul.f32 %v204, %v215
  %v224 = vmul.f32 %v200, %v216
  %v225 = vmul.f32 %v196, %v217
  %v226 = vmul.f32 %v209, %v214
  %v227 = vmul.f32 %v205, %v215
  %v228 = vmul.f32 %v201, %v216
  %v229 = vmul.f32 %v197, %v217
  %v230 = vmul.f32 %v210, %v214
  %v231 = vmul.f32 %v206, %v215
  %v232 = vmul.f32 %v202, %v216
  %v233 = vmul.f32 %v198, %v217
  %v234 = vmul.f32 %v211, %v214
  %v235 = vmul.f32 %v207, %v215
  %v236 = vmul.f32 %v203, %v216
  %v237 = vmul.f32 %v199, %v217
  %v238 = vpack.c.bf16 %v226, %v222
  %v239 = vpack.c.bf16 %v227, %v223
  %v240 = vpack.c.bf16 %v228, %v224
  %v241 = vpack.c.bf16 %v229, %v225
  %v242 = vpack.c.bf16 %v234, %v230
  %v243 = vpack.c.bf16 %v235, %v231
  %v244 = vpack.c.bf16 %v236, %v232
  %v245 = vpack.c.bf16 %v237, %v233
  %v246 = vld [vmem:[%s5] sm:$0xf]
  %v247 = vld [vmem:[%s5 + $0x4] sm:$0xf]
  %v248 = vld [vmem:[%s5 + $0x8] sm:$0xf]
  %v249 = vld [vmem:[%s5 + $0xc] sm:$0xf]
  %250 = vrot.lane.b32.xlu0 %v95, 32
  %v251 = vpop.permute.xlu0 %250
  %252 = vrot.lane.b32.xlu0 %v97, 32
  %v253 = vpop.permute.xlu0 %252
  %254 = vrot.lane.b32.xlu0 %v100, 32
  %v255 = vpop.permute.xlu0 %254
  %256 = vrot.lane.b32.xlu0 %v102, 32
  %v257 = vpop.permute.xlu0 %256
  %258 = vrot.lane.b32.xlu0 %v114, 32
  %v259 = vpop.permute.xlu0 %258
  %260 = vrot.lane.b32.xlu0 %v116, 32
  %v261 = vpop.permute.xlu0 %260
  %262 = vrot.lane.b32.xlu0 %v119, 32
  %v263 = vpop.permute.xlu0 %262
  %264 = vrot.lane.b32.xlu0 %v121, 32
  %v265 = vpop.permute.xlu0 %264
  %266 = vrot.lane.b32.xlu0 %v133, 32
  %v267 = vpop.permute.xlu0 %266
  %268 = vrot.lane.b32.xlu0 %v135, 32
  %v269 = vpop.permute.xlu0 %268
  %270 = vrot.lane.b32.xlu0 %v138, 32
  %v271 = vpop.permute.xlu0 %270
  %272 = vrot.lane.b32.xlu0 %v140, 32
  %v273 = vpop.permute.xlu0 %272
  %274 = vrot.lane.b32.xlu0 %v152, 32
  %v275 = vpop.permute.xlu0 %274
  %276 = vrot.lane.b32.xlu0 %v154, 32
  %v277 = vpop.permute.xlu0 %276
  %278 = vrot.lane.b32.xlu0 %v157, 32
  %v279 = vpop.permute.xlu0 %278
  %280 = vrot.lane.b32.xlu0 %v159, 32
  %v281 = vpop.permute.xlu0 %280
  %vm282 = vcmp.lt.s32.totalorder %v194, 32
  %v283 = vsel %vm282, %v267, %v275
  %v284 = vsel %vm282, %v269, %v277
  %v285 = vsel %vm282, %v271, %v279
  %v286 = vsel %vm282, %v273, %v281
  %v287 = vsel %vm282, %v259, %v267
  %v288 = vsel %vm282, %v261, %v269
  %v289 = vsel %vm282, %v263, %v271
  %v290 = vsel %vm282, %v265, %v273
  %v291 = vsel %vm282, %v251, %v259
  %v292 = vsel %vm282, %v253, %v261
  %v293 = vsel %vm282, %v255, %v263
  %v294 = vsel %vm282, %v257, %v265
  %v295 = vsel %vm282, %v275, %v251
  %v296 = vsel %vm282, %v277, %v253
  %v297 = vsel %vm282, %v279, %v255
  %v298 = vsel %vm282, %v281, %v257
  %s299 = scalar_lea.vmem %s3, 4
  %v300 = vld [vmem:[%s299] sm:$0xf]
  %v302 = vperm.slane %v300, 0
  %v303 = vperm.slane %v300, 1
  %v304 = vperm.slane %v300, 2
  %v305 = vperm.slane %v300, 3
  %v310 = vmul.f32 %v295, %v302
  %v311 = vmul.f32 %v291, %v303
  %v312 = vmul.f32 %v287, %v304
  %v313 = vmul.f32 %v283, %v305
  %v314 = vmul.f32 %v296, %v302
  %v315 = vmul.f32 %v292, %v303
  %v316 = vmul.f32 %v288, %v304
  %v317 = vmul.f32 %v284, %v305
  %v318 = vmul.f32 %v297, %v302
  %v319 = vmul.f32 %v293, %v303
  %v320 = vmul.f32 %v289, %v304
  %v321 = vmul.f32 %v285, %v305
  %v322 = vmul.f32 %v298, %v302
  %v323 = vmul.f32 %v294, %v303
  %v324 = vmul.f32 %v290, %v304
  %v325 = vmul.f32 %v286, %v305
  %v326 = vpack.c.bf16 %v314, %v310
  %v327 = vpack.c.bf16 %v315, %v311
  %v328 = vpack.c.bf16 %v316, %v312
  %v329 = vpack.c.bf16 %v317, %v313
  %v330 = vpack.c.bf16 %v322, %v318
  %v331 = vpack.c.bf16 %v323, %v319
  %v332 = vpack.c.bf16 %v324, %v320
  %v333 = vpack.c.bf16 %v325, %v321
  %s334 = scalar_lea.vmem %s5, 16
  %v335 = vld [vmem:[%s334] sm:$0xf]
  %v336 = vld [vmem:[%s334 + $0x4] sm:$0xf]
  %v337 = vld [vmem:[%s334 + $0x8] sm:$0xf]
  %v338 = vld [vmem:[%s334 + $0xc] sm:$0xf]
  %v343 = vunpack.c.l.b16 %v335
  %v344 = vunpack.c.l.b16 %v336
  %v345 = vunpack.c.l.b16 %v337
  %v346 = vunpack.c.l.b16 %v338
  %v347 = vpack.c.b16 %v344, %v343
  %v348 = vpack.c.b16 %v346, %v345
  %v350 = vsel %vm78, %v347, 0
  %v353 = vsel %vm78, %v348, 0
  %355 = vmatpush.bf16.msra.mxu0 0
  %356 = vmatpush.bf16.msra.mxu0 0
  %357 = vmatpush.bf16.msra.mxu0 0
  %358 = vmatpush.bf16.msra.mxu0 0
  %359 = vmatpush.bf16.msra.mxu0 0
  %360 = vmatpush.bf16.msra.mxu0 0
  %361 = vmatpush.bf16.msra.mxu0 %v330
  %362 = vmatpush.bf16.msra.mxu0 %v326
  %363 = vmatmul.bf16.gmra.mxu0 %v350
  %v364 = vpop.f32.mrf.mxu0
  %v365 = vadd.f32 0.0, %v364
  %v366 = vpop.f32.mrf.mxu0
  %v367 = vadd.f32 0.0, %v366
  %368 = vmatmul.bf16.gmra.mxu0 %v353
  %v369 = vpop.f32.mrf.mxu0
  %v370 = vadd.f32 0.0, %v369
  %v371 = vpop.f32.mrf.mxu0
  %v372 = vadd.f32 0.0, %v371
  %373 = vdwg.mxu0
  %374 = vmatpush.bf16.msra.mxu0 0
  %375 = vmatpush.bf16.msra.mxu0 0
  %376 = vmatpush.bf16.msra.mxu0 0
  %377 = vmatpush.bf16.msra.mxu0 0
  %378 = vmatpush.bf16.msra.mxu0 0
  %379 = vmatpush.bf16.msra.mxu0 0
  %380 = vmatpush.bf16.msra.mxu0 %v331
  %381 = vmatpush.bf16.msra.mxu0 %v327
  %382 = vmatmul.bf16.gmra.mxu0 %v350
  %v383 = vpop.f32.mrf.mxu0
  %v384 = vadd.f32 0.0, %v383
  %v385 = vpop.f32.mrf.mxu0
  %v386 = vadd.f32 0.0, %v385
  %387 = vmatmul.bf16.gmra.mxu0 %v353
  %v388 = vpop.f32.mrf.mxu0
  %v389 = vadd.f32 0.0, %v388
  %v390 = vpop.f32.mrf.mxu0
  %v391 = vadd.f32 0.0, %v390
  %392 = vdwg.mxu0
  %393 = vmatpush.bf16.msra.mxu0 0
  %394 = vmatpush.bf16.msra.mxu0 0
  %395 = vmatpush.bf16.msra.mxu0 0
  %396 = vmatpush.bf16.msra.mxu0 0
  %397 = vmatpush.bf16.msra.mxu0 0
  %398 = vmatpush.bf16.msra.mxu0 0
  %399 = vmatpush.bf16.msra.mxu0 %v332
  %400 = vmatpush.bf16.msra.mxu0 %v328
  %401 = vmatmul.bf16.gmra.mxu0 %v350
  %v402 = vpop.f32.mrf.mxu0
  %v403 = vadd.f32 0.0, %v402
  %v404 = vpop.f32.mrf.mxu0
  %v405 = vadd.f32 0.0, %v404
  %406 = vmatmul.bf16.gmra.mxu0 %v353
  %v407 = vpop.f32.mrf.mxu0
  %v408 = vadd.f32 0.0, %v407
  %v409 = vpop.f32.mrf.mxu0
  %v410 = vadd.f32 0.0, %v409
  %411 = vdwg.mxu0
  %412 = vmatpush.bf16.msra.mxu0 0
  %413 = vmatpush.bf16.msra.mxu0 0
  %414 = vmatpush.bf16.msra.mxu0 0
  %415 = vmatpush.bf16.msra.mxu0 0
  %416 = vmatpush.bf16.msra.mxu0 0
  %417 = vmatpush.bf16.msra.mxu0 0
  %418 = vmatpush.bf16.msra.mxu0 %v333
  %419 = vmatpush.bf16.msra.mxu0 %v329
  %420 = vmatmul.bf16.gmra.mxu0 %v350
  %v421 = vpop.f32.mrf.mxu0
  %v422 = vadd.f32 0.0, %v421
  %v423 = vpop.f32.mrf.mxu0
  %v424 = vadd.f32 0.0, %v423
  %425 = vmatmul.bf16.gmra.mxu0 %v353
  %v426 = vpop.f32.mrf.mxu0
  %v427 = vadd.f32 0.0, %v426
  %v428 = vpop.f32.mrf.mxu0
  %v429 = vadd.f32 0.0, %v428
  %430 = vdwg.mxu0
  %v435 = vunpack.c.l.b16 %v246
  %v436 = vunpack.c.l.b16 %v247
  %v437 = vunpack.c.l.b16 %v248
  %v438 = vunpack.c.l.b16 %v249
  %v439 = vpack.c.b16 %v436, %v435
  %v440 = vpack.c.b16 %v438, %v437
  %v442 = vsel %vm78, %v439, 0
  %v445 = vsel %vm78, %v440, 0
  %447 = vmatpush.bf16.msra.mxu0 0
  %448 = vmatpush.bf16.msra.mxu0 0
  %449 = vmatpush.bf16.msra.mxu0 0
  %450 = vmatpush.bf16.msra.mxu0 0
  %451 = vmatpush.bf16.msra.mxu0 0
  %452 = vmatpush.bf16.msra.mxu0 0
  %453 = vmatpush.bf16.msra.mxu0 %v242
  %454 = vmatpush.bf16.msra.mxu0 %v238
  %455 = vmatmul.bf16.gmra.mxu0 %v442
  %v456 = vpop.f32.mrf.mxu0
  %v457 = vadd.f32 %v365, %v456
  %v458 = vpop.f32.mrf.mxu0
  %v459 = vadd.f32 %v367, %v458
  %460 = vmatmul.bf16.gmra.mxu0 %v445
  %v461 = vpop.f32.mrf.mxu0
  %v462 = vadd.f32 %v370, %v461
  %v463 = vpop.f32.mrf.mxu0
  %v464 = vadd.f32 %v372, %v463
  %465 = vdwg.mxu0
  %466 = vmatpush.bf16.msra.mxu0 0
  %467 = vmatpush.bf16.msra.mxu0 0
  %468 = vmatpush.bf16.msra.mxu0 0
  %469 = vmatpush.bf16.msra.mxu0 0
  %470 = vmatpush.bf16.msra.mxu0 0
  %471 = vmatpush.bf16.msra.mxu0 0
  %472 = vmatpush.bf16.msra.mxu0 %v243
  %473 = vmatpush.bf16.msra.mxu0 %v239
  %474 = vmatmul.bf16.gmra.mxu0 %v442
  %v475 = vpop.f32.mrf.mxu0
  %v476 = vadd.f32 %v384, %v475
  %v477 = vpop.f32.mrf.mxu0
  %v478 = vadd.f32 %v386, %v477
  %479 = vmatmul.bf16.gmra.mxu0 %v445
  %v480 = vpop.f32.mrf.mxu0
  %v481 = vadd.f32 %v389, %v480
  %v482 = vpop.f32.mrf.mxu0
  %v483 = vadd.f32 %v391, %v482
  %484 = vdwg.mxu0
  %485 = vmatpush.bf16.msra.mxu0 0
  %486 = vmatpush.bf16.msra.mxu0 0
  %487 = vmatpush.bf16.msra.mxu0 0
  %488 = vmatpush.bf16.msra.mxu0 0
  %489 = vmatpush.bf16.msra.mxu0 0
  %490 = vmatpush.bf16.msra.mxu0 0
  %491 = vmatpush.bf16.msra.mxu0 %v244
  %492 = vmatpush.bf16.msra.mxu0 %v240
  %493 = vmatmul.bf16.gmra.mxu0 %v442
  %v494 = vpop.f32.mrf.mxu0
  %v495 = vadd.f32 %v403, %v494
  %v496 = vpop.f32.mrf.mxu0
  %v497 = vadd.f32 %v405, %v496
  %498 = vmatmul.bf16.gmra.mxu0 %v445
  %v499 = vpop.f32.mrf.mxu0
  %v500 = vadd.f32 %v408, %v499
  %v501 = vpop.f32.mrf.mxu0
  %v502 = vadd.f32 %v410, %v501
  %503 = vdwg.mxu0
  %504 = vmatpush.bf16.msra.mxu0 0
  %505 = vmatpush.bf16.msra.mxu0 0
  %506 = vmatpush.bf16.msra.mxu0 0
  %507 = vmatpush.bf16.msra.mxu0 0
  %508 = vmatpush.bf16.msra.mxu0 0
  %509 = vmatpush.bf16.msra.mxu0 0
  %510 = vmatpush.bf16.msra.mxu0 %v245
  %511 = vmatpush.bf16.msra.mxu0 %v241
  %512 = vmatmul.bf16.gmra.mxu0 %v442
  %v513 = vpop.f32.mrf.mxu0
  %v514 = vadd.f32 %v422, %v513
  %v515 = vpop.f32.mrf.mxu0
  %v516 = vadd.f32 %v424, %v515
  %517 = vmatmul.bf16.gmra.mxu0 %v445
  %v518 = vpop.f32.mrf.mxu0
  %v519 = vadd.f32 %v427, %v518
  %v520 = vpop.f32.mrf.mxu0
  %v521 = vadd.f32 %v429, %v520
  %522 = vdwg.mxu0
  %523 = vrot.lane.b32.xlu0 %v95, 30
  %v524 = vpop.permute.xlu0 %523
  %525 = vrot.lane.b32.xlu0 %v97, 30
  %v526 = vpop.permute.xlu0 %525
  %527 = vrot.lane.b32.xlu0 %v100, 30
  %v528 = vpop.permute.xlu0 %527
  %529 = vrot.lane.b32.xlu0 %v102, 30
  %v530 = vpop.permute.xlu0 %529
  %531 = vrot.lane.b32.xlu0 %v114, 30
  %v532 = vpop.permute.xlu0 %531
  %533 = vrot.lane.b32.xlu0 %v116, 30
  %v534 = vpop.permute.xlu0 %533
  %535 = vrot.lane.b32.xlu0 %v119, 30
  %v536 = vpop.permute.xlu0 %535
  %537 = vrot.lane.b32.xlu0 %v121, 30
  %v538 = vpop.permute.xlu0 %537
  %539 = vrot.lane.b32.xlu0 %v133, 30
  %v540 = vpop.permute.xlu0 %539
  %541 = vrot.lane.b32.xlu0 %v135, 30
  %v542 = vpop.permute.xlu0 %541
  %543 = vrot.lane.b32.xlu0 %v138, 30
  %v544 = vpop.permute.xlu0 %543
  %545 = vrot.lane.b32.xlu0 %v140, 30
  %v546 = vpop.permute.xlu0 %545
  %547 = vrot.lane.b32.xlu0 %v152, 30
  %v548 = vpop.permute.xlu0 %547
  %549 = vrot.lane.b32.xlu0 %v154, 30
  %v550 = vpop.permute.xlu0 %549
  %551 = vrot.lane.b32.xlu0 %v157, 30
  %v552 = vpop.permute.xlu0 %551
  %553 = vrot.lane.b32.xlu0 %v159, 30
  %v554 = vpop.permute.xlu0 %553
  %vm555 = vcmp.lt.s32.totalorder %v194, 30
  %v556 = vsel %vm555, %v540, %v548
  %v557 = vsel %vm555, %v542, %v550
  %v558 = vsel %vm555, %v544, %v552
  %v559 = vsel %vm555, %v546, %v554
  %v560 = vsel %vm555, %v532, %v540
  %v561 = vsel %vm555, %v534, %v542
  %v562 = vsel %vm555, %v536, %v544
  %v563 = vsel %vm555, %v538, %v546
  %v564 = vsel %vm555, %v524, %v532
  %v565 = vsel %vm555, %v526, %v534
  %v566 = vsel %vm555, %v528, %v536
  %v567 = vsel %vm555, %v530, %v538
  %v568 = vsel %vm555, %v548, %v524
  %v569 = vsel %vm555, %v550, %v526
  %v570 = vsel %vm555, %v552, %v528
  %v571 = vsel %vm555, %v554, %v530
  %s572 = scalar_lea.vmem %s3, 8
  %v573 = vld [vmem:[%s572] sm:$0xf]
  %v575 = vperm.slane %v573, 0
  %v576 = vperm.slane %v573, 1
  %v577 = vperm.slane %v573, 2
  %v578 = vperm.slane %v573, 3
  %v583 = vmul.f32 %v568, %v575
  %v584 = vmul.f32 %v564, %v576
  %v585 = vmul.f32 %v560, %v577
  %v586 = vmul.f32 %v556, %v578
  %v587 = vmul.f32 %v569, %v575
  %v588 = vmul.f32 %v565, %v576
  %v589 = vmul.f32 %v561, %v577
  %v590 = vmul.f32 %v557, %v578
  %v591 = vmul.f32 %v570, %v575
  %v592 = vmul.f32 %v566, %v576
  %v593 = vmul.f32 %v562, %v577
  %v594 = vmul.f32 %v558, %v578
  %v595 = vmul.f32 %v571, %v575
  %v596 = vmul.f32 %v567, %v576
  %v597 = vmul.f32 %v563, %v577
  %v598 = vmul.f32 %v559, %v578
  %v599 = vpack.c.bf16 %v587, %v583
  %v600 = vpack.c.bf16 %v588, %v584
  %v601 = vpack.c.bf16 %v589, %v585
  %v602 = vpack.c.bf16 %v590, %v586
  %v603 = vpack.c.bf16 %v595, %v591
  %v604 = vpack.c.bf16 %v596, %v592
  %v605 = vpack.c.bf16 %v597, %v593
  %v606 = vpack.c.bf16 %v598, %v594
  %s607 = scalar_lea.vmem %s5, 32
  %v608 = vld [vmem:[%s607] sm:$0xf]
  %v609 = vld [vmem:[%s607 + $0x4] sm:$0xf]
  %v610 = vld [vmem:[%s607 + $0x8] sm:$0xf]
  %v611 = vld [vmem:[%s607 + $0xc] sm:$0xf]
  %v616 = vunpack.c.l.b16 %v608
  %v617 = vunpack.c.l.b16 %v609
  %v618 = vunpack.c.l.b16 %v610
  %v619 = vunpack.c.l.b16 %v611
  %v620 = vpack.c.b16 %v617, %v616
  %v621 = vpack.c.b16 %v619, %v618
  %v623 = vsel %vm78, %v620, 0
  %v626 = vsel %vm78, %v621, 0
  %628 = vmatpush.bf16.msra.mxu0 0
  %629 = vmatpush.bf16.msra.mxu0 0
  %630 = vmatpush.bf16.msra.mxu0 0
  %631 = vmatpush.bf16.msra.mxu0 0
  %632 = vmatpush.bf16.msra.mxu0 0
  %633 = vmatpush.bf16.msra.mxu0 0
  %634 = vmatpush.bf16.msra.mxu0 %v603
  %635 = vmatpush.bf16.msra.mxu0 %v599
  %636 = vmatmul.bf16.gmra.mxu0 %v623
  %v637 = vpop.f32.mrf.mxu0
  %v638 = vadd.f32 0.0, %v637
  %v639 = vpop.f32.mrf.mxu0
  %v640 = vadd.f32 0.0, %v639
  %641 = vmatmul.bf16.gmra.mxu0 %v626
  %v642 = vpop.f32.mrf.mxu0
  %v643 = vadd.f32 0.0, %v642
  %v644 = vpop.f32.mrf.mxu0
  %v645 = vadd.f32 0.0, %v644
  %646 = vdwg.mxu0
  %647 = vmatpush.bf16.msra.mxu0 0
  %648 = vmatpush.bf16.msra.mxu0 0
  %649 = vmatpush.bf16.msra.mxu0 0
  %650 = vmatpush.bf16.msra.mxu0 0
  %651 = vmatpush.bf16.msra.mxu0 0
  %652 = vmatpush.bf16.msra.mxu0 0
  %653 = vmatpush.bf16.msra.mxu0 %v604
  %654 = vmatpush.bf16.msra.mxu0 %v600
  %655 = vmatmul.bf16.gmra.mxu0 %v623
  %v656 = vpop.f32.mrf.mxu0
  %v657 = vadd.f32 0.0, %v656
  %v658 = vpop.f32.mrf.mxu0
  %v659 = vadd.f32 0.0, %v658
  %660 = vmatmul.bf16.gmra.mxu0 %v626
  %v661 = vpop.f32.mrf.mxu0
  %v662 = vadd.f32 0.0, %v661
  %v663 = vpop.f32.mrf.mxu0
  %v664 = vadd.f32 0.0, %v663
  %665 = vdwg.mxu0
  %666 = vmatpush.bf16.msra.mxu0 0
  %667 = vmatpush.bf16.msra.mxu0 0
  %668 = vmatpush.bf16.msra.mxu0 0
  %669 = vmatpush.bf16.msra.mxu0 0
  %670 = vmatpush.bf16.msra.mxu0 0
  %671 = vmatpush.bf16.msra.mxu0 0
  %672 = vmatpush.bf16.msra.mxu0 %v605
  %673 = vmatpush.bf16.msra.mxu0 %v601
  %674 = vmatmul.bf16.gmra.mxu0 %v623
  %v675 = vpop.f32.mrf.mxu0
  %v676 = vadd.f32 0.0, %v675
  %v677 = vpop.f32.mrf.mxu0
  %v678 = vadd.f32 0.0, %v677
  %679 = vmatmul.bf16.gmra.mxu0 %v626
  %v680 = vpop.f32.mrf.mxu0
  %v681 = vadd.f32 0.0, %v680
  %v682 = vpop.f32.mrf.mxu0
  %v683 = vadd.f32 0.0, %v682
  %684 = vdwg.mxu0
  %685 = vmatpush.bf16.msra.mxu0 0
  %686 = vmatpush.bf16.msra.mxu0 0
  %687 = vmatpush.bf16.msra.mxu0 0
  %688 = vmatpush.bf16.msra.mxu0 0
  %689 = vmatpush.bf16.msra.mxu0 0
  %690 = vmatpush.bf16.msra.mxu0 0
  %691 = vmatpush.bf16.msra.mxu0 %v606
  %692 = vmatpush.bf16.msra.mxu0 %v602
  %693 = vmatmul.bf16.gmra.mxu0 %v623
  %v694 = vpop.f32.mrf.mxu0
  %v695 = vadd.f32 0.0, %v694
  %v696 = vpop.f32.mrf.mxu0
  %v697 = vadd.f32 0.0, %v696
  %698 = vmatmul.bf16.gmra.mxu0 %v626
  %v699 = vpop.f32.mrf.mxu0
  %v700 = vadd.f32 0.0, %v699
  %v701 = vpop.f32.mrf.mxu0
  %v702 = vadd.f32 0.0, %v701
  %703 = vdwg.mxu0
  %v704 = vadd.f32 %v457, %v638
  %v705 = vadd.f32 %v476, %v657
  %v706 = vadd.f32 %v495, %v676
  %v707 = vadd.f32 %v514, %v695
  %v708 = vadd.f32 %v459, %v640
  %v709 = vadd.f32 %v478, %v659
  %v710 = vadd.f32 %v497, %v678
  %v711 = vadd.f32 %v516, %v697
  %v712 = vadd.f32 %v462, %v643
  %v713 = vadd.f32 %v481, %v662
  %v714 = vadd.f32 %v500, %v681
  %v715 = vadd.f32 %v519, %v700
  %v716 = vadd.f32 %v464, %v645
  %v717 = vadd.f32 %v483, %v664
  %v718 = vadd.f32 %v502, %v683
  %v719 = vadd.f32 %v521, %v702
  %720 = vrot.lane.b32.xlu0 %v95, 2
  %v721 = vpop.permute.xlu0 %720
  %722 = vrot.lane.b32.xlu0 %v97, 2
  %v723 = vpop.permute.xlu0 %722
  %724 = vrot.lane.b32.xlu0 %v100, 2
  %v725 = vpop.permute.xlu0 %724
  %726 = vrot.lane.b32.xlu0 %v102, 2
  %v727 = vpop.permute.xlu0 %726
  %728 = vrot.lane.b32.xlu0 %v114, 2
  %v729 = vpop.permute.xlu0 %728
  %730 = vrot.lane.b32.xlu0 %v116, 2
  %v731 = vpop.permute.xlu0 %730
  %732 = vrot.lane.b32.xlu0 %v119, 2
  %v733 = vpop.permute.xlu0 %732
  %734 = vrot.lane.b32.xlu0 %v121, 2
  %v735 = vpop.permute.xlu0 %734
  %736 = vrot.lane.b32.xlu0 %v133, 2
  %v737 = vpop.permute.xlu0 %736
  %738 = vrot.lane.b32.xlu0 %v135, 2
  %v739 = vpop.permute.xlu0 %738
  %740 = vrot.lane.b32.xlu0 %v138, 2
  %v741 = vpop.permute.xlu0 %740
  %742 = vrot.lane.b32.xlu0 %v140, 2
  %v743 = vpop.permute.xlu0 %742
  %744 = vrot.lane.b32.xlu0 %v152, 2
  %v745 = vpop.permute.xlu0 %744
  %746 = vrot.lane.b32.xlu0 %v154, 2
  %v747 = vpop.permute.xlu0 %746
  %748 = vrot.lane.b32.xlu0 %v157, 2
  %v749 = vpop.permute.xlu0 %748
  %750 = vrot.lane.b32.xlu0 %v159, 2
  %v751 = vpop.permute.xlu0 %750
  %vm752 = vcmp.lt.s32.totalorder %v194, 2
  %v753 = vsel %vm752, %v737, %v745
  %v754 = vsel %vm752, %v739, %v747
  %v755 = vsel %vm752, %v741, %v749
  %v756 = vsel %vm752, %v743, %v751
  %v757 = vsel %vm752, %v729, %v737
  %v758 = vsel %vm752, %v731, %v739
  %v759 = vsel %vm752, %v733, %v741
  %v760 = vsel %vm752, %v735, %v743
  %v761 = vsel %vm752, %v721, %v729
  %v762 = vsel %vm752, %v723, %v731
  %v763 = vsel %vm752, %v725, %v733
  %v764 = vsel %vm752, %v727, %v735
  %v765 = vsel %vm752, %v745, %v721
  %v766 = vsel %vm752, %v747, %v723
  %v767 = vsel %vm752, %v749, %v725
  %v768 = vsel %vm752, %v751, %v727
  %s769 = scalar_lea.vmem %s3, 12
  %v770 = vld [vmem:[%s769] sm:$0xf]
  %v772 = vperm.slane %v770, 0
  %v773 = vperm.slane %v770, 1
  %v774 = vperm.slane %v770, 2
  %v775 = vperm.slane %v770, 3
  %v780 = vmul.f32 %v765, %v772
  %v781 = vmul.f32 %v761, %v773
  %v782 = vmul.f32 %v757, %v774
  %v783 = vmul.f32 %v753, %v775
  %v784 = vmul.f32 %v766, %v772
  %v785 = vmul.f32 %v762, %v773
  %v786 = vmul.f32 %v758, %v774
  %v787 = vmul.f32 %v754, %v775
  %v788 = vmul.f32 %v767, %v772
  %v789 = vmul.f32 %v763, %v773
  %v790 = vmul.f32 %v759, %v774
  %v791 = vmul.f32 %v755, %v775
  %v792 = vmul.f32 %v768, %v772
  %v793 = vmul.f32 %v764, %v773
  %v794 = vmul.f32 %v760, %v774
  %v795 = vmul.f32 %v756, %v775
  %v796 = vpack.c.bf16 %v784, %v780
  %v797 = vpack.c.bf16 %v785, %v781
  %v798 = vpack.c.bf16 %v786, %v782
  %v799 = vpack.c.bf16 %v787, %v783
  %v800 = vpack.c.bf16 %v792, %v788
  %v801 = vpack.c.bf16 %v793, %v789
  %v802 = vpack.c.bf16 %v794, %v790
  %v803 = vpack.c.bf16 %v795, %v791
  %s804 = scalar_lea.vmem %s5, 48
  %v805 = vld [vmem:[%s804] sm:$0xf]
  %v806 = vld [vmem:[%s804 + $0x4] sm:$0xf]
  %v807 = vld [vmem:[%s804 + $0x8] sm:$0xf]
  %v808 = vld [vmem:[%s804 + $0xc] sm:$0xf]
  %v813 = vunpack.c.l.b16 %v805
  %v814 = vunpack.c.l.b16 %v806
  %v815 = vunpack.c.l.b16 %v807
  %v816 = vunpack.c.l.b16 %v808
  %v817 = vpack.c.b16 %v814, %v813
  %v818 = vpack.c.b16 %v816, %v815
  %v820 = vsel %vm78, %v817, 0
  %v823 = vsel %vm78, %v818, 0
  %825 = vmatpush.bf16.msra.mxu0 0
  %826 = vmatpush.bf16.msra.mxu0 0
  %827 = vmatpush.bf16.msra.mxu0 0
  %828 = vmatpush.bf16.msra.mxu0 0
  %829 = vmatpush.bf16.msra.mxu0 0
  %830 = vmatpush.bf16.msra.mxu0 0
  %831 = vmatpush.bf16.msra.mxu0 %v800
  %832 = vmatpush.bf16.msra.mxu0 %v796
  %833 = vmatmul.bf16.gmra.mxu0 %v820
  %v834 = vpop.f32.mrf.mxu0
  %v835 = vadd.f32 0.0, %v834
  %v836 = vpop.f32.mrf.mxu0
  %v837 = vadd.f32 0.0, %v836
  %838 = vmatmul.bf16.gmra.mxu0 %v823
  %v839 = vpop.f32.mrf.mxu0
  %v840 = vadd.f32 0.0, %v839
  %v841 = vpop.f32.mrf.mxu0
  %v842 = vadd.f32 0.0, %v841
  %843 = vdwg.mxu0
  %844 = vmatpush.bf16.msra.mxu0 0
  %845 = vmatpush.bf16.msra.mxu0 0
  %846 = vmatpush.bf16.msra.mxu0 0
  %847 = vmatpush.bf16.msra.mxu0 0
  %848 = vmatpush.bf16.msra.mxu0 0
  %849 = vmatpush.bf16.msra.mxu0 0
  %850 = vmatpush.bf16.msra.mxu0 %v801
  %851 = vmatpush.bf16.msra.mxu0 %v797
  %852 = vmatmul.bf16.gmra.mxu0 %v820
  %v853 = vpop.f32.mrf.mxu0
  %v854 = vadd.f32 0.0, %v853
  %v855 = vpop.f32.mrf.mxu0
  %v856 = vadd.f32 0.0, %v855
  %857 = vmatmul.bf16.gmra.mxu0 %v823
  %v858 = vpop.f32.mrf.mxu0
  %v859 = vadd.f32 0.0, %v858
  %v860 = vpop.f32.mrf.mxu0
  %v861 = vadd.f32 0.0, %v860
  %862 = vdwg.mxu0
  %863 = vmatpush.bf16.msra.mxu0 0
  %864 = vmatpush.bf16.msra.mxu0 0
  %865 = vmatpush.bf16.msra.mxu0 0
  %866 = vmatpush.bf16.msra.mxu0 0
  %867 = vmatpush.bf16.msra.mxu0 0
  %868 = vmatpush.bf16.msra.mxu0 0
  %869 = vmatpush.bf16.msra.mxu0 %v802
  %870 = vmatpush.bf16.msra.mxu0 %v798
  %871 = vmatmul.bf16.gmra.mxu0 %v820
  %v872 = vpop.f32.mrf.mxu0
  %v873 = vadd.f32 0.0, %v872
  %v874 = vpop.f32.mrf.mxu0
  %v875 = vadd.f32 0.0, %v874
  %876 = vmatmul.bf16.gmra.mxu0 %v823
  %v877 = vpop.f32.mrf.mxu0
  %v878 = vadd.f32 0.0, %v877
  %v879 = vpop.f32.mrf.mxu0
  %v880 = vadd.f32 0.0, %v879
  %881 = vdwg.mxu0
  %882 = vmatpush.bf16.msra.mxu0 0
  %883 = vmatpush.bf16.msra.mxu0 0
  %884 = vmatpush.bf16.msra.mxu0 0
  %885 = vmatpush.bf16.msra.mxu0 0
  %886 = vmatpush.bf16.msra.mxu0 0
  %887 = vmatpush.bf16.msra.mxu0 0
  %888 = vmatpush.bf16.msra.mxu0 %v803
  %889 = vmatpush.bf16.msra.mxu0 %v799
  %890 = vmatmul.bf16.gmra.mxu0 %v820
  %v891 = vpop.f32.mrf.mxu0
  %v892 = vadd.f32 0.0, %v891
  %v893 = vpop.f32.mrf.mxu0
  %v894 = vadd.f32 0.0, %v893
  %895 = vmatmul.bf16.gmra.mxu0 %v823
  %v896 = vpop.f32.mrf.mxu0
  %v897 = vadd.f32 0.0, %v896
  %v898 = vpop.f32.mrf.mxu0
  %v899 = vadd.f32 0.0, %v898
  %900 = vdwg.mxu0
  %v901 = vadd.f32 %v704, %v835
  %v902 = vadd.f32 %v705, %v854
  %v903 = vadd.f32 %v706, %v873
  %v904 = vadd.f32 %v707, %v892
  %v905 = vadd.f32 %v708, %v837
  %v906 = vadd.f32 %v709, %v856
  %v907 = vadd.f32 %v710, %v875
  %v908 = vadd.f32 %v711, %v894
  %v909 = vadd.f32 %v712, %v840
  %v910 = vadd.f32 %v713, %v859
  %v911 = vadd.f32 %v714, %v878
  %v912 = vadd.f32 %v715, %v897
  %v913 = vadd.f32 %v716, %v842
  %v914 = vadd.f32 %v717, %v861
  %v915 = vadd.f32 %v718, %v880
  %v916 = vadd.f32 %v719, %v899
  %s917 = scalar_lea.vmem %s3, 16
  %v918 = vld [vmem:[%s917] sm:$0xf]
  %v920 = vperm.slane %v918, 0
  %v921 = vperm.slane %v918, 1
  %v922 = vperm.slane %v918, 2
  %v923 = vperm.slane %v918, 3
  %v928 = vmul.f32 %v95, %v920
  %v929 = vmul.f32 %v114, %v921
  %v930 = vmul.f32 %v133, %v922
  %v931 = vmul.f32 %v152, %v923
  %v932 = vmul.f32 %v97, %v920
  %v933 = vmul.f32 %v116, %v921
  %v934 = vmul.f32 %v135, %v922
  %v935 = vmul.f32 %v154, %v923
  %v936 = vmul.f32 %v100, %v920
  %v937 = vmul.f32 %v119, %v921
  %v938 = vmul.f32 %v138, %v922
  %v939 = vmul.f32 %v157, %v923
  %v940 = vmul.f32 %v102, %v920
  %v941 = vmul.f32 %v121, %v921
  %v942 = vmul.f32 %v140, %v922
  %v943 = vmul.f32 %v159, %v923
  %v944 = vpack.c.bf16 %v932, %v928
  %v945 = vpack.c.bf16 %v933, %v929
  %v946 = vpack.c.bf16 %v934, %v930
  %v947 = vpack.c.bf16 %v935, %v931
  %v948 = vpack.c.bf16 %v940, %v936
  %v949 = vpack.c.bf16 %v941, %v937
  %v950 = vpack.c.bf16 %v942, %v938
  %v951 = vpack.c.bf16 %v943, %v939
  %s952 = scalar_lea.vmem %s5, 64
  %v953 = vld [vmem:[%s952] sm:$0xf]
  %v954 = vld [vmem:[%s952 + $0x4] sm:$0xf]
  %v955 = vld [vmem:[%s952 + $0x8] sm:$0xf]
  %v956 = vld [vmem:[%s952 + $0xc] sm:$0xf]
  %v961 = vunpack.c.l.b16 %v953
  %v962 = vunpack.c.l.b16 %v954
  %v963 = vunpack.c.l.b16 %v955
  %v964 = vunpack.c.l.b16 %v956
  %v965 = vpack.c.b16 %v962, %v961
  %v966 = vpack.c.b16 %v964, %v963
  %v968 = vsel %vm78, %v965, 0
  %v971 = vsel %vm78, %v966, 0
  %973 = vmatpush.bf16.msra.mxu0 0
  %974 = vmatpush.bf16.msra.mxu0 0
  %975 = vmatpush.bf16.msra.mxu0 0
  %976 = vmatpush.bf16.msra.mxu0 0
  %977 = vmatpush.bf16.msra.mxu0 0
  %978 = vmatpush.bf16.msra.mxu0 0
  %979 = vmatpush.bf16.msra.mxu0 %v948
  %980 = vmatpush.bf16.msra.mxu0 %v944
  %981 = vmatmul.bf16.gmra.mxu0 %v968
  %v982 = vpop.f32.mrf.mxu0
  %v983 = vadd.f32 0.0, %v982
  %v984 = vpop.f32.mrf.mxu0
  %v985 = vadd.f32 0.0, %v984
  %986 = vmatmul.bf16.gmra.mxu0 %v971
  %v987 = vpop.f32.mrf.mxu0
  %v988 = vadd.f32 0.0, %v987
  %v989 = vpop.f32.mrf.mxu0
  %v990 = vadd.f32 0.0, %v989
  %991 = vdwg.mxu0
  %992 = vmatpush.bf16.msra.mxu0 0
  %993 = vmatpush.bf16.msra.mxu0 0
  %994 = vmatpush.bf16.msra.mxu0 0
  %995 = vmatpush.bf16.msra.mxu0 0
  %996 = vmatpush.bf16.msra.mxu0 0
  %997 = vmatpush.bf16.msra.mxu0 0
  %998 = vmatpush.bf16.msra.mxu0 %v949
  %999 = vmatpush.bf16.msra.mxu0 %v945
  %1000 = vmatmul.bf16.gmra.mxu0 %v968
  %v1001 = vpop.f32.mrf.mxu0
  %v1002 = vadd.f32 0.0, %v1001
  %v1003 = vpop.f32.mrf.mxu0
  %v1004 = vadd.f32 0.0, %v1003
  %1005 = vmatmul.bf16.gmra.mxu0 %v971
  %v1006 = vpop.f32.mrf.mxu0
  %v1007 = vadd.f32 0.0, %v1006
  %v1008 = vpop.f32.mrf.mxu0
  %v1009 = vadd.f32 0.0, %v1008
  %1010 = vdwg.mxu0
  %1011 = vmatpush.bf16.msra.mxu0 0
  %1012 = vmatpush.bf16.msra.mxu0 0
  %1013 = vmatpush.bf16.msra.mxu0 0
  %1014 = vmatpush.bf16.msra.mxu0 0
  %1015 = vmatpush.bf16.msra.mxu0 0
  %1016 = vmatpush.bf16.msra.mxu0 0
  %1017 = vmatpush.bf16.msra.mxu0 %v950
  %1018 = vmatpush.bf16.msra.mxu0 %v946
  %1019 = vmatmul.bf16.gmra.mxu0 %v968
  %v1020 = vpop.f32.mrf.mxu0
  %v1021 = vadd.f32 0.0, %v1020
  %v1022 = vpop.f32.mrf.mxu0
  %v1023 = vadd.f32 0.0, %v1022
  %1024 = vmatmul.bf16.gmra.mxu0 %v971
  %v1025 = vpop.f32.mrf.mxu0
  %v1026 = vadd.f32 0.0, %v1025
  %v1027 = vpop.f32.mrf.mxu0
  %v1028 = vadd.f32 0.0, %v1027
  %1029 = vdwg.mxu0
  %1030 = vmatpush.bf16.msra.mxu0 0
  %1031 = vmatpush.bf16.msra.mxu0 0
  %1032 = vmatpush.bf16.msra.mxu0 0
  %1033 = vmatpush.bf16.msra.mxu0 0
  %1034 = vmatpush.bf16.msra.mxu0 0
  %1035 = vmatpush.bf16.msra.mxu0 0
  %1036 = vmatpush.bf16.msra.mxu0 %v951
  %1037 = vmatpush.bf16.msra.mxu0 %v947
  %1038 = vmatmul.bf16.gmra.mxu0 %v968
  %v1039 = vpop.f32.mrf.mxu0
  %v1040 = vadd.f32 0.0, %v1039
  %v1041 = vpop.f32.mrf.mxu0
  %v1042 = vadd.f32 0.0, %v1041
  %1043 = vmatmul.bf16.gmra.mxu0 %v971
  %v1044 = vpop.f32.mrf.mxu0
  %v1045 = vadd.f32 0.0, %v1044
  %v1046 = vpop.f32.mrf.mxu0
  %v1047 = vadd.f32 0.0, %v1046
  %1048 = vdwg.mxu0
  %v1049 = vadd.f32 %v901, %v983
  %v1050 = vadd.f32 %v902, %v1002
  %v1051 = vadd.f32 %v903, %v1021
  %v1052 = vadd.f32 %v904, %v1040
  %v1053 = vadd.f32 %v905, %v985
  %v1054 = vadd.f32 %v906, %v1004
  %v1055 = vadd.f32 %v907, %v1023
  %v1056 = vadd.f32 %v908, %v1042
  %v1057 = vadd.f32 %v909, %v988
  %v1058 = vadd.f32 %v910, %v1007
  %v1059 = vadd.f32 %v911, %v1026
  %v1060 = vadd.f32 %v912, %v1045
  %v1061 = vadd.f32 %v913, %v990
  %v1062 = vadd.f32 %v914, %v1009
  %v1063 = vadd.f32 %v915, %v1028
  %v1064 = vadd.f32 %v916, %v1047
  %1065 = vrot.lane.b32.xlu0 %v95, 126
  %v1066 = vpop.permute.xlu0 %1065
  %1067 = vrot.lane.b32.xlu0 %v97, 126
  %v1068 = vpop.permute.xlu0 %1067
  %1069 = vrot.lane.b32.xlu0 %v100, 126
  %v1070 = vpop.permute.xlu0 %1069
  %1071 = vrot.lane.b32.xlu0 %v102, 126
  %v1072 = vpop.permute.xlu0 %1071
  %1073 = vrot.lane.b32.xlu0 %v114, 126
  %v1074 = vpop.permute.xlu0 %1073
  %1075 = vrot.lane.b32.xlu0 %v116, 126
  %v1076 = vpop.permute.xlu0 %1075
  %1077 = vrot.lane.b32.xlu0 %v119, 126
  %v1078 = vpop.permute.xlu0 %1077
  %1079 = vrot.lane.b32.xlu0 %v121, 126
  %v1080 = vpop.permute.xlu0 %1079
  %1081 = vrot.lane.b32.xlu0 %v133, 126
  %v1082 = vpop.permute.xlu0 %1081
  %1083 = vrot.lane.b32.xlu0 %v135, 126
  %v1084 = vpop.permute.xlu0 %1083
  %1085 = vrot.lane.b32.xlu0 %v138, 126
  %v1086 = vpop.permute.xlu0 %1085
  %1087 = vrot.lane.b32.xlu0 %v140, 126
  %v1088 = vpop.permute.xlu0 %1087
  %1089 = vrot.lane.b32.xlu0 %v152, 126
  %v1090 = vpop.permute.xlu0 %1089
  %1091 = vrot.lane.b32.xlu0 %v154, 126
  %v1092 = vpop.permute.xlu0 %1091
  %1093 = vrot.lane.b32.xlu0 %v157, 126
  %v1094 = vpop.permute.xlu0 %1093
  %1095 = vrot.lane.b32.xlu0 %v159, 126
  %v1096 = vpop.permute.xlu0 %1095
  %vm1097 = vcmp.lt.s32.totalorder %v194, 126
  %v1098 = vsel %vm1097, %v1082, %v1090
  %v1099 = vsel %vm1097, %v1084, %v1092
  %v1100 = vsel %vm1097, %v1086, %v1094
  %v1101 = vsel %vm1097, %v1088, %v1096
  %v1102 = vsel %vm1097, %v1074, %v1082
  %v1103 = vsel %vm1097, %v1076, %v1084
  %v1104 = vsel %vm1097, %v1078, %v1086
  %v1105 = vsel %vm1097, %v1080, %v1088
  %v1106 = vsel %vm1097, %v1066, %v1074
  %v1107 = vsel %vm1097, %v1068, %v1076
  %v1108 = vsel %vm1097, %v1070, %v1078
  %v1109 = vsel %vm1097, %v1072, %v1080
  %v1110 = vsel %vm1097, %v1090, %v1066
  %v1111 = vsel %vm1097, %v1092, %v1068
  %v1112 = vsel %vm1097, %v1094, %v1070
  %v1113 = vsel %vm1097, %v1096, %v1072
  %s1114 = scalar_lea.vmem %s3, 20
  %v1115 = vld [vmem:[%s1114] sm:$0xf]
  %v1117 = vperm.slane %v1115, 0
  %v1118 = vperm.slane %v1115, 1
  %v1119 = vperm.slane %v1115, 2
  %v1120 = vperm.slane %v1115, 3
  %v1125 = vmul.f32 %v1106, %v1117
  %v1126 = vmul.f32 %v1102, %v1118
  %v1127 = vmul.f32 %v1098, %v1119
  %v1128 = vmul.f32 %v1110, %v1120
  %v1129 = vmul.f32 %v1107, %v1117
  %v1130 = vmul.f32 %v1103, %v1118
  %v1131 = vmul.f32 %v1099, %v1119
  %v1132 = vmul.f32 %v1111, %v1120
  %v1133 = vmul.f32 %v1108, %v1117
  %v1134 = vmul.f32 %v1104, %v1118
  %v1135 = vmul.f32 %v1100, %v1119
  %v1136 = vmul.f32 %v1112, %v1120
  %v1137 = vmul.f32 %v1109, %v1117
  %v1138 = vmul.f32 %v1105, %v1118
  %v1139 = vmul.f32 %v1101, %v1119
  %v1140 = vmul.f32 %v1113, %v1120
  %v1141 = vpack.c.bf16 %v1129, %v1125
  %v1142 = vpack.c.bf16 %v1130, %v1126
  %v1143 = vpack.c.bf16 %v1131, %v1127
  %v1144 = vpack.c.bf16 %v1132, %v1128
  %v1145 = vpack.c.bf16 %v1137, %v1133
  %v1146 = vpack.c.bf16 %v1138, %v1134
  %v1147 = vpack.c.bf16 %v1139, %v1135
  %v1148 = vpack.c.bf16 %v1140, %v1136
  %s1149 = scalar_lea.vmem %s5, 80
  %v1150 = vld [vmem:[%s1149] sm:$0xf]
  %v1151 = vld [vmem:[%s1149 + $0x4] sm:$0xf]
  %v1152 = vld [vmem:[%s1149 + $0x8] sm:$0xf]
  %v1153 = vld [vmem:[%s1149 + $0xc] sm:$0xf]
  %v1158 = vunpack.c.l.b16 %v1150
  %v1159 = vunpack.c.l.b16 %v1151
  %v1160 = vunpack.c.l.b16 %v1152
  %v1161 = vunpack.c.l.b16 %v1153
  %v1162 = vpack.c.b16 %v1159, %v1158
  %v1163 = vpack.c.b16 %v1161, %v1160
  %v1165 = vsel %vm78, %v1162, 0
  %v1168 = vsel %vm78, %v1163, 0
  %1170 = vmatpush.bf16.msra.mxu0 0
  %1171 = vmatpush.bf16.msra.mxu0 0
  %1172 = vmatpush.bf16.msra.mxu0 0
  %1173 = vmatpush.bf16.msra.mxu0 0
  %1174 = vmatpush.bf16.msra.mxu0 0
  %1175 = vmatpush.bf16.msra.mxu0 0
  %1176 = vmatpush.bf16.msra.mxu0 %v1145
  %1177 = vmatpush.bf16.msra.mxu0 %v1141
  %1178 = vmatmul.bf16.gmra.mxu0 %v1165
  %v1179 = vpop.f32.mrf.mxu0
  %v1180 = vadd.f32 0.0, %v1179
  %v1181 = vpop.f32.mrf.mxu0
  %v1182 = vadd.f32 0.0, %v1181
  %1183 = vmatmul.bf16.gmra.mxu0 %v1168
  %v1184 = vpop.f32.mrf.mxu0
  %v1185 = vadd.f32 0.0, %v1184
  %v1186 = vpop.f32.mrf.mxu0
  %v1187 = vadd.f32 0.0, %v1186
  %1188 = vdwg.mxu0
  %1189 = vmatpush.bf16.msra.mxu0 0
  %1190 = vmatpush.bf16.msra.mxu0 0
  %1191 = vmatpush.bf16.msra.mxu0 0
  %1192 = vmatpush.bf16.msra.mxu0 0
  %1193 = vmatpush.bf16.msra.mxu0 0
  %1194 = vmatpush.bf16.msra.mxu0 0
  %1195 = vmatpush.bf16.msra.mxu0 %v1146
  %1196 = vmatpush.bf16.msra.mxu0 %v1142
  %1197 = vmatmul.bf16.gmra.mxu0 %v1165
  %v1198 = vpop.f32.mrf.mxu0
  %v1199 = vadd.f32 0.0, %v1198
  %v1200 = vpop.f32.mrf.mxu0
  %v1201 = vadd.f32 0.0, %v1200
  %1202 = vmatmul.bf16.gmra.mxu0 %v1168
  %v1203 = vpop.f32.mrf.mxu0
  %v1204 = vadd.f32 0.0, %v1203
  %v1205 = vpop.f32.mrf.mxu0
  %v1206 = vadd.f32 0.0, %v1205
  %1207 = vdwg.mxu0
  %1208 = vmatpush.bf16.msra.mxu0 0
  %1209 = vmatpush.bf16.msra.mxu0 0
  %1210 = vmatpush.bf16.msra.mxu0 0
  %1211 = vmatpush.bf16.msra.mxu0 0
  %1212 = vmatpush.bf16.msra.mxu0 0
  %1213 = vmatpush.bf16.msra.mxu0 0
  %1214 = vmatpush.bf16.msra.mxu0 %v1147
  %1215 = vmatpush.bf16.msra.mxu0 %v1143
  %1216 = vmatmul.bf16.gmra.mxu0 %v1165
  %v1217 = vpop.f32.mrf.mxu0
  %v1218 = vadd.f32 0.0, %v1217
  %v1219 = vpop.f32.mrf.mxu0
  %v1220 = vadd.f32 0.0, %v1219
  %1221 = vmatmul.bf16.gmra.mxu0 %v1168
  %v1222 = vpop.f32.mrf.mxu0
  %v1223 = vadd.f32 0.0, %v1222
  %v1224 = vpop.f32.mrf.mxu0
  %v1225 = vadd.f32 0.0, %v1224
  %1226 = vdwg.mxu0
  %1227 = vmatpush.bf16.msra.mxu0 0
  %1228 = vmatpush.bf16.msra.mxu0 0
  %1229 = vmatpush.bf16.msra.mxu0 0
  %1230 = vmatpush.bf16.msra.mxu0 0
  %1231 = vmatpush.bf16.msra.mxu0 0
  %1232 = vmatpush.bf16.msra.mxu0 0
  %1233 = vmatpush.bf16.msra.mxu0 %v1148
  %1234 = vmatpush.bf16.msra.mxu0 %v1144
  %1235 = vmatmul.bf16.gmra.mxu0 %v1165
  %v1236 = vpop.f32.mrf.mxu0
  %v1237 = vadd.f32 0.0, %v1236
  %v1238 = vpop.f32.mrf.mxu0
  %v1239 = vadd.f32 0.0, %v1238
  %1240 = vmatmul.bf16.gmra.mxu0 %v1168
  %v1241 = vpop.f32.mrf.mxu0
  %v1242 = vadd.f32 0.0, %v1241
  %v1243 = vpop.f32.mrf.mxu0
  %v1244 = vadd.f32 0.0, %v1243
  %1245 = vdwg.mxu0
  %v1246 = vadd.f32 %v1049, %v1180
  %v1247 = vadd.f32 %v1050, %v1199
  %v1248 = vadd.f32 %v1051, %v1218
  %v1249 = vadd.f32 %v1052, %v1237
  %v1250 = vadd.f32 %v1053, %v1182
  %v1251 = vadd.f32 %v1054, %v1201
  %v1252 = vadd.f32 %v1055, %v1220
  %v1253 = vadd.f32 %v1056, %v1239
  %v1254 = vadd.f32 %v1057, %v1185
  %v1255 = vadd.f32 %v1058, %v1204
  %v1256 = vadd.f32 %v1059, %v1223
  %v1257 = vadd.f32 %v1060, %v1242
  %v1258 = vadd.f32 %v1061, %v1187
  %v1259 = vadd.f32 %v1062, %v1206
  %v1260 = vadd.f32 %v1063, %v1225
  %v1261 = vadd.f32 %v1064, %v1244
  %1262 = vrot.lane.b32.xlu0 %v95, 98
  %v1263 = vpop.permute.xlu0 %1262
  %1264 = vrot.lane.b32.xlu0 %v97, 98
  %v1265 = vpop.permute.xlu0 %1264
  %1266 = vrot.lane.b32.xlu0 %v100, 98
  %v1267 = vpop.permute.xlu0 %1266
  %1268 = vrot.lane.b32.xlu0 %v102, 98
  %v1269 = vpop.permute.xlu0 %1268
  %1270 = vrot.lane.b32.xlu0 %v114, 98
  %v1271 = vpop.permute.xlu0 %1270
  %1272 = vrot.lane.b32.xlu0 %v116, 98
  %v1273 = vpop.permute.xlu0 %1272
  %1274 = vrot.lane.b32.xlu0 %v119, 98
  %v1275 = vpop.permute.xlu0 %1274
  %1276 = vrot.lane.b32.xlu0 %v121, 98
  %v1277 = vpop.permute.xlu0 %1276
  %1278 = vrot.lane.b32.xlu0 %v133, 98
  %v1279 = vpop.permute.xlu0 %1278
  %1280 = vrot.lane.b32.xlu0 %v135, 98
  %v1281 = vpop.permute.xlu0 %1280
  %1282 = vrot.lane.b32.xlu0 %v138, 98
  %v1283 = vpop.permute.xlu0 %1282
  %1284 = vrot.lane.b32.xlu0 %v140, 98
  %v1285 = vpop.permute.xlu0 %1284
  %1286 = vrot.lane.b32.xlu0 %v152, 98
  %v1287 = vpop.permute.xlu0 %1286
  %1288 = vrot.lane.b32.xlu0 %v154, 98
  %v1289 = vpop.permute.xlu0 %1288
  %1290 = vrot.lane.b32.xlu0 %v157, 98
  %v1291 = vpop.permute.xlu0 %1290
  %1292 = vrot.lane.b32.xlu0 %v159, 98
  %v1293 = vpop.permute.xlu0 %1292
  %vm1294 = vcmp.lt.s32.totalorder %v194, 98
  %v1295 = vsel %vm1294, %v1279, %v1287
  %v1296 = vsel %vm1294, %v1281, %v1289
  %v1297 = vsel %vm1294, %v1283, %v1291
  %v1298 = vsel %vm1294, %v1285, %v1293
  %v1299 = vsel %vm1294, %v1271, %v1279
  %v1300 = vsel %vm1294, %v1273, %v1281
  %v1301 = vsel %vm1294, %v1275, %v1283
  %v1302 = vsel %vm1294, %v1277, %v1285
  %v1303 = vsel %vm1294, %v1263, %v1271
  %v1304 = vsel %vm1294, %v1265, %v1273
  %v1305 = vsel %vm1294, %v1267, %v1275
  %v1306 = vsel %vm1294, %v1269, %v1277
  %v1307 = vsel %vm1294, %v1287, %v1263
  %v1308 = vsel %vm1294, %v1289, %v1265
  %v1309 = vsel %vm1294, %v1291, %v1267
  %v1310 = vsel %vm1294, %v1293, %v1269
  %s1311 = scalar_lea.vmem %s3, 24
  %v1312 = vld [vmem:[%s1311] sm:$0xf]
  %v1314 = vperm.slane %v1312, 0
  %v1315 = vperm.slane %v1312, 1
  %v1316 = vperm.slane %v1312, 2
  %v1317 = vperm.slane %v1312, 3
  %v1322 = vmul.f32 %v1303, %v1314
  %v1323 = vmul.f32 %v1299, %v1315
  %v1324 = vmul.f32 %v1295, %v1316
  %v1325 = vmul.f32 %v1307, %v1317
  %v1326 = vmul.f32 %v1304, %v1314
  %v1327 = vmul.f32 %v1300, %v1315
  %v1328 = vmul.f32 %v1296, %v1316
  %v1329 = vmul.f32 %v1308, %v1317
  %v1330 = vmul.f32 %v1305, %v1314
  %v1331 = vmul.f32 %v1301, %v1315
  %v1332 = vmul.f32 %v1297, %v1316
  %v1333 = vmul.f32 %v1309, %v1317
  %v1334 = vmul.f32 %v1306, %v1314
  %v1335 = vmul.f32 %v1302, %v1315
  %v1336 = vmul.f32 %v1298, %v1316
  %v1337 = vmul.f32 %v1310, %v1317
  %v1338 = vpack.c.bf16 %v1326, %v1322
  %v1339 = vpack.c.bf16 %v1327, %v1323
  %v1340 = vpack.c.bf16 %v1328, %v1324
  %v1341 = vpack.c.bf16 %v1329, %v1325
  %v1342 = vpack.c.bf16 %v1334, %v1330
  %v1343 = vpack.c.bf16 %v1335, %v1331
  %v1344 = vpack.c.bf16 %v1336, %v1332
  %v1345 = vpack.c.bf16 %v1337, %v1333
  %s1346 = scalar_lea.vmem %s5, 96
  %v1347 = vld [vmem:[%s1346] sm:$0xf]
  %v1348 = vld [vmem:[%s1346 + $0x4] sm:$0xf]
  %v1349 = vld [vmem:[%s1346 + $0x8] sm:$0xf]
  %v1350 = vld [vmem:[%s1346 + $0xc] sm:$0xf]
  %v1355 = vunpack.c.l.b16 %v1347
  %v1356 = vunpack.c.l.b16 %v1348
  %v1357 = vunpack.c.l.b16 %v1349
  %v1358 = vunpack.c.l.b16 %v1350
  %v1359 = vpack.c.b16 %v1356, %v1355
  %v1360 = vpack.c.b16 %v1358, %v1357
  %v1362 = vsel %vm78, %v1359, 0
  %v1365 = vsel %vm78, %v1360, 0
  %1367 = vmatpush.bf16.msra.mxu0 0
  %1368 = vmatpush.bf16.msra.mxu0 0
  %1369 = vmatpush.bf16.msra.mxu0 0
  %1370 = vmatpush.bf16.msra.mxu0 0
  %1371 = vmatpush.bf16.msra.mxu0 0
  %1372 = vmatpush.bf16.msra.mxu0 0
  %1373 = vmatpush.bf16.msra.mxu0 %v1342
  %1374 = vmatpush.bf16.msra.mxu0 %v1338
  %1375 = vmatmul.bf16.gmra.mxu0 %v1362
  %v1376 = vpop.f32.mrf.mxu0
  %v1377 = vadd.f32 0.0, %v1376
  %v1378 = vpop.f32.mrf.mxu0
  %v1379 = vadd.f32 0.0, %v1378
  %1380 = vmatmul.bf16.gmra.mxu0 %v1365
  %v1381 = vpop.f32.mrf.mxu0
  %v1382 = vadd.f32 0.0, %v1381
  %v1383 = vpop.f32.mrf.mxu0
  %v1384 = vadd.f32 0.0, %v1383
  %1385 = vdwg.mxu0
  %1386 = vmatpush.bf16.msra.mxu0 0
  %1387 = vmatpush.bf16.msra.mxu0 0
  %1388 = vmatpush.bf16.msra.mxu0 0
  %1389 = vmatpush.bf16.msra.mxu0 0
  %1390 = vmatpush.bf16.msra.mxu0 0
  %1391 = vmatpush.bf16.msra.mxu0 0
  %1392 = vmatpush.bf16.msra.mxu0 %v1343
  %1393 = vmatpush.bf16.msra.mxu0 %v1339
  %1394 = vmatmul.bf16.gmra.mxu0 %v1362
  %v1395 = vpop.f32.mrf.mxu0
  %v1396 = vadd.f32 0.0, %v1395
  %v1397 = vpop.f32.mrf.mxu0
  %v1398 = vadd.f32 0.0, %v1397
  %1399 = vmatmul.bf16.gmra.mxu0 %v1365
  %v1400 = vpop.f32.mrf.mxu0
  %v1401 = vadd.f32 0.0, %v1400
  %v1402 = vpop.f32.mrf.mxu0
  %v1403 = vadd.f32 0.0, %v1402
  %1404 = vdwg.mxu0
  %1405 = vmatpush.bf16.msra.mxu0 0
  %1406 = vmatpush.bf16.msra.mxu0 0
  %1407 = vmatpush.bf16.msra.mxu0 0
  %1408 = vmatpush.bf16.msra.mxu0 0
  %1409 = vmatpush.bf16.msra.mxu0 0
  %1410 = vmatpush.bf16.msra.mxu0 0
  %1411 = vmatpush.bf16.msra.mxu0 %v1344
  %1412 = vmatpush.bf16.msra.mxu0 %v1340
  %1413 = vmatmul.bf16.gmra.mxu0 %v1362
  %v1414 = vpop.f32.mrf.mxu0
  %v1415 = vadd.f32 0.0, %v1414
  %v1416 = vpop.f32.mrf.mxu0
  %v1417 = vadd.f32 0.0, %v1416
  %1418 = vmatmul.bf16.gmra.mxu0 %v1365
  %v1419 = vpop.f32.mrf.mxu0
  %v1420 = vadd.f32 0.0, %v1419
  %v1421 = vpop.f32.mrf.mxu0
  %v1422 = vadd.f32 0.0, %v1421
  %1423 = vdwg.mxu0
  %1424 = vmatpush.bf16.msra.mxu0 0
  %1425 = vmatpush.bf16.msra.mxu0 0
  %1426 = vmatpush.bf16.msra.mxu0 0
  %1427 = vmatpush.bf16.msra.mxu0 0
  %1428 = vmatpush.bf16.msra.mxu0 0
  %1429 = vmatpush.bf16.msra.mxu0 0
  %1430 = vmatpush.bf16.msra.mxu0 %v1345
  %1431 = vmatpush.bf16.msra.mxu0 %v1341
  %1432 = vmatmul.bf16.gmra.mxu0 %v1362
  %v1433 = vpop.f32.mrf.mxu0
  %v1434 = vadd.f32 0.0, %v1433
  %v1435 = vpop.f32.mrf.mxu0
  %v1436 = vadd.f32 0.0, %v1435
  %1437 = vmatmul.bf16.gmra.mxu0 %v1365
  %v1438 = vpop.f32.mrf.mxu0
  %v1439 = vadd.f32 0.0, %v1438
  %v1440 = vpop.f32.mrf.mxu0
  %v1441 = vadd.f32 0.0, %v1440
  %1442 = vdwg.mxu0
  %v1443 = vadd.f32 %v1246, %v1377
  %v1444 = vadd.f32 %v1247, %v1396
  %v1445 = vadd.f32 %v1248, %v1415
  %v1446 = vadd.f32 %v1249, %v1434
  %v1447 = vadd.f32 %v1250, %v1379
  %v1448 = vadd.f32 %v1251, %v1398
  %v1449 = vadd.f32 %v1252, %v1417
  %v1450 = vadd.f32 %v1253, %v1436
  %v1451 = vadd.f32 %v1254, %v1382
  %v1452 = vadd.f32 %v1255, %v1401
  %v1453 = vadd.f32 %v1256, %v1420
  %v1454 = vadd.f32 %v1257, %v1439
  %v1455 = vadd.f32 %v1258, %v1384
  %v1456 = vadd.f32 %v1259, %v1403
  %v1457 = vadd.f32 %v1260, %v1422
  %v1458 = vadd.f32 %v1261, %v1441
  %1459 = vrot.lane.b32.xlu0 %v95, 96
  %v1460 = vpop.permute.xlu0 %1459
  %1461 = vrot.lane.b32.xlu0 %v97, 96
  %v1462 = vpop.permute.xlu0 %1461
  %1463 = vrot.lane.b32.xlu0 %v100, 96
  %v1464 = vpop.permute.xlu0 %1463
  %1465 = vrot.lane.b32.xlu0 %v102, 96
  %v1466 = vpop.permute.xlu0 %1465
  %1467 = vrot.lane.b32.xlu0 %v114, 96
  %v1468 = vpop.permute.xlu0 %1467
  %1469 = vrot.lane.b32.xlu0 %v116, 96
  %v1470 = vpop.permute.xlu0 %1469
  %1471 = vrot.lane.b32.xlu0 %v119, 96
  %v1472 = vpop.permute.xlu0 %1471
  %1473 = vrot.lane.b32.xlu0 %v121, 96
  %v1474 = vpop.permute.xlu0 %1473
  %1475 = vrot.lane.b32.xlu0 %v133, 96
  %v1476 = vpop.permute.xlu0 %1475
  %1477 = vrot.lane.b32.xlu0 %v135, 96
  %v1478 = vpop.permute.xlu0 %1477
  %1479 = vrot.lane.b32.xlu0 %v138, 96
  %v1480 = vpop.permute.xlu0 %1479
  %1481 = vrot.lane.b32.xlu0 %v140, 96
  %v1482 = vpop.permute.xlu0 %1481
  %1483 = vrot.lane.b32.xlu0 %v152, 96
  %v1484 = vpop.permute.xlu0 %1483
  %1485 = vrot.lane.b32.xlu0 %v154, 96
  %v1486 = vpop.permute.xlu0 %1485
  %1487 = vrot.lane.b32.xlu0 %v157, 96
  %v1488 = vpop.permute.xlu0 %1487
  %1489 = vrot.lane.b32.xlu0 %v159, 96
  %v1490 = vpop.permute.xlu0 %1489
  %vm1491 = vcmp.lt.s32.totalorder %v194, 96
  %v1492 = vsel %vm1491, %v1476, %v1484
  %v1493 = vsel %vm1491, %v1478, %v1486
  %v1494 = vsel %vm1491, %v1480, %v1488
  %v1495 = vsel %vm1491, %v1482, %v1490
  %v1496 = vsel %vm1491, %v1468, %v1476
  %v1497 = vsel %vm1491, %v1470, %v1478
  %v1498 = vsel %vm1491, %v1472, %v1480
  %v1499 = vsel %vm1491, %v1474, %v1482
  %v1500 = vsel %vm1491, %v1460, %v1468
  %v1501 = vsel %vm1491, %v1462, %v1470
  %v1502 = vsel %vm1491, %v1464, %v1472
  %v1503 = vsel %vm1491, %v1466, %v1474
  %v1504 = vsel %vm1491, %v1484, %v1460
  %v1505 = vsel %vm1491, %v1486, %v1462
  %v1506 = vsel %vm1491, %v1488, %v1464
  %v1507 = vsel %vm1491, %v1490, %v1466
  %s1508 = scalar_lea.vmem %s3, 28
  %v1509 = vld [vmem:[%s1508] sm:$0xf]
  %v1511 = vperm.slane %v1509, 0
  %v1512 = vperm.slane %v1509, 1
  %v1513 = vperm.slane %v1509, 2
  %v1514 = vperm.slane %v1509, 3
  %v1519 = vmul.f32 %v1500, %v1511
  %v1520 = vmul.f32 %v1496, %v1512
  %v1521 = vmul.f32 %v1492, %v1513
  %v1522 = vmul.f32 %v1504, %v1514
  %v1523 = vmul.f32 %v1501, %v1511
  %v1524 = vmul.f32 %v1497, %v1512
  %v1525 = vmul.f32 %v1493, %v1513
  %v1526 = vmul.f32 %v1505, %v1514
  %v1527 = vmul.f32 %v1502, %v1511
  %v1528 = vmul.f32 %v1498, %v1512
  %v1529 = vmul.f32 %v1494, %v1513
  %v1530 = vmul.f32 %v1506, %v1514
  %v1531 = vmul.f32 %v1503, %v1511
  %v1532 = vmul.f32 %v1499, %v1512
  %v1533 = vmul.f32 %v1495, %v1513
  %v1534 = vmul.f32 %v1507, %v1514
  %v1535 = vpack.c.bf16 %v1523, %v1519
  %v1536 = vpack.c.bf16 %v1524, %v1520
  %v1537 = vpack.c.bf16 %v1525, %v1521
  %v1538 = vpack.c.bf16 %v1526, %v1522
  %v1539 = vpack.c.bf16 %v1531, %v1527
  %v1540 = vpack.c.bf16 %v1532, %v1528
  %v1541 = vpack.c.bf16 %v1533, %v1529
  %v1542 = vpack.c.bf16 %v1534, %v1530
  %s1543 = scalar_lea.vmem %s5, 112
  %v1544 = vld [vmem:[%s1543] sm:$0xf]
  %v1545 = vld [vmem:[%s1543 + $0x4] sm:$0xf]
  %v1546 = vld [vmem:[%s1543 + $0x8] sm:$0xf]
  %v1547 = vld [vmem:[%s1543 + $0xc] sm:$0xf]
  %v1552 = vunpack.c.l.b16 %v1544
  %v1553 = vunpack.c.l.b16 %v1545
  %v1554 = vunpack.c.l.b16 %v1546
  %v1555 = vunpack.c.l.b16 %v1547
  %v1556 = vpack.c.b16 %v1553, %v1552
  %v1557 = vpack.c.b16 %v1555, %v1554
  %v1559 = vsel %vm78, %v1556, 0
  %v1562 = vsel %vm78, %v1557, 0
  %1564 = vmatpush.bf16.msra.mxu0 0
  %1565 = vmatpush.bf16.msra.mxu0 0
  %1566 = vmatpush.bf16.msra.mxu0 0
  %1567 = vmatpush.bf16.msra.mxu0 0
  %1568 = vmatpush.bf16.msra.mxu0 0
  %1569 = vmatpush.bf16.msra.mxu0 0
  %1570 = vmatpush.bf16.msra.mxu0 %v1539
  %1571 = vmatpush.bf16.msra.mxu0 %v1535
  %1572 = vmatmul.bf16.gmra.mxu0 %v1559
  %v1573 = vpop.f32.mrf.mxu0
  %v1574 = vadd.f32 0.0, %v1573
  %v1575 = vpop.f32.mrf.mxu0
  %v1576 = vadd.f32 0.0, %v1575
  %1577 = vmatmul.bf16.gmra.mxu0 %v1562
  %v1578 = vpop.f32.mrf.mxu0
  %v1579 = vadd.f32 0.0, %v1578
  %v1580 = vpop.f32.mrf.mxu0
  %v1581 = vadd.f32 0.0, %v1580
  %1582 = vdwg.mxu0
  %1583 = vmatpush.bf16.msra.mxu0 0
  %1584 = vmatpush.bf16.msra.mxu0 0
  %1585 = vmatpush.bf16.msra.mxu0 0
  %1586 = vmatpush.bf16.msra.mxu0 0
  %1587 = vmatpush.bf16.msra.mxu0 0
  %1588 = vmatpush.bf16.msra.mxu0 0
  %1589 = vmatpush.bf16.msra.mxu0 %v1540
  %1590 = vmatpush.bf16.msra.mxu0 %v1536
  %1591 = vmatmul.bf16.gmra.mxu0 %v1559
  %v1592 = vpop.f32.mrf.mxu0
  %v1593 = vadd.f32 0.0, %v1592
  %v1594 = vpop.f32.mrf.mxu0
  %v1595 = vadd.f32 0.0, %v1594
  %1596 = vmatmul.bf16.gmra.mxu0 %v1562
  %v1597 = vpop.f32.mrf.mxu0
  %v1598 = vadd.f32 0.0, %v1597
  %v1599 = vpop.f32.mrf.mxu0
  %v1600 = vadd.f32 0.0, %v1599
  %1601 = vdwg.mxu0
  %1602 = vmatpush.bf16.msra.mxu0 0
  %1603 = vmatpush.bf16.msra.mxu0 0
  %1604 = vmatpush.bf16.msra.mxu0 0
  %1605 = vmatpush.bf16.msra.mxu0 0
  %1606 = vmatpush.bf16.msra.mxu0 0
  %1607 = vmatpush.bf16.msra.mxu0 0
  %1608 = vmatpush.bf16.msra.mxu0 %v1541
  %1609 = vmatpush.bf16.msra.mxu0 %v1537
  %1610 = vmatmul.bf16.gmra.mxu0 %v1559
  %v1611 = vpop.f32.mrf.mxu0
  %v1612 = vadd.f32 0.0, %v1611
  %v1613 = vpop.f32.mrf.mxu0
  %v1614 = vadd.f32 0.0, %v1613
  %1615 = vmatmul.bf16.gmra.mxu0 %v1562
  %v1616 = vpop.f32.mrf.mxu0
  %v1617 = vadd.f32 0.0, %v1616
  %v1618 = vpop.f32.mrf.mxu0
  %v1619 = vadd.f32 0.0, %v1618
  %1620 = vdwg.mxu0
  %1621 = vmatpush.bf16.msra.mxu0 0
  %1622 = vmatpush.bf16.msra.mxu0 0
  %1623 = vmatpush.bf16.msra.mxu0 0
  %1624 = vmatpush.bf16.msra.mxu0 0
  %1625 = vmatpush.bf16.msra.mxu0 0
  %1626 = vmatpush.bf16.msra.mxu0 0
  %1627 = vmatpush.bf16.msra.mxu0 %v1542
  %1628 = vmatpush.bf16.msra.mxu0 %v1538
  %1629 = vmatmul.bf16.gmra.mxu0 %v1559
  %v1630 = vpop.f32.mrf.mxu0
  %v1631 = vadd.f32 0.0, %v1630
  %v1632 = vpop.f32.mrf.mxu0
  %v1633 = vadd.f32 0.0, %v1632
  %1634 = vmatmul.bf16.gmra.mxu0 %v1562
  %v1635 = vpop.f32.mrf.mxu0
  %v1636 = vadd.f32 0.0, %v1635
  %v1637 = vpop.f32.mrf.mxu0
  %v1638 = vadd.f32 0.0, %v1637
  %1639 = vdwg.mxu0
  %v1640 = vadd.f32 %v1443, %v1574
  %v1641 = vadd.f32 %v1444, %v1593
  %v1642 = vadd.f32 %v1445, %v1612
  %v1643 = vadd.f32 %v1446, %v1631
  %v1644 = vadd.f32 %v1447, %v1576
  %v1645 = vadd.f32 %v1448, %v1595
  %v1646 = vadd.f32 %v1449, %v1614
  %v1647 = vadd.f32 %v1450, %v1633
  %v1648 = vadd.f32 %v1451, %v1579
  %v1649 = vadd.f32 %v1452, %v1598
  %v1650 = vadd.f32 %v1453, %v1617
  %v1651 = vadd.f32 %v1454, %v1636
  %v1652 = vadd.f32 %v1455, %v1581
  %v1653 = vadd.f32 %v1456, %v1600
  %v1654 = vadd.f32 %v1457, %v1619
  %v1655 = vadd.f32 %v1458, %v1638
  %1656 = vrot.lane.b32.xlu0 %v95, 94
  %v1657 = vpop.permute.xlu0 %1656
  %1658 = vrot.lane.b32.xlu0 %v97, 94
  %v1659 = vpop.permute.xlu0 %1658
  %1660 = vrot.lane.b32.xlu0 %v100, 94
  %v1661 = vpop.permute.xlu0 %1660
  %1662 = vrot.lane.b32.xlu0 %v102, 94
  %v1663 = vpop.permute.xlu0 %1662
  %1664 = vrot.lane.b32.xlu0 %v114, 94
  %v1665 = vpop.permute.xlu0 %1664
  %1666 = vrot.lane.b32.xlu0 %v116, 94
  %v1667 = vpop.permute.xlu0 %1666
  %1668 = vrot.lane.b32.xlu0 %v119, 94
  %v1669 = vpop.permute.xlu0 %1668
  %1670 = vrot.lane.b32.xlu0 %v121, 94
  %v1671 = vpop.permute.xlu0 %1670
  %1672 = vrot.lane.b32.xlu0 %v133, 94
  %v1673 = vpop.permute.xlu0 %1672
  %1674 = vrot.lane.b32.xlu0 %v135, 94
  %v1675 = vpop.permute.xlu0 %1674
  %1676 = vrot.lane.b32.xlu0 %v138, 94
  %v1677 = vpop.permute.xlu0 %1676
  %1678 = vrot.lane.b32.xlu0 %v140, 94
  %v1679 = vpop.permute.xlu0 %1678
  %1680 = vrot.lane.b32.xlu0 %v152, 94
  %v1681 = vpop.permute.xlu0 %1680
  %1682 = vrot.lane.b32.xlu0 %v154, 94
  %v1683 = vpop.permute.xlu0 %1682
  %1684 = vrot.lane.b32.xlu0 %v157, 94
  %v1685 = vpop.permute.xlu0 %1684
  %1686 = vrot.lane.b32.xlu0 %v159, 94
  %v1687 = vpop.permute.xlu0 %1686
  %vm1688 = vcmp.lt.s32.totalorder %v194, 94
  %v1689 = vsel %vm1688, %v1673, %v1681
  %v1690 = vsel %vm1688, %v1675, %v1683
  %v1691 = vsel %vm1688, %v1677, %v1685
  %v1692 = vsel %vm1688, %v1679, %v1687
  %v1693 = vsel %vm1688, %v1665, %v1673
  %v1694 = vsel %vm1688, %v1667, %v1675
  %v1695 = vsel %vm1688, %v1669, %v1677
  %v1696 = vsel %vm1688, %v1671, %v1679
  %v1697 = vsel %vm1688, %v1657, %v1665
  %v1698 = vsel %vm1688, %v1659, %v1667
  %v1699 = vsel %vm1688, %v1661, %v1669
  %v1700 = vsel %vm1688, %v1663, %v1671
  %v1701 = vsel %vm1688, %v1681, %v1657
  %v1702 = vsel %vm1688, %v1683, %v1659
  %v1703 = vsel %vm1688, %v1685, %v1661
  %v1704 = vsel %vm1688, %v1687, %v1663
  %s1705 = scalar_lea.vmem %s3, 32
  %v1706 = vld [vmem:[%s1705] sm:$0xf]
  %v1708 = vperm.slane %v1706, 0
  %v1709 = vperm.slane %v1706, 1
  %v1710 = vperm.slane %v1706, 2
  %v1711 = vperm.slane %v1706, 3
  %v1716 = vmul.f32 %v1697, %v1708
  %v1717 = vmul.f32 %v1693, %v1709
  %v1718 = vmul.f32 %v1689, %v1710
  %v1719 = vmul.f32 %v1701, %v1711
  %v1720 = vmul.f32 %v1698, %v1708
  %v1721 = vmul.f32 %v1694, %v1709
  %v1722 = vmul.f32 %v1690, %v1710
  %v1723 = vmul.f32 %v1702, %v1711
  %v1724 = vmul.f32 %v1699, %v1708
  %v1725 = vmul.f32 %v1695, %v1709
  %v1726 = vmul.f32 %v1691, %v1710
  %v1727 = vmul.f32 %v1703, %v1711
  %v1728 = vmul.f32 %v1700, %v1708
  %v1729 = vmul.f32 %v1696, %v1709
  %v1730 = vmul.f32 %v1692, %v1710
  %v1731 = vmul.f32 %v1704, %v1711
  %v1732 = vpack.c.bf16 %v1720, %v1716
  %v1733 = vpack.c.bf16 %v1721, %v1717
  %v1734 = vpack.c.bf16 %v1722, %v1718
  %v1735 = vpack.c.bf16 %v1723, %v1719
  %v1736 = vpack.c.bf16 %v1728, %v1724
  %v1737 = vpack.c.bf16 %v1729, %v1725
  %v1738 = vpack.c.bf16 %v1730, %v1726
  %v1739 = vpack.c.bf16 %v1731, %v1727
  %s1740 = scalar_lea.vmem %s5, 128
  %v1741 = vld [vmem:[%s1740] sm:$0xf]
  %v1742 = vld [vmem:[%s1740 + $0x4] sm:$0xf]
  %v1743 = vld [vmem:[%s1740 + $0x8] sm:$0xf]
  %v1744 = vld [vmem:[%s1740 + $0xc] sm:$0xf]
  %v1749 = vunpack.c.l.b16 %v1741
  %v1750 = vunpack.c.l.b16 %v1742
  %v1751 = vunpack.c.l.b16 %v1743
  %v1752 = vunpack.c.l.b16 %v1744
  %v1753 = vpack.c.b16 %v1750, %v1749
  %v1754 = vpack.c.b16 %v1752, %v1751
  %v1756 = vsel %vm78, %v1753, 0
  %v1759 = vsel %vm78, %v1754, 0
  %1761 = vmatpush.bf16.msra.mxu0 0
  %1762 = vmatpush.bf16.msra.mxu0 0
  %1763 = vmatpush.bf16.msra.mxu0 0
  %1764 = vmatpush.bf16.msra.mxu0 0
  %1765 = vmatpush.bf16.msra.mxu0 0
  %1766 = vmatpush.bf16.msra.mxu0 0
  %1767 = vmatpush.bf16.msra.mxu0 %v1736
  %1768 = vmatpush.bf16.msra.mxu0 %v1732
  %1769 = vmatmul.bf16.gmra.mxu0 %v1756
  %v1770 = vpop.f32.mrf.mxu0
  %v1771 = vadd.f32 0.0, %v1770
  %v1772 = vpop.f32.mrf.mxu0
  %v1773 = vadd.f32 0.0, %v1772
  %1774 = vmatmul.bf16.gmra.mxu0 %v1759
  %v1775 = vpop.f32.mrf.mxu0
  %v1776 = vadd.f32 0.0, %v1775
  %v1777 = vpop.f32.mrf.mxu0
  %v1778 = vadd.f32 0.0, %v1777
  %1779 = vdwg.mxu0
  %1780 = vmatpush.bf16.msra.mxu0 0
  %1781 = vmatpush.bf16.msra.mxu0 0
  %1782 = vmatpush.bf16.msra.mxu0 0
  %1783 = vmatpush.bf16.msra.mxu0 0
  %1784 = vmatpush.bf16.msra.mxu0 0
  %1785 = vmatpush.bf16.msra.mxu0 0
  %1786 = vmatpush.bf16.msra.mxu0 %v1737
  %1787 = vmatpush.bf16.msra.mxu0 %v1733
  %1788 = vmatmul.bf16.gmra.mxu0 %v1756
  %v1789 = vpop.f32.mrf.mxu0
  %v1790 = vadd.f32 0.0, %v1789
  %v1791 = vpop.f32.mrf.mxu0
  %v1792 = vadd.f32 0.0, %v1791
  %1793 = vmatmul.bf16.gmra.mxu0 %v1759
  %v1794 = vpop.f32.mrf.mxu0
  %v1795 = vadd.f32 0.0, %v1794
  %v1796 = vpop.f32.mrf.mxu0
  %v1797 = vadd.f32 0.0, %v1796
  %1798 = vdwg.mxu0
  %1799 = vmatpush.bf16.msra.mxu0 0
  %1800 = vmatpush.bf16.msra.mxu0 0
  %1801 = vmatpush.bf16.msra.mxu0 0
  %1802 = vmatpush.bf16.msra.mxu0 0
  %1803 = vmatpush.bf16.msra.mxu0 0
  %1804 = vmatpush.bf16.msra.mxu0 0
  %1805 = vmatpush.bf16.msra.mxu0 %v1738
  %1806 = vmatpush.bf16.msra.mxu0 %v1734
  %1807 = vmatmul.bf16.gmra.mxu0 %v1756
  %v1808 = vpop.f32.mrf.mxu0
  %v1809 = vadd.f32 0.0, %v1808
  %v1810 = vpop.f32.mrf.mxu0
  %v1811 = vadd.f32 0.0, %v1810
  %1812 = vmatmul.bf16.gmra.mxu0 %v1759
  %v1813 = vpop.f32.mrf.mxu0
  %v1814 = vadd.f32 0.0, %v1813
  %v1815 = vpop.f32.mrf.mxu0
  %v1816 = vadd.f32 0.0, %v1815
  %1817 = vdwg.mxu0
  %1818 = vmatpush.bf16.msra.mxu0 0
  %1819 = vmatpush.bf16.msra.mxu0 0
  %1820 = vmatpush.bf16.msra.mxu0 0
  %1821 = vmatpush.bf16.msra.mxu0 0
  %1822 = vmatpush.bf16.msra.mxu0 0
  %1823 = vmatpush.bf16.msra.mxu0 0
  %1824 = vmatpush.bf16.msra.mxu0 %v1739
  %1825 = vmatpush.bf16.msra.mxu0 %v1735
  %1826 = vmatmul.bf16.gmra.mxu0 %v1756
  %v1827 = vpop.f32.mrf.mxu0
  %v1828 = vadd.f32 0.0, %v1827
  %v1829 = vpop.f32.mrf.mxu0
  %v1830 = vadd.f32 0.0, %v1829
  %1831 = vmatmul.bf16.gmra.mxu0 %v1759
  %v1832 = vpop.f32.mrf.mxu0
  %v1833 = vadd.f32 0.0, %v1832
  %v1834 = vpop.f32.mrf.mxu0
  %v1835 = vadd.f32 0.0, %v1834
  %1836 = vdwg.mxu0
  %v1837 = vadd.f32 %v1640, %v1771
  %v1838 = vadd.f32 %v1641, %v1790
  %v1839 = vadd.f32 %v1642, %v1809
  %v1840 = vadd.f32 %v1643, %v1828
  %v1841 = vadd.f32 %v1644, %v1773
  %v1842 = vadd.f32 %v1645, %v1792
  %v1843 = vadd.f32 %v1646, %v1811
  %v1844 = vadd.f32 %v1647, %v1830
  %v1845 = vadd.f32 %v1648, %v1776
  %v1846 = vadd.f32 %v1649, %v1795
  %v1847 = vadd.f32 %v1650, %v1814
  %v1848 = vadd.f32 %v1651, %v1833
  %v1849 = vadd.f32 %v1652, %v1778
  %v1850 = vadd.f32 %v1653, %v1797
  %v1851 = vadd.f32 %v1654, %v1816
  %v1852 = vadd.f32 %v1655, %v1835
  %s1853 = scalar_lea.vmem %s4, 16
  %v1854 = vld [vmem:[%s1853] sm:$0xf]
  %v1855 = vld [vmem:[%s1853 + $0x4] sm:$0xf]
  %v1856 = vld [vmem:[%s1853 + $0x8] sm:$0xf]
  %v1857 = vld [vmem:[%s1853 + $0xc] sm:$0xf]
  %v1858 = vpack.c.bf16 %v1841, %v1837
  %v1859 = vpack.c.bf16 %v1842, %v1838
  %v1860 = vpack.c.bf16 %v1843, %v1839
  %v1861 = vpack.c.bf16 %v1844, %v1840
  %v1862 = vpack.c.bf16 %v1849, %v1845
  %v1863 = vpack.c.bf16 %v1850, %v1846
  %v1864 = vpack.c.bf16 %v1851, %v1847
  %v1865 = vpack.c.bf16 %v1852, %v1848
  %v1870 = vunpack.c.l.b16 %v1854
  %v1871 = vunpack.c.l.b16 %v1855
  %v1872 = vunpack.c.l.b16 %v1856
  %v1873 = vunpack.c.l.b16 %v1857
  %v1874 = vpack.c.b16 %v1871, %v1870
  %v1875 = vpack.c.b16 %v1873, %v1872
  %v1877 = vsel %vm78, %v1874, 0
  %v1880 = vsel %vm78, %v1875, 0
  %1882 = vmatpush.bf16.msra.mxu0 0
  %1883 = vmatpush.bf16.msra.mxu0 0
  %1884 = vmatpush.bf16.msra.mxu0 0
  %1885 = vmatpush.bf16.msra.mxu0 0
  %1886 = vmatpush.bf16.msra.mxu0 0
  %1887 = vmatpush.bf16.msra.mxu0 0
  %1888 = vmatpush.bf16.msra.mxu0 %v1862
  %1889 = vmatpush.bf16.msra.mxu0 %v1858
  %1890 = vmatmul.bf16.gmra.mxu0 %v1877
  %v1891 = vpop.f32.mrf.mxu0
  %v1892 = vadd.f32 0.0, %v1891
  %v1893 = vpop.f32.mrf.mxu0
  %v1894 = vadd.f32 0.0, %v1893
  %1895 = vmatmul.bf16.gmra.mxu0 %v1880
  %v1896 = vpop.f32.mrf.mxu0
  %v1897 = vadd.f32 0.0, %v1896
  %v1898 = vpop.f32.mrf.mxu0
  %v1899 = vadd.f32 0.0, %v1898
  %1900 = vdwg.mxu0
  %1901 = vmatpush.bf16.msra.mxu0 0
  %1902 = vmatpush.bf16.msra.mxu0 0
  %1903 = vmatpush.bf16.msra.mxu0 0
  %1904 = vmatpush.bf16.msra.mxu0 0
  %1905 = vmatpush.bf16.msra.mxu0 0
  %1906 = vmatpush.bf16.msra.mxu0 0
  %1907 = vmatpush.bf16.msra.mxu0 %v1863
  %1908 = vmatpush.bf16.msra.mxu0 %v1859
  %1909 = vmatmul.bf16.gmra.mxu0 %v1877
  %v1910 = vpop.f32.mrf.mxu0
  %v1911 = vadd.f32 0.0, %v1910
  %v1912 = vpop.f32.mrf.mxu0
  %v1913 = vadd.f32 0.0, %v1912
  %1914 = vmatmul.bf16.gmra.mxu0 %v1880
  %v1915 = vpop.f32.mrf.mxu0
  %v1916 = vadd.f32 0.0, %v1915
  %v1917 = vpop.f32.mrf.mxu0
  %v1918 = vadd.f32 0.0, %v1917
  %1919 = vdwg.mxu0
  %1920 = vmatpush.bf16.msra.mxu0 0
  %1921 = vmatpush.bf16.msra.mxu0 0
  %1922 = vmatpush.bf16.msra.mxu0 0
  %1923 = vmatpush.bf16.msra.mxu0 0
  %1924 = vmatpush.bf16.msra.mxu0 0
  %1925 = vmatpush.bf16.msra.mxu0 0
  %1926 = vmatpush.bf16.msra.mxu0 %v1864
  %1927 = vmatpush.bf16.msra.mxu0 %v1860
  %1928 = vmatmul.bf16.gmra.mxu0 %v1877
  %v1929 = vpop.f32.mrf.mxu0
  %v1930 = vadd.f32 0.0, %v1929
  %v1931 = vpop.f32.mrf.mxu0
  %v1932 = vadd.f32 0.0, %v1931
  %1933 = vmatmul.bf16.gmra.mxu0 %v1880
  %v1934 = vpop.f32.mrf.mxu0
  %v1935 = vadd.f32 0.0, %v1934
  %v1936 = vpop.f32.mrf.mxu0
  %v1937 = vadd.f32 0.0, %v1936
  %1938 = vdwg.mxu0
  %1939 = vmatpush.bf16.msra.mxu0 0
  %1940 = vmatpush.bf16.msra.mxu0 0
  %1941 = vmatpush.bf16.msra.mxu0 0
  %1942 = vmatpush.bf16.msra.mxu0 0
  %1943 = vmatpush.bf16.msra.mxu0 0
  %1944 = vmatpush.bf16.msra.mxu0 0
  %1945 = vmatpush.bf16.msra.mxu0 %v1865
  %1946 = vmatpush.bf16.msra.mxu0 %v1861
  %1947 = vmatmul.bf16.gmra.mxu0 %v1877
  %v1948 = vpop.f32.mrf.mxu0
  %v1949 = vadd.f32 0.0, %v1948
  %v1950 = vpop.f32.mrf.mxu0
  %v1951 = vadd.f32 0.0, %v1950
  %1952 = vmatmul.bf16.gmra.mxu0 %v1880
  %v1953 = vpop.f32.mrf.mxu0
  %v1954 = vadd.f32 0.0, %v1953
  %v1955 = vpop.f32.mrf.mxu0
  %v1956 = vadd.f32 0.0, %v1955
  %1957 = vdwg.mxu0
  %v1958 = vperm.slane %v30, 0
  %v1959 = vperm.slane %v31, 0
  %v1960 = vperm.slane %v35, 0
  %v1961 = vperm.slane %v36, 0
  %v1962 = vmul.f32 %v1892, %v1958
  %v1963 = vmul.f32 %v1911, %v1959
  %v1964 = vmul.f32 %v1930, %v1960
  %v1965 = vmul.f32 %v1949, %v1961
  %v1966 = vmul.f32 %v1894, %v1958
  %v1967 = vmul.f32 %v1913, %v1959
  %v1968 = vmul.f32 %v1932, %v1960
  %v1969 = vmul.f32 %v1951, %v1961
  %v1970 = vmul.f32 %v1897, %v1958
  %v1971 = vmul.f32 %v1916, %v1959
  %v1972 = vmul.f32 %v1935, %v1960
  %v1973 = vmul.f32 %v1954, %v1961
  %v1974 = vmul.f32 %v1899, %v1958
  %v1975 = vmul.f32 %v1918, %v1959
  %v1976 = vmul.f32 %v1937, %v1960
  %v1977 = vmul.f32 %v1956, %v1961
  %v1978 = vadd.f32 %v1962, %v39
  %v1979 = vadd.f32 %v1963, %v40
  %v1980 = vadd.f32 %v1964, %v48
  %v1981 = vadd.f32 %v1965, %v49
  %v1982 = vadd.f32 %v1966, %v41
  %v1983 = vadd.f32 %v1967, %v42
  %v1984 = vadd.f32 %v1968, %v50
  %v1985 = vadd.f32 %v1969, %v51
  %v1986 = vadd.f32 %v1970, %v43
  %v1987 = vadd.f32 %v1971, %v44
  %v1988 = vadd.f32 %v1972, %v52
  %v1989 = vadd.f32 %v1973, %v53
  %v1990 = vadd.f32 %v1974, %v45
  %v1991 = vadd.f32 %v1975, %v46
  %v1992 = vadd.f32 %v1976, %v54
  %v1993 = vadd.f32 %v1977, %v55
  %1994 = vst [vmem:[#allocation2] sm:$0xff] %v1978
  %1995 = vst [vmem:[#allocation2 + $0x8] sm:$0xff] %v1979
  %1996 = vst [vmem:[#allocation2 + $0x10] sm:$0xff] %v1980
  %1997 = vst [vmem:[#allocation2 + $0x18] sm:$0xff] %v1981
  %1998 = vst [vmem:[#allocation2 + $0x20] sm:$0xff] %v1982
  %1999 = vst [vmem:[#allocation2 + $0x28] sm:$0xff] %v1983
  %2000 = vst [vmem:[#allocation2 + $0x30] sm:$0xff] %v1984
  %2001 = vst [vmem:[#allocation2 + $0x38] sm:$0xff] %v1985
  %2002 = vst [vmem:[#allocation2 + $0x40] sm:$0xff] %v1986
  %2003 = vst [vmem:[#allocation2 + $0x48] sm:$0xff] %v1987
  %2004 = vst [vmem:[#allocation2 + $0x50] sm:$0xff] %v1988
  %2005 = vst [vmem:[#allocation2 + $0x58] sm:$0xff] %v1989
  %2006 = vst [vmem:[#allocation2 + $0x60] sm:$0xff] %v1990
  %2007 = vst [vmem:[#allocation2 + $0x68] sm:$0xff] %v1991
  %2008 = vst [vmem:[#allocation2 + $0x70] sm:$0xff] %v1992
  %2009 = vst [vmem:[#allocation2 + $0x78] sm:$0xff] %v1993
  %v2010 = vld [vmem:[%s1] sm:$0xff]
  %v2011 = vld [vmem:[%s1 + $0x8] sm:$0xff]
  %v2012 = vld [vmem:[%s1 + $0x10] sm:$0xff]
  %v2013 = vld [vmem:[%s1 + $0x18] sm:$0xff]
  %v2014 = vld [vmem:[%s1 + $0x20] sm:$0xff]
  %v2015 = vld [vmem:[%s1 + $0x28] sm:$0xff]
  %v2016 = vld [vmem:[%s1 + $0x30] sm:$0xff]
  %v2017 = vld [vmem:[%s1 + $0x38] sm:$0xff]
  %s2018 = scalar_lea.vmem %s1, 64
  %v2019 = vld [vmem:[%s2018] sm:$0xff]
  %v2020 = vld [vmem:[%s2018 + $0x8] sm:$0xff]
  %v2021 = vld [vmem:[%s2018 + $0x10] sm:$0xff]
  %v2022 = vld [vmem:[%s2018 + $0x18] sm:$0xff]
  %v2023 = vld [vmem:[%s2018 + $0x20] sm:$0xff]
  %v2024 = vld [vmem:[%s2018 + $0x28] sm:$0xff]
  %v2025 = vld [vmem:[%s2018 + $0x30] sm:$0xff]
  %v2026 = vld [vmem:[%s2018 + $0x38] sm:$0xff]
  %v2027 = vpack.c.bf16 %v2012, %v2010
  %v2028 = vpack.c.bf16 %v2013, %v2011
  %v2029 = vpack.c.bf16 %v2021, %v2019
  %v2030 = vpack.c.bf16 %v2022, %v2020
  %v2031 = vpack.c.bf16 %v2016, %v2014
  %v2032 = vpack.c.bf16 %v2017, %v2015
  %v2033 = vpack.c.bf16 %v2025, %v2023
  %v2034 = vpack.c.bf16 %v2026, %v2024
  %s2035 = scalar_lea.vmem %s4, 32
  %v2036 = vld [vmem:[%s2035] sm:$0xf]
  %v2037 = vld [vmem:[%s2035 + $0x4] sm:$0xf]
  %v2038 = vld [vmem:[%s2035 + $0x8] sm:$0xf]
  %v2039 = vld [vmem:[%s2035 + $0xc] sm:$0xf]
  %v2044 = vunpack.c.l.b16 %v2036
  %v2045 = vunpack.c.l.b16 %v2037
  %v2046 = vunpack.c.l.b16 %v2038
  %v2047 = vunpack.c.l.b16 %v2039
  %v2048 = vpack.c.b16 %v2045, %v2044
  %v2049 = vpack.c.b16 %v2047, %v2046
  %v2051 = vsel %vm78, %v2048, 0
  %v2054 = vsel %vm78, %v2049, 0
  %2056 = vmatpush.bf16.msra.mxu0 0
  %2057 = vmatpush.bf16.msra.mxu0 0
  %2058 = vmatpush.bf16.msra.mxu0 0
  %2059 = vmatpush.bf16.msra.mxu0 0
  %2060 = vmatpush.bf16.msra.mxu0 0
  %2061 = vmatpush.bf16.msra.mxu0 0
  %2062 = vmatpush.bf16.msra.mxu0 %v2031
  %2063 = vmatpush.bf16.msra.mxu0 %v2027
  %2064 = vmatmul.bf16.gmra.mxu0 %v2051
  %v2065 = vpop.f32.mrf.mxu0
  %v2066 = vadd.f32 0.0, %v2065
  %v2067 = vpop.f32.mrf.mxu0
  %v2068 = vadd.f32 0.0, %v2067
  %2069 = vmatmul.bf16.gmra.mxu0 %v2054
  %v2070 = vpop.f32.mrf.mxu0
  %v2071 = vadd.f32 0.0, %v2070
  %v2072 = vpop.f32.mrf.mxu0
  %v2073 = vadd.f32 0.0, %v2072
  %2074 = vdwg.mxu0
  %2075 = vmatpush.bf16.msra.mxu0 0
  %2076 = vmatpush.bf16.msra.mxu0 0
  %2077 = vmatpush.bf16.msra.mxu0 0
  %2078 = vmatpush.bf16.msra.mxu0 0
  %2079 = vmatpush.bf16.msra.mxu0 0
  %2080 = vmatpush.bf16.msra.mxu0 0
  %2081 = vmatpush.bf16.msra.mxu0 %v2032
  %2082 = vmatpush.bf16.msra.mxu0 %v2028
  %2083 = vmatmul.bf16.gmra.mxu0 %v2051
  %v2084 = vpop.f32.mrf.mxu0
  %v2085 = vadd.f32 0.0, %v2084
  %v2086 = vpop.f32.mrf.mxu0
  %v2087 = vadd.f32 0.0, %v2086
  %2088 = vmatmul.bf16.gmra.mxu0 %v2054
  %v2089 = vpop.f32.mrf.mxu0
  %v2090 = vadd.f32 0.0, %v2089
  %v2091 = vpop.f32.mrf.mxu0
  %v2092 = vadd.f32 0.0, %v2091
  %2093 = vdwg.mxu0
  %2094 = vmatpush.bf16.msra.mxu0 0
  %2095 = vmatpush.bf16.msra.mxu0 0
  %2096 = vmatpush.bf16.msra.mxu0 0
  %2097 = vmatpush.bf16.msra.mxu0 0
  %2098 = vmatpush.bf16.msra.mxu0 0
  %2099 = vmatpush.bf16.msra.mxu0 0
  %2100 = vmatpush.bf16.msra.mxu0 %v2033
  %2101 = vmatpush.bf16.msra.mxu0 %v2029
  %2102 = vmatmul.bf16.gmra.mxu0 %v2051
  %v2103 = vpop.f32.mrf.mxu0
  %v2104 = vadd.f32 0.0, %v2103
  %v2105 = vpop.f32.mrf.mxu0
  %v2106 = vadd.f32 0.0, %v2105
  %2107 = vmatmul.bf16.gmra.mxu0 %v2054
  %v2108 = vpop.f32.mrf.mxu0
  %v2109 = vadd.f32 0.0, %v2108
  %v2110 = vpop.f32.mrf.mxu0
  %v2111 = vadd.f32 0.0, %v2110
  %2112 = vdwg.mxu0
  %2113 = vmatpush.bf16.msra.mxu0 0
  %2114 = vmatpush.bf16.msra.mxu0 0
  %2115 = vmatpush.bf16.msra.mxu0 0
  %2116 = vmatpush.bf16.msra.mxu0 0
  %2117 = vmatpush.bf16.msra.mxu0 0
  %2118 = vmatpush.bf16.msra.mxu0 0
  %2119 = vmatpush.bf16.msra.mxu0 %v2034
  %2120 = vmatpush.bf16.msra.mxu0 %v2030
  %2121 = vmatmul.bf16.gmra.mxu0 %v2051
  %v2122 = vpop.f32.mrf.mxu0
  %v2123 = vadd.f32 0.0, %v2122
  %v2124 = vpop.f32.mrf.mxu0
  %v2125 = vadd.f32 0.0, %v2124
  %2126 = vmatmul.bf16.gmra.mxu0 %v2054
  %v2127 = vpop.f32.mrf.mxu0
  %v2128 = vadd.f32 0.0, %v2127
  %v2129 = vpop.f32.mrf.mxu0
  %v2130 = vadd.f32 0.0, %v2129
  %2131 = vdwg.mxu0
  %2132 = vrot.lane.b32.xlu0 %v2066, 34
  %v2133 = vpop.permute.xlu0 %2132
  %2134 = vrot.lane.b32.xlu0 %v2068, 34
  %v2135 = vpop.permute.xlu0 %2134
  %2136 = vrot.lane.b32.xlu0 %v2071, 34
  %v2137 = vpop.permute.xlu0 %2136
  %2138 = vrot.lane.b32.xlu0 %v2073, 34
  %v2139 = vpop.permute.xlu0 %2138
  %2140 = vrot.lane.b32.xlu0 %v2085, 34
  %v2141 = vpop.permute.xlu0 %2140
  %2142 = vrot.lane.b32.xlu0 %v2087, 34
  %v2143 = vpop.permute.xlu0 %2142
  %2144 = vrot.lane.b32.xlu0 %v2090, 34
  %v2145 = vpop.permute.xlu0 %2144
  %2146 = vrot.lane.b32.xlu0 %v2092, 34
  %v2147 = vpop.permute.xlu0 %2146
  %2148 = vrot.lane.b32.xlu0 %v2104, 34
  %v2149 = vpop.permute.xlu0 %2148
  %2150 = vrot.lane.b32.xlu0 %v2106, 34
  %v2151 = vpop.permute.xlu0 %2150
  %2152 = vrot.lane.b32.xlu0 %v2109, 34
  %v2153 = vpop.permute.xlu0 %2152
  %2154 = vrot.lane.b32.xlu0 %v2111, 34
  %v2155 = vpop.permute.xlu0 %2154
  %2156 = vrot.lane.b32.xlu0 %v2123, 34
  %v2157 = vpop.permute.xlu0 %2156
  %2158 = vrot.lane.b32.xlu0 %v2125, 34
  %v2159 = vpop.permute.xlu0 %2158
  %2160 = vrot.lane.b32.xlu0 %v2128, 34
  %v2161 = vpop.permute.xlu0 %2160
  %2162 = vrot.lane.b32.xlu0 %v2130, 34
  %v2163 = vpop.permute.xlu0 %2162
  %v2164 = vsel %vm195, %v2149, %v2157
  %v2165 = vsel %vm195, %v2151, %v2159
  %v2166 = vsel %vm195, %v2153, %v2161
  %v2167 = vsel %vm195, %v2155, %v2163
  %v2168 = vsel %vm195, %v2141, %v2149
  %v2169 = vsel %vm195, %v2143, %v2151
  %v2170 = vsel %vm195, %v2145, %v2153
  %v2171 = vsel %vm195, %v2147, %v2155
  %v2172 = vsel %vm195, %v2133, %v2141
  %v2173 = vsel %vm195, %v2135, %v2143
  %v2174 = vsel %vm195, %v2137, %v2145
  %v2175 = vsel %vm195, %v2139, %v2147
  %v2176 = vsel %vm195, %v2157, %v2133
  %v2177 = vsel %vm195, %v2159, %v2135
  %v2178 = vsel %vm195, %v2161, %v2137
  %v2179 = vsel %vm195, %v2163, %v2139
  %v2180 = vld [vmem:[%s3] sm:$0xf]
  %v2182 = vperm.slane %v2180, 0
  %v2183 = vperm.slane %v2180, 1
  %v2184 = vperm.slane %v2180, 2
  %v2185 = vperm.slane %v2180, 3
  %v2190 = vmul.f32 %v2176, %v2182
  %v2191 = vmul.f32 %v2172, %v2183
  %v2192 = vmul.f32 %v2168, %v2184
  %v2193 = vmul.f32 %v2164, %v2185
  %v2194 = vmul.f32 %v2177, %v2182
  %v2195 = vmul.f32 %v2173, %v2183
  %v2196 = vmul.f32 %v2169, %v2184
  %v2197 = vmul.f32 %v2165, %v2185
  %v2198 = vmul.f32 %v2178, %v2182
  %v2199 = vmul.f32 %v2174, %v2183
  %v2200 = vmul.f32 %v2170, %v2184
  %v2201 = vmul.f32 %v2166, %v2185
  %v2202 = vmul.f32 %v2179, %v2182
  %v2203 = vmul.f32 %v2175, %v2183
  %v2204 = vmul.f32 %v2171, %v2184
  %v2205 = vmul.f32 %v2167, %v2185
  %v2206 = vpack.c.bf16 %v2194, %v2190
  %v2207 = vpack.c.bf16 %v2195, %v2191
  %v2208 = vpack.c.bf16 %v2196, %v2192
  %v2209 = vpack.c.bf16 %v2197, %v2193
  %v2210 = vpack.c.bf16 %v2202, %v2198
  %v2211 = vpack.c.bf16 %v2203, %v2199
  %v2212 = vpack.c.bf16 %v2204, %v2200
  %v2213 = vpack.c.bf16 %v2205, %v2201
  %s2214 = scalar_lea.vmem %s5, 144
  %v2215 = vld [vmem:[%s2214] sm:$0xf]
  %v2216 = vld [vmem:[%s2214 + $0x4] sm:$0xf]
  %v2217 = vld [vmem:[%s2214 + $0x8] sm:$0xf]
  %v2218 = vld [vmem:[%s2214 + $0xc] sm:$0xf]
  %2219 = vrot.lane.b32.xlu0 %v2066, 32
  %v2220 = vpop.permute.xlu0 %2219
  %2221 = vrot.lane.b32.xlu0 %v2068, 32
  %v2222 = vpop.permute.xlu0 %2221
  %2223 = vrot.lane.b32.xlu0 %v2071, 32
  %v2224 = vpop.permute.xlu0 %2223
  %2225 = vrot.lane.b32.xlu0 %v2073, 32
  %v2226 = vpop.permute.xlu0 %2225
  %2227 = vrot.lane.b32.xlu0 %v2085, 32
  %v2228 = vpop.permute.xlu0 %2227
  %2229 = vrot.lane.b32.xlu0 %v2087, 32
  %v2230 = vpop.permute.xlu0 %2229
  %2231 = vrot.lane.b32.xlu0 %v2090, 32
  %v2232 = vpop.permute.xlu0 %2231
  %2233 = vrot.lane.b32.xlu0 %v2092, 32
  %v2234 = vpop.permute.xlu0 %2233
  %2235 = vrot.lane.b32.xlu0 %v2104, 32
  %v2236 = vpop.permute.xlu0 %2235
  %2237 = vrot.lane.b32.xlu0 %v2106, 32
  %v2238 = vpop.permute.xlu0 %2237
  %2239 = vrot.lane.b32.xlu0 %v2109, 32
  %v2240 = vpop.permute.xlu0 %2239
  %2241 = vrot.lane.b32.xlu0 %v2111, 32
  %v2242 = vpop.permute.xlu0 %2241
  %2243 = vrot.lane.b32.xlu0 %v2123, 32
  %v2244 = vpop.permute.xlu0 %2243
  %2245 = vrot.lane.b32.xlu0 %v2125, 32
  %v2246 = vpop.permute.xlu0 %2245
  %2247 = vrot.lane.b32.xlu0 %v2128, 32
  %v2248 = vpop.permute.xlu0 %2247
  %2249 = vrot.lane.b32.xlu0 %v2130, 32
  %v2250 = vpop.permute.xlu0 %2249
  %v2251 = vsel %vm282, %v2236, %v2244
  %v2252 = vsel %vm282, %v2238, %v2246
  %v2253 = vsel %vm282, %v2240, %v2248
  %v2254 = vsel %vm282, %v2242, %v2250
  %v2255 = vsel %vm282, %v2228, %v2236
  %v2256 = vsel %vm282, %v2230, %v2238
  %v2257 = vsel %vm282, %v2232, %v2240
  %v2258 = vsel %vm282, %v2234, %v2242
  %v2259 = vsel %vm282, %v2220, %v2228
  %v2260 = vsel %vm282, %v2222, %v2230
  %v2261 = vsel %vm282, %v2224, %v2232
  %v2262 = vsel %vm282, %v2226, %v2234
  %v2263 = vsel %vm282, %v2244, %v2220
  %v2264 = vsel %vm282, %v2246, %v2222
  %v2265 = vsel %vm282, %v2248, %v2224
  %v2266 = vsel %vm282, %v2250, %v2226
  %v2267 = vld [vmem:[%s299] sm:$0xf]
  %v2269 = vperm.slane %v2267, 0
  %v2270 = vperm.slane %v2267, 1
  %v2271 = vperm.slane %v2267, 2
  %v2272 = vperm.slane %v2267, 3
  %v2277 = vmul.f32 %v2263, %v2269
  %v2278 = vmul.f32 %v2259, %v2270
  %v2279 = vmul.f32 %v2255, %v2271
  %v2280 = vmul.f32 %v2251, %v2272
  %v2281 = vmul.f32 %v2264, %v2269
  %v2282 = vmul.f32 %v2260, %v2270
  %v2283 = vmul.f32 %v2256, %v2271
  %v2284 = vmul.f32 %v2252, %v2272
  %v2285 = vmul.f32 %v2265, %v2269
  %v2286 = vmul.f32 %v2261, %v2270
  %v2287 = vmul.f32 %v2257, %v2271
  %v2288 = vmul.f32 %v2253, %v2272
  %v2289 = vmul.f32 %v2266, %v2269
  %v2290 = vmul.f32 %v2262, %v2270
  %v2291 = vmul.f32 %v2258, %v2271
  %v2292 = vmul.f32 %v2254, %v2272
  %v2293 = vpack.c.bf16 %v2281, %v2277
  %v2294 = vpack.c.bf16 %v2282, %v2278
  %v2295 = vpack.c.bf16 %v2283, %v2279
  %v2296 = vpack.c.bf16 %v2284, %v2280
  %v2297 = vpack.c.bf16 %v2289, %v2285
  %v2298 = vpack.c.bf16 %v2290, %v2286
  %v2299 = vpack.c.bf16 %v2291, %v2287
  %v2300 = vpack.c.bf16 %v2292, %v2288
  %s2301 = scalar_lea.vmem %s5, 160
  %v2302 = vld [vmem:[%s2301] sm:$0xf]
  %v2303 = vld [vmem:[%s2301 + $0x4] sm:$0xf]
  %v2304 = vld [vmem:[%s2301 + $0x8] sm:$0xf]
  %v2305 = vld [vmem:[%s2301 + $0xc] sm:$0xf]
  %v2310 = vunpack.c.l.b16 %v2302
  %v2311 = vunpack.c.l.b16 %v2303
  %v2312 = vunpack.c.l.b16 %v2304
  %v2313 = vunpack.c.l.b16 %v2305
  %v2314 = vpack.c.b16 %v2311, %v2310
  %v2315 = vpack.c.b16 %v2313, %v2312
  %v2317 = vsel %vm78, %v2314, 0
  %v2320 = vsel %vm78, %v2315, 0
  %2322 = vmatpush.bf16.msra.mxu0 0
  %2323 = vmatpush.bf16.msra.mxu0 0
  %2324 = vmatpush.bf16.msra.mxu0 0
  %2325 = vmatpush.bf16.msra.mxu0 0
  %2326 = vmatpush.bf16.msra.mxu0 0
  %2327 = vmatpush.bf16.msra.mxu0 0
  %2328 = vmatpush.bf16.msra.mxu0 %v2297
  %2329 = vmatpush.bf16.msra.mxu0 %v2293
  %2330 = vmatmul.bf16.gmra.mxu0 %v2317
  %v2331 = vpop.f32.mrf.mxu0
  %v2332 = vadd.f32 0.0, %v2331
  %v2333 = vpop.f32.mrf.mxu0
  %v2334 = vadd.f32 0.0, %v2333
  %2335 = vmatmul.bf16.gmra.mxu0 %v2320
  %v2336 = vpop.f32.mrf.mxu0
  %v2337 = vadd.f32 0.0, %v2336
  %v2338 = vpop.f32.mrf.mxu0
  %v2339 = vadd.f32 0.0, %v2338
  %2340 = vdwg.mxu0
  %2341 = vmatpush.bf16.msra.mxu0 0
  %2342 = vmatpush.bf16.msra.mxu0 0
  %2343 = vmatpush.bf16.msra.mxu0 0
  %2344 = vmatpush.bf16.msra.mxu0 0
  %2345 = vmatpush.bf16.msra.mxu0 0
  %2346 = vmatpush.bf16.msra.mxu0 0
  %2347 = vmatpush.bf16.msra.mxu0 %v2298
  %2348 = vmatpush.bf16.msra.mxu0 %v2294
  %2349 = vmatmul.bf16.gmra.mxu0 %v2317
  %v2350 = vpop.f32.mrf.mxu0
  %v2351 = vadd.f32 0.0, %v2350
  %v2352 = vpop.f32.mrf.mxu0
  %v2353 = vadd.f32 0.0, %v2352
  %2354 = vmatmul.bf16.gmra.mxu0 %v2320
  %v2355 = vpop.f32.mrf.mxu0
  %v2356 = vadd.f32 0.0, %v2355
  %v2357 = vpop.f32.mrf.mxu0
  %v2358 = vadd.f32 0.0, %v2357
  %2359 = vdwg.mxu0
  %2360 = vmatpush.bf16.msra.mxu0 0
  %2361 = vmatpush.bf16.msra.mxu0 0
  %2362 = vmatpush.bf16.msra.mxu0 0
  %2363 = vmatpush.bf16.msra.mxu0 0
  %2364 = vmatpush.bf16.msra.mxu0 0
  %2365 = vmatpush.bf16.msra.mxu0 0
  %2366 = vmatpush.bf16.msra.mxu0 %v2299
  %2367 = vmatpush.bf16.msra.mxu0 %v2295
  %2368 = vmatmul.bf16.gmra.mxu0 %v2317
  %v2369 = vpop.f32.mrf.mxu0
  %v2370 = vadd.f32 0.0, %v2369
  %v2371 = vpop.f32.mrf.mxu0
  %v2372 = vadd.f32 0.0, %v2371
  %2373 = vmatmul.bf16.gmra.mxu0 %v2320
  %v2374 = vpop.f32.mrf.mxu0
  %v2375 = vadd.f32 0.0, %v2374
  %v2376 = vpop.f32.mrf.mxu0
  %v2377 = vadd.f32 0.0, %v2376
  %2378 = vdwg.mxu0
  %2379 = vmatpush.bf16.msra.mxu0 0
  %2380 = vmatpush.bf16.msra.mxu0 0
  %2381 = vmatpush.bf16.msra.mxu0 0
  %2382 = vmatpush.bf16.msra.mxu0 0
  %2383 = vmatpush.bf16.msra.mxu0 0
  %2384 = vmatpush.bf16.msra.mxu0 0
  %2385 = vmatpush.bf16.msra.mxu0 %v2300
  %2386 = vmatpush.bf16.msra.mxu0 %v2296
  %2387 = vmatmul.bf16.gmra.mxu0 %v2317
  %v2388 = vpop.f32.mrf.mxu0
  %v2389 = vadd.f32 0.0, %v2388
  %v2390 = vpop.f32.mrf.mxu0
  %v2391 = vadd.f32 0.0, %v2390
  %2392 = vmatmul.bf16.gmra.mxu0 %v2320
  %v2393 = vpop.f32.mrf.mxu0
  %v2394 = vadd.f32 0.0, %v2393
  %v2395 = vpop.f32.mrf.mxu0
  %v2396 = vadd.f32 0.0, %v2395
  %2397 = vdwg.mxu0
  %v2402 = vunpack.c.l.b16 %v2215
  %v2403 = vunpack.c.l.b16 %v2216
  %v2404 = vunpack.c.l.b16 %v2217
  %v2405 = vunpack.c.l.b16 %v2218
  %v2406 = vpack.c.b16 %v2403, %v2402
  %v2407 = vpack.c.b16 %v2405, %v2404
  %v2409 = vsel %vm78, %v2406, 0
  %v2412 = vsel %vm78, %v2407, 0
  %2414 = vmatpush.bf16.msra.mxu0 0
  %2415 = vmatpush.bf16.msra.mxu0 0
  %2416 = vmatpush.bf16.msra.mxu0 0
  %2417 = vmatpush.bf16.msra.mxu0 0
  %2418 = vmatpush.bf16.msra.mxu0 0
  %2419 = vmatpush.bf16.msra.mxu0 0
  %2420 = vmatpush.bf16.msra.mxu0 %v2210
  %2421 = vmatpush.bf16.msra.mxu0 %v2206
  %2422 = vmatmul.bf16.gmra.mxu0 %v2409
  %v2423 = vpop.f32.mrf.mxu0
  %v2424 = vadd.f32 %v2332, %v2423
  %v2425 = vpop.f32.mrf.mxu0
  %v2426 = vadd.f32 %v2334, %v2425
  %2427 = vmatmul.bf16.gmra.mxu0 %v2412
  %v2428 = vpop.f32.mrf.mxu0
  %v2429 = vadd.f32 %v2337, %v2428
  %v2430 = vpop.f32.mrf.mxu0
  %v2431 = vadd.f32 %v2339, %v2430
  %2432 = vdwg.mxu0
  %2433 = vmatpush.bf16.msra.mxu0 0
  %2434 = vmatpush.bf16.msra.mxu0 0
  %2435 = vmatpush.bf16.msra.mxu0 0
  %2436 = vmatpush.bf16.msra.mxu0 0
  %2437 = vmatpush.bf16.msra.mxu0 0
  %2438 = vmatpush.bf16.msra.mxu0 0
  %2439 = vmatpush.bf16.msra.mxu0 %v2211
  %2440 = vmatpush.bf16.msra.mxu0 %v2207
  %2441 = vmatmul.bf16.gmra.mxu0 %v2409
  %v2442 = vpop.f32.mrf.mxu0
  %v2443 = vadd.f32 %v2351, %v2442
  %v2444 = vpop.f32.mrf.mxu0
  %v2445 = vadd.f32 %v2353, %v2444
  %2446 = vmatmul.bf16.gmra.mxu0 %v2412
  %v2447 = vpop.f32.mrf.mxu0
  %v2448 = vadd.f32 %v2356, %v2447
  %v2449 = vpop.f32.mrf.mxu0
  %v2450 = vadd.f32 %v2358, %v2449
  %2451 = vdwg.mxu0
  %2452 = vmatpush.bf16.msra.mxu0 0
  %2453 = vmatpush.bf16.msra.mxu0 0
  %2454 = vmatpush.bf16.msra.mxu0 0
  %2455 = vmatpush.bf16.msra.mxu0 0
  %2456 = vmatpush.bf16.msra.mxu0 0
  %2457 = vmatpush.bf16.msra.mxu0 0
  %2458 = vmatpush.bf16.msra.mxu0 %v2212
  %2459 = vmatpush.bf16.msra.mxu0 %v2208
  %2460 = vmatmul.bf16.gmra.mxu0 %v2409
  %v2461 = vpop.f32.mrf.mxu0
  %v2462 = vadd.f32 %v2370, %v2461
  %v2463 = vpop.f32.mrf.mxu0
  %v2464 = vadd.f32 %v2372, %v2463
  %2465 = vmatmul.bf16.gmra.mxu0 %v2412
  %v2466 = vpop.f32.mrf.mxu0
  %v2467 = vadd.f32 %v2375, %v2466
  %v2468 = vpop.f32.mrf.mxu0
  %v2469 = vadd.f32 %v2377, %v2468
  %2470 = vdwg.mxu0
  %2471 = vmatpush.bf16.msra.mxu0 0
  %2472 = vmatpush.bf16.msra.mxu0 0
  %2473 = vmatpush.bf16.msra.mxu0 0
  %2474 = vmatpush.bf16.msra.mxu0 0
  %2475 = vmatpush.bf16.msra.mxu0 0
  %2476 = vmatpush.bf16.msra.mxu0 0
  %2477 = vmatpush.bf16.msra.mxu0 %v2213
  %2478 = vmatpush.bf16.msra.mxu0 %v2209
  %2479 = vmatmul.bf16.gmra.mxu0 %v2409
  %v2480 = vpop.f32.mrf.mxu0
  %v2481 = vadd.f32 %v2389, %v2480
  %v2482 = vpop.f32.mrf.mxu0
  %v2483 = vadd.f32 %v2391, %v2482
  %2484 = vmatmul.bf16.gmra.mxu0 %v2412
  %v2485 = vpop.f32.mrf.mxu0
  %v2486 = vadd.f32 %v2394, %v2485
  %v2487 = vpop.f32.mrf.mxu0
  %v2488 = vadd.f32 %v2396, %v2487
  %2489 = vdwg.mxu0
  %2490 = vrot.lane.b32.xlu0 %v2066, 30
  %v2491 = vpop.permute.xlu0 %2490
  %2492 = vrot.lane.b32.xlu0 %v2068, 30
  %v2493 = vpop.permute.xlu0 %2492
  %2494 = vrot.lane.b32.xlu0 %v2071, 30
  %v2495 = vpop.permute.xlu0 %2494
  %2496 = vrot.lane.b32.xlu0 %v2073, 30
  %v2497 = vpop.permute.xlu0 %2496
  %2498 = vrot.lane.b32.xlu0 %v2085, 30
  %v2499 = vpop.permute.xlu0 %2498
  %2500 = vrot.lane.b32.xlu0 %v2087, 30
  %v2501 = vpop.permute.xlu0 %2500
  %2502 = vrot.lane.b32.xlu0 %v2090, 30
  %v2503 = vpop.permute.xlu0 %2502
  %2504 = vrot.lane.b32.xlu0 %v2092, 30
  %v2505 = vpop.permute.xlu0 %2504
  %2506 = vrot.lane.b32.xlu0 %v2104, 30
  %v2507 = vpop.permute.xlu0 %2506
  %2508 = vrot.lane.b32.xlu0 %v2106, 30
  %v2509 = vpop.permute.xlu0 %2508
  %2510 = vrot.lane.b32.xlu0 %v2109, 30
  %v2511 = vpop.permute.xlu0 %2510
  %2512 = vrot.lane.b32.xlu0 %v2111, 30
  %v2513 = vpop.permute.xlu0 %2512
  %2514 = vrot.lane.b32.xlu0 %v2123, 30
  %v2515 = vpop.permute.xlu0 %2514
  %2516 = vrot.lane.b32.xlu0 %v2125, 30
  %v2517 = vpop.permute.xlu0 %2516
  %2518 = vrot.lane.b32.xlu0 %v2128, 30
  %v2519 = vpop.permute.xlu0 %2518
  %2520 = vrot.lane.b32.xlu0 %v2130, 30
  %v2521 = vpop.permute.xlu0 %2520
  %v2522 = vsel %vm555, %v2507, %v2515
  %v2523 = vsel %vm555, %v2509, %v2517
  %v2524 = vsel %vm555, %v2511, %v2519
  %v2525 = vsel %vm555, %v2513, %v2521
  %v2526 = vsel %vm555, %v2499, %v2507
  %v2527 = vsel %vm555, %v2501, %v2509
  %v2528 = vsel %vm555, %v2503, %v2511
  %v2529 = vsel %vm555, %v2505, %v2513
  %v2530 = vsel %vm555, %v2491, %v2499
  %v2531 = vsel %vm555, %v2493, %v2501
  %v2532 = vsel %vm555, %v2495, %v2503
  %v2533 = vsel %vm555, %v2497, %v2505
  %v2534 = vsel %vm555, %v2515, %v2491
  %v2535 = vsel %vm555, %v2517, %v2493
  %v2536 = vsel %vm555, %v2519, %v2495
  %v2537 = vsel %vm555, %v2521, %v2497
  %v2538 = vld [vmem:[%s572] sm:$0xf]
  %v2540 = vperm.slane %v2538, 0
  %v2541 = vperm.slane %v2538, 1
  %v2542 = vperm.slane %v2538, 2
  %v2543 = vperm.slane %v2538, 3
  %v2548 = vmul.f32 %v2534, %v2540
  %v2549 = vmul.f32 %v2530, %v2541
  %v2550 = vmul.f32 %v2526, %v2542
  %v2551 = vmul.f32 %v2522, %v2543
  %v2552 = vmul.f32 %v2535, %v2540
  %v2553 = vmul.f32 %v2531, %v2541
  %v2554 = vmul.f32 %v2527, %v2542
  %v2555 = vmul.f32 %v2523, %v2543
  %v2556 = vmul.f32 %v2536, %v2540
  %v2557 = vmul.f32 %v2532, %v2541
  %v2558 = vmul.f32 %v2528, %v2542
  %v2559 = vmul.f32 %v2524, %v2543
  %v2560 = vmul.f32 %v2537, %v2540
  %v2561 = vmul.f32 %v2533, %v2541
  %v2562 = vmul.f32 %v2529, %v2542
  %v2563 = vmul.f32 %v2525, %v2543
  %v2564 = vpack.c.bf16 %v2552, %v2548
  %v2565 = vpack.c.bf16 %v2553, %v2549
  %v2566 = vpack.c.bf16 %v2554, %v2550
  %v2567 = vpack.c.bf16 %v2555, %v2551
  %v2568 = vpack.c.bf16 %v2560, %v2556
  %v2569 = vpack.c.bf16 %v2561, %v2557
  %v2570 = vpack.c.bf16 %v2562, %v2558
  %v2571 = vpack.c.bf16 %v2563, %v2559
  %s2572 = scalar_lea.vmem %s5, 176
  %v2573 = vld [vmem:[%s2572] sm:$0xf]
  %v2574 = vld [vmem:[%s2572 + $0x4] sm:$0xf]
  %v2575 = vld [vmem:[%s2572 + $0x8] sm:$0xf]
  %v2576 = vld [vmem:[%s2572 + $0xc] sm:$0xf]
  %v2581 = vunpack.c.l.b16 %v2573
  %v2582 = vunpack.c.l.b16 %v2574
  %v2583 = vunpack.c.l.b16 %v2575
  %v2584 = vunpack.c.l.b16 %v2576
  %v2585 = vpack.c.b16 %v2582, %v2581
  %v2586 = vpack.c.b16 %v2584, %v2583
  %v2588 = vsel %vm78, %v2585, 0
  %v2591 = vsel %vm78, %v2586, 0
  %2593 = vmatpush.bf16.msra.mxu0 0
  %2594 = vmatpush.bf16.msra.mxu0 0
  %2595 = vmatpush.bf16.msra.mxu0 0
  %2596 = vmatpush.bf16.msra.mxu0 0
  %2597 = vmatpush.bf16.msra.mxu0 0
  %2598 = vmatpush.bf16.msra.mxu0 0
  %2599 = vmatpush.bf16.msra.mxu0 %v2568
  %2600 = vmatpush.bf16.msra.mxu0 %v2564
  %2601 = vmatmul.bf16.gmra.mxu0 %v2588
  %v2602 = vpop.f32.mrf.mxu0
  %v2603 = vadd.f32 0.0, %v2602
  %v2604 = vpop.f32.mrf.mxu0
  %v2605 = vadd.f32 0.0, %v2604
  %2606 = vmatmul.bf16.gmra.mxu0 %v2591
  %v2607 = vpop.f32.mrf.mxu0
  %v2608 = vadd.f32 0.0, %v2607
  %v2609 = vpop.f32.mrf.mxu0
  %v2610 = vadd.f32 0.0, %v2609
  %2611 = vdwg.mxu0
  %2612 = vmatpush.bf16.msra.mxu0 0
  %2613 = vmatpush.bf16.msra.mxu0 0
  %2614 = vmatpush.bf16.msra.mxu0 0
  %2615 = vmatpush.bf16.msra.mxu0 0
  %2616 = vmatpush.bf16.msra.mxu0 0
  %2617 = vmatpush.bf16.msra.mxu0 0
  %2618 = vmatpush.bf16.msra.mxu0 %v2569
  %2619 = vmatpush.bf16.msra.mxu0 %v2565
  %2620 = vmatmul.bf16.gmra.mxu0 %v2588
  %v2621 = vpop.f32.mrf.mxu0
  %v2622 = vadd.f32 0.0, %v2621
  %v2623 = vpop.f32.mrf.mxu0
  %v2624 = vadd.f32 0.0, %v2623
  %2625 = vmatmul.bf16.gmra.mxu0 %v2591
  %v2626 = vpop.f32.mrf.mxu0
  %v2627 = vadd.f32 0.0, %v2626
  %v2628 = vpop.f32.mrf.mxu0
  %v2629 = vadd.f32 0.0, %v2628
  %2630 = vdwg.mxu0
  %2631 = vmatpush.bf16.msra.mxu0 0
  %2632 = vmatpush.bf16.msra.mxu0 0
  %2633 = vmatpush.bf16.msra.mxu0 0
  %2634 = vmatpush.bf16.msra.mxu0 0
  %2635 = vmatpush.bf16.msra.mxu0 0
  %2636 = vmatpush.bf16.msra.mxu0 0
  %2637 = vmatpush.bf16.msra.mxu0 %v2570
  %2638 = vmatpush.bf16.msra.mxu0 %v2566
  %2639 = vmatmul.bf16.gmra.mxu0 %v2588
  %v2640 = vpop.f32.mrf.mxu0
  %v2641 = vadd.f32 0.0, %v2640
  %v2642 = vpop.f32.mrf.mxu0
  %v2643 = vadd.f32 0.0, %v2642
  %2644 = vmatmul.bf16.gmra.mxu0 %v2591
  %v2645 = vpop.f32.mrf.mxu0
  %v2646 = vadd.f32 0.0, %v2645
  %v2647 = vpop.f32.mrf.mxu0
  %v2648 = vadd.f32 0.0, %v2647
  %2649 = vdwg.mxu0
  %2650 = vmatpush.bf16.msra.mxu0 0
  %2651 = vmatpush.bf16.msra.mxu0 0
  %2652 = vmatpush.bf16.msra.mxu0 0
  %2653 = vmatpush.bf16.msra.mxu0 0
  %2654 = vmatpush.bf16.msra.mxu0 0
  %2655 = vmatpush.bf16.msra.mxu0 0
  %2656 = vmatpush.bf16.msra.mxu0 %v2571
  %2657 = vmatpush.bf16.msra.mxu0 %v2567
  %2658 = vmatmul.bf16.gmra.mxu0 %v2588
  %v2659 = vpop.f32.mrf.mxu0
  %v2660 = vadd.f32 0.0, %v2659
  %v2661 = vpop.f32.mrf.mxu0
  %v2662 = vadd.f32 0.0, %v2661
  %2663 = vmatmul.bf16.gmra.mxu0 %v2591
  %v2664 = vpop.f32.mrf.mxu0
  %v2665 = vadd.f32 0.0, %v2664
  %v2666 = vpop.f32.mrf.mxu0
  %v2667 = vadd.f32 0.0, %v2666
  %2668 = vdwg.mxu0
  %v2669 = vadd.f32 %v2424, %v2603
  %v2670 = vadd.f32 %v2443, %v2622
  %v2671 = vadd.f32 %v2462, %v2641
  %v2672 = vadd.f32 %v2481, %v2660
  %v2673 = vadd.f32 %v2426, %v2605
  %v2674 = vadd.f32 %v2445, %v2624
  %v2675 = vadd.f32 %v2464, %v2643
  %v2676 = vadd.f32 %v2483, %v2662
  %v2677 = vadd.f32 %v2429, %v2608
  %v2678 = vadd.f32 %v2448, %v2627
  %v2679 = vadd.f32 %v2467, %v2646
  %v2680 = vadd.f32 %v2486, %v2665
  %v2681 = vadd.f32 %v2431, %v2610
  %v2682 = vadd.f32 %v2450, %v2629
  %v2683 = vadd.f32 %v2469, %v2648
  %v2684 = vadd.f32 %v2488, %v2667
  %2685 = vrot.lane.b32.xlu0 %v2066, 2
  %v2686 = vpop.permute.xlu0 %2685
  %2687 = vrot.lane.b32.xlu0 %v2068, 2
  %v2688 = vpop.permute.xlu0 %2687
  %2689 = vrot.lane.b32.xlu0 %v2071, 2
  %v2690 = vpop.permute.xlu0 %2689
  %2691 = vrot.lane.b32.xlu0 %v2073, 2
  %v2692 = vpop.permute.xlu0 %2691
  %2693 = vrot.lane.b32.xlu0 %v2085, 2
  %v2694 = vpop.permute.xlu0 %2693
  %2695 = vrot.lane.b32.xlu0 %v2087, 2
  %v2696 = vpop.permute.xlu0 %2695
  %2697 = vrot.lane.b32.xlu0 %v2090, 2
  %v2698 = vpop.permute.xlu0 %2697
  %2699 = vrot.lane.b32.xlu0 %v2092, 2
  %v2700 = vpop.permute.xlu0 %2699
  %2701 = vrot.lane.b32.xlu0 %v2104, 2
  %v2702 = vpop.permute.xlu0 %2701
  %2703 = vrot.lane.b32.xlu0 %v2106, 2
  %v2704 = vpop.permute.xlu0 %2703
  %2705 = vrot.lane.b32.xlu0 %v2109, 2
  %v2706 = vpop.permute.xlu0 %2705
  %2707 = vrot.lane.b32.xlu0 %v2111, 2
  %v2708 = vpop.permute.xlu0 %2707
  %2709 = vrot.lane.b32.xlu0 %v2123, 2
  %v2710 = vpop.permute.xlu0 %2709
  %2711 = vrot.lane.b32.xlu0 %v2125, 2
  %v2712 = vpop.permute.xlu0 %2711
  %2713 = vrot.lane.b32.xlu0 %v2128, 2
  %v2714 = vpop.permute.xlu0 %2713
  %2715 = vrot.lane.b32.xlu0 %v2130, 2
  %v2716 = vpop.permute.xlu0 %2715
  %v2717 = vsel %vm752, %v2702, %v2710
  %v2718 = vsel %vm752, %v2704, %v2712
  %v2719 = vsel %vm752, %v2706, %v2714
  %v2720 = vsel %vm752, %v2708, %v2716
  %v2721 = vsel %vm752, %v2694, %v2702
  %v2722 = vsel %vm752, %v2696, %v2704
  %v2723 = vsel %vm752, %v2698, %v2706
  %v2724 = vsel %vm752, %v2700, %v2708
  %v2725 = vsel %vm752, %v2686, %v2694
  %v2726 = vsel %vm752, %v2688, %v2696
  %v2727 = vsel %vm752, %v2690, %v2698
  %v2728 = vsel %vm752, %v2692, %v2700
  %v2729 = vsel %vm752, %v2710, %v2686
  %v2730 = vsel %vm752, %v2712, %v2688
  %v2731 = vsel %vm752, %v2714, %v2690
  %v2732 = vsel %vm752, %v2716, %v2692
  %v2733 = vld [vmem:[%s769] sm:$0xf]
  %v2735 = vperm.slane %v2733, 0
  %v2736 = vperm.slane %v2733, 1
  %v2737 = vperm.slane %v2733, 2
  %v2738 = vperm.slane %v2733, 3
  %v2743 = vmul.f32 %v2729, %v2735
  %v2744 = vmul.f32 %v2725, %v2736
  %v2745 = vmul.f32 %v2721, %v2737
  %v2746 = vmul.f32 %v2717, %v2738
  %v2747 = vmul.f32 %v2730, %v2735
  %v2748 = vmul.f32 %v2726, %v2736
  %v2749 = vmul.f32 %v2722, %v2737
  %v2750 = vmul.f32 %v2718, %v2738
  %v2751 = vmul.f32 %v2731, %v2735
  %v2752 = vmul.f32 %v2727, %v2736
  %v2753 = vmul.f32 %v2723, %v2737
  %v2754 = vmul.f32 %v2719, %v2738
  %v2755 = vmul.f32 %v2732, %v2735
  %v2756 = vmul.f32 %v2728, %v2736
  %v2757 = vmul.f32 %v2724, %v2737
  %v2758 = vmul.f32 %v2720, %v2738
  %v2759 = vpack.c.bf16 %v2747, %v2743
  %v2760 = vpack.c.bf16 %v2748, %v2744
  %v2761 = vpack.c.bf16 %v2749, %v2745
  %v2762 = vpack.c.bf16 %v2750, %v2746
  %v2763 = vpack.c.bf16 %v2755, %v2751
  %v2764 = vpack.c.bf16 %v2756, %v2752
  %v2765 = vpack.c.bf16 %v2757, %v2753
  %v2766 = vpack.c.bf16 %v2758, %v2754
  %s2767 = scalar_lea.vmem %s5, 192
  %v2768 = vld [vmem:[%s2767] sm:$0xf]
  %v2769 = vld [vmem:[%s2767 + $0x4] sm:$0xf]
  %v2770 = vld [vmem:[%s2767 + $0x8] sm:$0xf]
  %v2771 = vld [vmem:[%s2767 + $0xc] sm:$0xf]
  %v2776 = vunpack.c.l.b16 %v2768
  %v2777 = vunpack.c.l.b16 %v2769
  %v2778 = vunpack.c.l.b16 %v2770
  %v2779 = vunpack.c.l.b16 %v2771
  %v2780 = vpack.c.b16 %v2777, %v2776
  %v2781 = vpack.c.b16 %v2779, %v2778
  %v2783 = vsel %vm78, %v2780, 0
  %v2786 = vsel %vm78, %v2781, 0
  %2788 = vmatpush.bf16.msra.mxu0 0
  %2789 = vmatpush.bf16.msra.mxu0 0
  %2790 = vmatpush.bf16.msra.mxu0 0
  %2791 = vmatpush.bf16.msra.mxu0 0
  %2792 = vmatpush.bf16.msra.mxu0 0
  %2793 = vmatpush.bf16.msra.mxu0 0
  %2794 = vmatpush.bf16.msra.mxu0 %v2763
  %2795 = vmatpush.bf16.msra.mxu0 %v2759
  %2796 = vmatmul.bf16.gmra.mxu0 %v2783
  %v2797 = vpop.f32.mrf.mxu0
  %v2798 = vadd.f32 0.0, %v2797
  %v2799 = vpop.f32.mrf.mxu0
  %v2800 = vadd.f32 0.0, %v2799
  %2801 = vmatmul.bf16.gmra.mxu0 %v2786
  %v2802 = vpop.f32.mrf.mxu0
  %v2803 = vadd.f32 0.0, %v2802
  %v2804 = vpop.f32.mrf.mxu0
  %v2805 = vadd.f32 0.0, %v2804
  %2806 = vdwg.mxu0
  %2807 = vmatpush.bf16.msra.mxu0 0
  %2808 = vmatpush.bf16.msra.mxu0 0
  %2809 = vmatpush.bf16.msra.mxu0 0
  %2810 = vmatpush.bf16.msra.mxu0 0
  %2811 = vmatpush.bf16.msra.mxu0 0
  %2812 = vmatpush.bf16.msra.mxu0 0
  %2813 = vmatpush.bf16.msra.mxu0 %v2764
  %2814 = vmatpush.bf16.msra.mxu0 %v2760
  %2815 = vmatmul.bf16.gmra.mxu0 %v2783
  %v2816 = vpop.f32.mrf.mxu0
  %v2817 = vadd.f32 0.0, %v2816
  %v2818 = vpop.f32.mrf.mxu0
  %v2819 = vadd.f32 0.0, %v2818
  %2820 = vmatmul.bf16.gmra.mxu0 %v2786
  %v2821 = vpop.f32.mrf.mxu0
  %v2822 = vadd.f32 0.0, %v2821
  %v2823 = vpop.f32.mrf.mxu0
  %v2824 = vadd.f32 0.0, %v2823
  %2825 = vdwg.mxu0
  %2826 = vmatpush.bf16.msra.mxu0 0
  %2827 = vmatpush.bf16.msra.mxu0 0
  %2828 = vmatpush.bf16.msra.mxu0 0
  %2829 = vmatpush.bf16.msra.mxu0 0
  %2830 = vmatpush.bf16.msra.mxu0 0
  %2831 = vmatpush.bf16.msra.mxu0 0
  %2832 = vmatpush.bf16.msra.mxu0 %v2765
  %2833 = vmatpush.bf16.msra.mxu0 %v2761
  %2834 = vmatmul.bf16.gmra.mxu0 %v2783
  %v2835 = vpop.f32.mrf.mxu0
  %v2836 = vadd.f32 0.0, %v2835
  %v2837 = vpop.f32.mrf.mxu0
  %v2838 = vadd.f32 0.0, %v2837
  %2839 = vmatmul.bf16.gmra.mxu0 %v2786
  %v2840 = vpop.f32.mrf.mxu0
  %v2841 = vadd.f32 0.0, %v2840
  %v2842 = vpop.f32.mrf.mxu0
  %v2843 = vadd.f32 0.0, %v2842
  %2844 = vdwg.mxu0
  %2845 = vmatpush.bf16.msra.mxu0 0
  %2846 = vmatpush.bf16.msra.mxu0 0
  %2847 = vmatpush.bf16.msra.mxu0 0
  %2848 = vmatpush.bf16.msra.mxu0 0
  %2849 = vmatpush.bf16.msra.mxu0 0
  %2850 = vmatpush.bf16.msra.mxu0 0
  %2851 = vmatpush.bf16.msra.mxu0 %v2766
  %2852 = vmatpush.bf16.msra.mxu0 %v2762
  %2853 = vmatmul.bf16.gmra.mxu0 %v2783
  %v2854 = vpop.f32.mrf.mxu0
  %v2855 = vadd.f32 0.0, %v2854
  %v2856 = vpop.f32.mrf.mxu0
  %v2857 = vadd.f32 0.0, %v2856
  %2858 = vmatmul.bf16.gmra.mxu0 %v2786
  %v2859 = vpop.f32.mrf.mxu0
  %v2860 = vadd.f32 0.0, %v2859
  %v2861 = vpop.f32.mrf.mxu0
  %v2862 = vadd.f32 0.0, %v2861
  %2863 = vdwg.mxu0
  %v2864 = vadd.f32 %v2669, %v2798
  %v2865 = vadd.f32 %v2670, %v2817
  %v2866 = vadd.f32 %v2671, %v2836
  %v2867 = vadd.f32 %v2672, %v2855
  %v2868 = vadd.f32 %v2673, %v2800
  %v2869 = vadd.f32 %v2674, %v2819
  %v2870 = vadd.f32 %v2675, %v2838
  %v2871 = vadd.f32 %v2676, %v2857
  %v2872 = vadd.f32 %v2677, %v2803
  %v2873 = vadd.f32 %v2678, %v2822
  %v2874 = vadd.f32 %v2679, %v2841
  %v2875 = vadd.f32 %v2680, %v2860
  %v2876 = vadd.f32 %v2681, %v2805
  %v2877 = vadd.f32 %v2682, %v2824
  %v2878 = vadd.f32 %v2683, %v2843
  %v2879 = vadd.f32 %v2684, %v2862
  %v2880 = vld [vmem:[%s917] sm:$0xf]
  %v2882 = vperm.slane %v2880, 0
  %v2883 = vperm.slane %v2880, 1
  %v2884 = vperm.slane %v2880, 2
  %v2885 = vperm.slane %v2880, 3
  %v2890 = vmul.f32 %v2066, %v2882
  %v2891 = vmul.f32 %v2085, %v2883
  %v2892 = vmul.f32 %v2104, %v2884
  %v2893 = vmul.f32 %v2123, %v2885
  %v2894 = vmul.f32 %v2068, %v2882
  %v2895 = vmul.f32 %v2087, %v2883
  %v2896 = vmul.f32 %v2106, %v2884
  %v2897 = vmul.f32 %v2125, %v2885
  %v2898 = vmul.f32 %v2071, %v2882
  %v2899 = vmul.f32 %v2090, %v2883
  %v2900 = vmul.f32 %v2109, %v2884
  %v2901 = vmul.f32 %v2128, %v2885
  %v2902 = vmul.f32 %v2073, %v2882
  %v2903 = vmul.f32 %v2092, %v2883
  %v2904 = vmul.f32 %v2111, %v2884
  %v2905 = vmul.f32 %v2130, %v2885
  %v2906 = vpack.c.bf16 %v2894, %v2890
  %v2907 = vpack.c.bf16 %v2895, %v2891
  %v2908 = vpack.c.bf16 %v2896, %v2892
  %v2909 = vpack.c.bf16 %v2897, %v2893
  %v2910 = vpack.c.bf16 %v2902, %v2898
  %v2911 = vpack.c.bf16 %v2903, %v2899
  %v2912 = vpack.c.bf16 %v2904, %v2900
  %v2913 = vpack.c.bf16 %v2905, %v2901
  %s2914 = scalar_lea.vmem %s5, 208
  %v2915 = vld [vmem:[%s2914] sm:$0xf]
  %v2916 = vld [vmem:[%s2914 + $0x4] sm:$0xf]
  %v2917 = vld [vmem:[%s2914 + $0x8] sm:$0xf]
  %v2918 = vld [vmem:[%s2914 + $0xc] sm:$0xf]
  %v2923 = vunpack.c.l.b16 %v2915
  %v2924 = vunpack.c.l.b16 %v2916
  %v2925 = vunpack.c.l.b16 %v2917
  %v2926 = vunpack.c.l.b16 %v2918
  %v2927 = vpack.c.b16 %v2924, %v2923
  %v2928 = vpack.c.b16 %v2926, %v2925
  %v2930 = vsel %vm78, %v2927, 0
  %v2933 = vsel %vm78, %v2928, 0
  %2935 = vmatpush.bf16.msra.mxu0 0
  %2936 = vmatpush.bf16.msra.mxu0 0
  %2937 = vmatpush.bf16.msra.mxu0 0
  %2938 = vmatpush.bf16.msra.mxu0 0
  %2939 = vmatpush.bf16.msra.mxu0 0
  %2940 = vmatpush.bf16.msra.mxu0 0
  %2941 = vmatpush.bf16.msra.mxu0 %v2910
  %2942 = vmatpush.bf16.msra.mxu0 %v2906
  %2943 = vmatmul.bf16.gmra.mxu0 %v2930
  %v2944 = vpop.f32.mrf.mxu0
  %v2945 = vadd.f32 0.0, %v2944
  %v2946 = vpop.f32.mrf.mxu0
  %v2947 = vadd.f32 0.0, %v2946
  %2948 = vmatmul.bf16.gmra.mxu0 %v2933
  %v2949 = vpop.f32.mrf.mxu0
  %v2950 = vadd.f32 0.0, %v2949
  %v2951 = vpop.f32.mrf.mxu0
  %v2952 = vadd.f32 0.0, %v2951
  %2953 = vdwg.mxu0
  %2954 = vmatpush.bf16.msra.mxu0 0
  %2955 = vmatpush.bf16.msra.mxu0 0
  %2956 = vmatpush.bf16.msra.mxu0 0
  %2957 = vmatpush.bf16.msra.mxu0 0
  %2958 = vmatpush.bf16.msra.mxu0 0
  %2959 = vmatpush.bf16.msra.mxu0 0
  %2960 = vmatpush.bf16.msra.mxu0 %v2911
  %2961 = vmatpush.bf16.msra.mxu0 %v2907
  %2962 = vmatmul.bf16.gmra.mxu0 %v2930
  %v2963 = vpop.f32.mrf.mxu0
  %v2964 = vadd.f32 0.0, %v2963
  %v2965 = vpop.f32.mrf.mxu0
  %v2966 = vadd.f32 0.0, %v2965
  %2967 = vmatmul.bf16.gmra.mxu0 %v2933
  %v2968 = vpop.f32.mrf.mxu0
  %v2969 = vadd.f32 0.0, %v2968
  %v2970 = vpop.f32.mrf.mxu0
  %v2971 = vadd.f32 0.0, %v2970
  %2972 = vdwg.mxu0
  %2973 = vmatpush.bf16.msra.mxu0 0
  %2974 = vmatpush.bf16.msra.mxu0 0
  %2975 = vmatpush.bf16.msra.mxu0 0
  %2976 = vmatpush.bf16.msra.mxu0 0
  %2977 = vmatpush.bf16.msra.mxu0 0
  %2978 = vmatpush.bf16.msra.mxu0 0
  %2979 = vmatpush.bf16.msra.mxu0 %v2912
  %2980 = vmatpush.bf16.msra.mxu0 %v2908
  %2981 = vmatmul.bf16.gmra.mxu0 %v2930
  %v2982 = vpop.f32.mrf.mxu0
  %v2983 = vadd.f32 0.0, %v2982
  %v2984 = vpop.f32.mrf.mxu0
  %v2985 = vadd.f32 0.0, %v2984
  %2986 = vmatmul.bf16.gmra.mxu0 %v2933
  %v2987 = vpop.f32.mrf.mxu0
  %v2988 = vadd.f32 0.0, %v2987
  %v2989 = vpop.f32.mrf.mxu0
  %v2990 = vadd.f32 0.0, %v2989
  %2991 = vdwg.mxu0
  %2992 = vmatpush.bf16.msra.mxu0 0
  %2993 = vmatpush.bf16.msra.mxu0 0
  %2994 = vmatpush.bf16.msra.mxu0 0
  %2995 = vmatpush.bf16.msra.mxu0 0
  %2996 = vmatpush.bf16.msra.mxu0 0
  %2997 = vmatpush.bf16.msra.mxu0 0
  %2998 = vmatpush.bf16.msra.mxu0 %v2913
  %2999 = vmatpush.bf16.msra.mxu0 %v2909
  %3000 = vmatmul.bf16.gmra.mxu0 %v2930
  %v3001 = vpop.f32.mrf.mxu0
  %v3002 = vadd.f32 0.0, %v3001
  %v3003 = vpop.f32.mrf.mxu0
  %v3004 = vadd.f32 0.0, %v3003
  %3005 = vmatmul.bf16.gmra.mxu0 %v2933
  %v3006 = vpop.f32.mrf.mxu0
  %v3007 = vadd.f32 0.0, %v3006
  %v3008 = vpop.f32.mrf.mxu0
  %v3009 = vadd.f32 0.0, %v3008
  %3010 = vdwg.mxu0
  %v3011 = vadd.f32 %v2864, %v2945
  %v3012 = vadd.f32 %v2865, %v2964
  %v3013 = vadd.f32 %v2866, %v2983
  %v3014 = vadd.f32 %v2867, %v3002
  %v3015 = vadd.f32 %v2868, %v2947
  %v3016 = vadd.f32 %v2869, %v2966
  %v3017 = vadd.f32 %v2870, %v2985
  %v3018 = vadd.f32 %v2871, %v3004
  %v3019 = vadd.f32 %v2872, %v2950
  %v3020 = vadd.f32 %v2873, %v2969
  %v3021 = vadd.f32 %v2874, %v2988
  %v3022 = vadd.f32 %v2875, %v3007
  %v3023 = vadd.f32 %v2876, %v2952
  %v3024 = vadd.f32 %v2877, %v2971
  %v3025 = vadd.f32 %v2878, %v2990
  %v3026 = vadd.f32 %v2879, %v3009
  %3027 = vrot.lane.b32.xlu0 %v2066, 126
  %v3028 = vpop.permute.xlu0 %3027
  %3029 = vrot.lane.b32.xlu0 %v2068, 126
  %v3030 = vpop.permute.xlu0 %3029
  %3031 = vrot.lane.b32.xlu0 %v2071, 126
  %v3032 = vpop.permute.xlu0 %3031
  %3033 = vrot.lane.b32.xlu0 %v2073, 126
  %v3034 = vpop.permute.xlu0 %3033
  %3035 = vrot.lane.b32.xlu0 %v2085, 126
  %v3036 = vpop.permute.xlu0 %3035
  %3037 = vrot.lane.b32.xlu0 %v2087, 126
  %v3038 = vpop.permute.xlu0 %3037
  %3039 = vrot.lane.b32.xlu0 %v2090, 126
  %v3040 = vpop.permute.xlu0 %3039
  %3041 = vrot.lane.b32.xlu0 %v2092, 126
  %v3042 = vpop.permute.xlu0 %3041
  %3043 = vrot.lane.b32.xlu0 %v2104, 126
  %v3044 = vpop.permute.xlu0 %3043
  %3045 = vrot.lane.b32.xlu0 %v2106, 126
  %v3046 = vpop.permute.xlu0 %3045
  %3047 = vrot.lane.b32.xlu0 %v2109, 126
  %v3048 = vpop.permute.xlu0 %3047
  %3049 = vrot.lane.b32.xlu0 %v2111, 126
  %v3050 = vpop.permute.xlu0 %3049
  %3051 = vrot.lane.b32.xlu0 %v2123, 126
  %v3052 = vpop.permute.xlu0 %3051
  %3053 = vrot.lane.b32.xlu0 %v2125, 126
  %v3054 = vpop.permute.xlu0 %3053
  %3055 = vrot.lane.b32.xlu0 %v2128, 126
  %v3056 = vpop.permute.xlu0 %3055
  %3057 = vrot.lane.b32.xlu0 %v2130, 126
  %v3058 = vpop.permute.xlu0 %3057
  %v3059 = vsel %vm1097, %v3044, %v3052
  %v3060 = vsel %vm1097, %v3046, %v3054
  %v3061 = vsel %vm1097, %v3048, %v3056
  %v3062 = vsel %vm1097, %v3050, %v3058
  %v3063 = vsel %vm1097, %v3036, %v3044
  %v3064 = vsel %vm1097, %v3038, %v3046
  %v3065 = vsel %vm1097, %v3040, %v3048
  %v3066 = vsel %vm1097, %v3042, %v3050
  %v3067 = vsel %vm1097, %v3028, %v3036
  %v3068 = vsel %vm1097, %v3030, %v3038
  %v3069 = vsel %vm1097, %v3032, %v3040
  %v3070 = vsel %vm1097, %v3034, %v3042
  %v3071 = vsel %vm1097, %v3052, %v3028
  %v3072 = vsel %vm1097, %v3054, %v3030
  %v3073 = vsel %vm1097, %v3056, %v3032
  %v3074 = vsel %vm1097, %v3058, %v3034
  %v3075 = vld [vmem:[%s1114] sm:$0xf]
  %v3077 = vperm.slane %v3075, 0
  %v3078 = vperm.slane %v3075, 1
  %v3079 = vperm.slane %v3075, 2
  %v3080 = vperm.slane %v3075, 3
  %v3085 = vmul.f32 %v3067, %v3077
  %v3086 = vmul.f32 %v3063, %v3078
  %v3087 = vmul.f32 %v3059, %v3079
  %v3088 = vmul.f32 %v3071, %v3080
  %v3089 = vmul.f32 %v3068, %v3077
  %v3090 = vmul.f32 %v3064, %v3078
  %v3091 = vmul.f32 %v3060, %v3079
  %v3092 = vmul.f32 %v3072, %v3080
  %v3093 = vmul.f32 %v3069, %v3077
  %v3094 = vmul.f32 %v3065, %v3078
  %v3095 = vmul.f32 %v3061, %v3079
  %v3096 = vmul.f32 %v3073, %v3080
  %v3097 = vmul.f32 %v3070, %v3077
  %v3098 = vmul.f32 %v3066, %v3078
  %v3099 = vmul.f32 %v3062, %v3079
  %v3100 = vmul.f32 %v3074, %v3080
  %v3101 = vpack.c.bf16 %v3089, %v3085
  %v3102 = vpack.c.bf16 %v3090, %v3086
  %v3103 = vpack.c.bf16 %v3091, %v3087
  %v3104 = vpack.c.bf16 %v3092, %v3088
  %v3105 = vpack.c.bf16 %v3097, %v3093
  %v3106 = vpack.c.bf16 %v3098, %v3094
  %v3107 = vpack.c.bf16 %v3099, %v3095
  %v3108 = vpack.c.bf16 %v3100, %v3096
  %s3109 = scalar_lea.vmem %s5, 224
  %v3110 = vld [vmem:[%s3109] sm:$0xf]
  %v3111 = vld [vmem:[%s3109 + $0x4] sm:$0xf]
  %v3112 = vld [vmem:[%s3109 + $0x8] sm:$0xf]
  %v3113 = vld [vmem:[%s3109 + $0xc] sm:$0xf]
  %v3118 = vunpack.c.l.b16 %v3110
  %v3119 = vunpack.c.l.b16 %v3111
  %v3120 = vunpack.c.l.b16 %v3112
  %v3121 = vunpack.c.l.b16 %v3113
  %v3122 = vpack.c.b16 %v3119, %v3118
  %v3123 = vpack.c.b16 %v3121, %v3120
  %v3125 = vsel %vm78, %v3122, 0
  %v3128 = vsel %vm78, %v3123, 0
  %3130 = vmatpush.bf16.msra.mxu0 0
  %3131 = vmatpush.bf16.msra.mxu0 0
  %3132 = vmatpush.bf16.msra.mxu0 0
  %3133 = vmatpush.bf16.msra.mxu0 0
  %3134 = vmatpush.bf16.msra.mxu0 0
  %3135 = vmatpush.bf16.msra.mxu0 0
  %3136 = vmatpush.bf16.msra.mxu0 %v3105
  %3137 = vmatpush.bf16.msra.mxu0 %v3101
  %3138 = vmatmul.bf16.gmra.mxu0 %v3125
  %v3139 = vpop.f32.mrf.mxu0
  %v3140 = vadd.f32 0.0, %v3139
  %v3141 = vpop.f32.mrf.mxu0
  %v3142 = vadd.f32 0.0, %v3141
  %3143 = vmatmul.bf16.gmra.mxu0 %v3128
  %v3144 = vpop.f32.mrf.mxu0
  %v3145 = vadd.f32 0.0, %v3144
  %v3146 = vpop.f32.mrf.mxu0
  %v3147 = vadd.f32 0.0, %v3146
  %3148 = vdwg.mxu0
  %3149 = vmatpush.bf16.msra.mxu0 0
  %3150 = vmatpush.bf16.msra.mxu0 0
  %3151 = vmatpush.bf16.msra.mxu0 0
  %3152 = vmatpush.bf16.msra.mxu0 0
  %3153 = vmatpush.bf16.msra.mxu0 0
  %3154 = vmatpush.bf16.msra.mxu0 0
  %3155 = vmatpush.bf16.msra.mxu0 %v3106
  %3156 = vmatpush.bf16.msra.mxu0 %v3102
  %3157 = vmatmul.bf16.gmra.mxu0 %v3125
  %v3158 = vpop.f32.mrf.mxu0
  %v3159 = vadd.f32 0.0, %v3158
  %v3160 = vpop.f32.mrf.mxu0
  %v3161 = vadd.f32 0.0, %v3160
  %3162 = vmatmul.bf16.gmra.mxu0 %v3128
  %v3163 = vpop.f32.mrf.mxu0
  %v3164 = vadd.f32 0.0, %v3163
  %v3165 = vpop.f32.mrf.mxu0
  %v3166 = vadd.f32 0.0, %v3165
  %3167 = vdwg.mxu0
  %3168 = vmatpush.bf16.msra.mxu0 0
  %3169 = vmatpush.bf16.msra.mxu0 0
  %3170 = vmatpush.bf16.msra.mxu0 0
  %3171 = vmatpush.bf16.msra.mxu0 0
  %3172 = vmatpush.bf16.msra.mxu0 0
  %3173 = vmatpush.bf16.msra.mxu0 0
  %3174 = vmatpush.bf16.msra.mxu0 %v3107
  %3175 = vmatpush.bf16.msra.mxu0 %v3103
  %3176 = vmatmul.bf16.gmra.mxu0 %v3125
  %v3177 = vpop.f32.mrf.mxu0
  %v3178 = vadd.f32 0.0, %v3177
  %v3179 = vpop.f32.mrf.mxu0
  %v3180 = vadd.f32 0.0, %v3179
  %3181 = vmatmul.bf16.gmra.mxu0 %v3128
  %v3182 = vpop.f32.mrf.mxu0
  %v3183 = vadd.f32 0.0, %v3182
  %v3184 = vpop.f32.mrf.mxu0
  %v3185 = vadd.f32 0.0, %v3184
  %3186 = vdwg.mxu0
  %3187 = vmatpush.bf16.msra.mxu0 0
  %3188 = vmatpush.bf16.msra.mxu0 0
  %3189 = vmatpush.bf16.msra.mxu0 0
  %3190 = vmatpush.bf16.msra.mxu0 0
  %3191 = vmatpush.bf16.msra.mxu0 0
  %3192 = vmatpush.bf16.msra.mxu0 0
  %3193 = vmatpush.bf16.msra.mxu0 %v3108
  %3194 = vmatpush.bf16.msra.mxu0 %v3104
  %3195 = vmatmul.bf16.gmra.mxu0 %v3125
  %v3196 = vpop.f32.mrf.mxu0
  %v3197 = vadd.f32 0.0, %v3196
  %v3198 = vpop.f32.mrf.mxu0
  %v3199 = vadd.f32 0.0, %v3198
  %3200 = vmatmul.bf16.gmra.mxu0 %v3128
  %v3201 = vpop.f32.mrf.mxu0
  %v3202 = vadd.f32 0.0, %v3201
  %v3203 = vpop.f32.mrf.mxu0
  %v3204 = vadd.f32 0.0, %v3203
  %3205 = vdwg.mxu0
  %v3206 = vadd.f32 %v3011, %v3140
  %v3207 = vadd.f32 %v3012, %v3159
  %v3208 = vadd.f32 %v3013, %v3178
  %v3209 = vadd.f32 %v3014, %v3197
  %v3210 = vadd.f32 %v3015, %v3142
  %v3211 = vadd.f32 %v3016, %v3161
  %v3212 = vadd.f32 %v3017, %v3180
  %v3213 = vadd.f32 %v3018, %v3199
  %v3214 = vadd.f32 %v3019, %v3145
  %v3215 = vadd.f32 %v3020, %v3164
  %v3216 = vadd.f32 %v3021, %v3183
  %v3217 = vadd.f32 %v3022, %v3202
  %v3218 = vadd.f32 %v3023, %v3147
  %v3219 = vadd.f32 %v3024, %v3166
  %v3220 = vadd.f32 %v3025, %v3185
  %v3221 = vadd.f32 %v3026, %v3204
  %3222 = vrot.lane.b32.xlu0 %v2066, 98
  %v3223 = vpop.permute.xlu0 %3222
  %3224 = vrot.lane.b32.xlu0 %v2068, 98
  %v3225 = vpop.permute.xlu0 %3224
  %3226 = vrot.lane.b32.xlu0 %v2071, 98
  %v3227 = vpop.permute.xlu0 %3226
  %3228 = vrot.lane.b32.xlu0 %v2073, 98
  %v3229 = vpop.permute.xlu0 %3228
  %3230 = vrot.lane.b32.xlu0 %v2085, 98
  %v3231 = vpop.permute.xlu0 %3230
  %3232 = vrot.lane.b32.xlu0 %v2087, 98
  %v3233 = vpop.permute.xlu0 %3232
  %3234 = vrot.lane.b32.xlu0 %v2090, 98
  %v3235 = vpop.permute.xlu0 %3234
  %3236 = vrot.lane.b32.xlu0 %v2092, 98
  %v3237 = vpop.permute.xlu0 %3236
  %3238 = vrot.lane.b32.xlu0 %v2104, 98
  %v3239 = vpop.permute.xlu0 %3238
  %3240 = vrot.lane.b32.xlu0 %v2106, 98
  %v3241 = vpop.permute.xlu0 %3240
  %3242 = vrot.lane.b32.xlu0 %v2109, 98
  %v3243 = vpop.permute.xlu0 %3242
  %3244 = vrot.lane.b32.xlu0 %v2111, 98
  %v3245 = vpop.permute.xlu0 %3244
  %3246 = vrot.lane.b32.xlu0 %v2123, 98
  %v3247 = vpop.permute.xlu0 %3246
  %3248 = vrot.lane.b32.xlu0 %v2125, 98
  %v3249 = vpop.permute.xlu0 %3248
  %3250 = vrot.lane.b32.xlu0 %v2128, 98
  %v3251 = vpop.permute.xlu0 %3250
  %3252 = vrot.lane.b32.xlu0 %v2130, 98
  %v3253 = vpop.permute.xlu0 %3252
  %v3254 = vsel %vm1294, %v3239, %v3247
  %v3255 = vsel %vm1294, %v3241, %v3249
  %v3256 = vsel %vm1294, %v3243, %v3251
  %v3257 = vsel %vm1294, %v3245, %v3253
  %v3258 = vsel %vm1294, %v3231, %v3239
  %v3259 = vsel %vm1294, %v3233, %v3241
  %v3260 = vsel %vm1294, %v3235, %v3243
  %v3261 = vsel %vm1294, %v3237, %v3245
  %v3262 = vsel %vm1294, %v3223, %v3231
  %v3263 = vsel %vm1294, %v3225, %v3233
  %v3264 = vsel %vm1294, %v3227, %v3235
  %v3265 = vsel %vm1294, %v3229, %v3237
  %v3266 = vsel %vm1294, %v3247, %v3223
  %v3267 = vsel %vm1294, %v3249, %v3225
  %v3268 = vsel %vm1294, %v3251, %v3227
  %v3269 = vsel %vm1294, %v3253, %v3229
  %v3270 = vld [vmem:[%s1311] sm:$0xf]
  %v3272 = vperm.slane %v3270, 0
  %v3273 = vperm.slane %v3270, 1
  %v3274 = vperm.slane %v3270, 2
  %v3275 = vperm.slane %v3270, 3
  %v3280 = vmul.f32 %v3262, %v3272
  %v3281 = vmul.f32 %v3258, %v3273
  %v3282 = vmul.f32 %v3254, %v3274
  %v3283 = vmul.f32 %v3266, %v3275
  %v3284 = vmul.f32 %v3263, %v3272
  %v3285 = vmul.f32 %v3259, %v3273
  %v3286 = vmul.f32 %v3255, %v3274
  %v3287 = vmul.f32 %v3267, %v3275
  %v3288 = vmul.f32 %v3264, %v3272
  %v3289 = vmul.f32 %v3260, %v3273
  %v3290 = vmul.f32 %v3256, %v3274
  %v3291 = vmul.f32 %v3268, %v3275
  %v3292 = vmul.f32 %v3265, %v3272
  %v3293 = vmul.f32 %v3261, %v3273
  %v3294 = vmul.f32 %v3257, %v3274
  %v3295 = vmul.f32 %v3269, %v3275
  %v3296 = vpack.c.bf16 %v3284, %v3280
  %v3297 = vpack.c.bf16 %v3285, %v3281
  %v3298 = vpack.c.bf16 %v3286, %v3282
  %v3299 = vpack.c.bf16 %v3287, %v3283
  %v3300 = vpack.c.bf16 %v3292, %v3288
  %v3301 = vpack.c.bf16 %v3293, %v3289
  %v3302 = vpack.c.bf16 %v3294, %v3290
  %v3303 = vpack.c.bf16 %v3295, %v3291
  %s3304 = scalar_lea.vmem %s5, 240
  %v3305 = vld [vmem:[%s3304] sm:$0xf]
  %v3306 = vld [vmem:[%s3304 + $0x4] sm:$0xf]
  %v3307 = vld [vmem:[%s3304 + $0x8] sm:$0xf]
  %v3308 = vld [vmem:[%s3304 + $0xc] sm:$0xf]
  %v3313 = vunpack.c.l.b16 %v3305
  %v3314 = vunpack.c.l.b16 %v3306
  %v3315 = vunpack.c.l.b16 %v3307
  %v3316 = vunpack.c.l.b16 %v3308
  %v3317 = vpack.c.b16 %v3314, %v3313
  %v3318 = vpack.c.b16 %v3316, %v3315
  %v3320 = vsel %vm78, %v3317, 0
  %v3323 = vsel %vm78, %v3318, 0
  %3325 = vmatpush.bf16.msra.mxu0 0
  %3326 = vmatpush.bf16.msra.mxu0 0
  %3327 = vmatpush.bf16.msra.mxu0 0
  %3328 = vmatpush.bf16.msra.mxu0 0
  %3329 = vmatpush.bf16.msra.mxu0 0
  %3330 = vmatpush.bf16.msra.mxu0 0
  %3331 = vmatpush.bf16.msra.mxu0 %v3300
  %3332 = vmatpush.bf16.msra.mxu0 %v3296
  %3333 = vmatmul.bf16.gmra.mxu0 %v3320
  %v3334 = vpop.f32.mrf.mxu0
  %v3335 = vadd.f32 0.0, %v3334
  %v3336 = vpop.f32.mrf.mxu0
  %v3337 = vadd.f32 0.0, %v3336
  %3338 = vmatmul.bf16.gmra.mxu0 %v3323
  %v3339 = vpop.f32.mrf.mxu0
  %v3340 = vadd.f32 0.0, %v3339
  %v3341 = vpop.f32.mrf.mxu0
  %v3342 = vadd.f32 0.0, %v3341
  %3343 = vdwg.mxu0
  %3344 = vmatpush.bf16.msra.mxu0 0
  %3345 = vmatpush.bf16.msra.mxu0 0
  %3346 = vmatpush.bf16.msra.mxu0 0
  %3347 = vmatpush.bf16.msra.mxu0 0
  %3348 = vmatpush.bf16.msra.mxu0 0
  %3349 = vmatpush.bf16.msra.mxu0 0
  %3350 = vmatpush.bf16.msra.mxu0 %v3301
  %3351 = vmatpush.bf16.msra.mxu0 %v3297
  %3352 = vmatmul.bf16.gmra.mxu0 %v3320
  %v3353 = vpop.f32.mrf.mxu0
  %v3354 = vadd.f32 0.0, %v3353
  %v3355 = vpop.f32.mrf.mxu0
  %v3356 = vadd.f32 0.0, %v3355
  %3357 = vmatmul.bf16.gmra.mxu0 %v3323
  %v3358 = vpop.f32.mrf.mxu0
  %v3359 = vadd.f32 0.0, %v3358
  %v3360 = vpop.f32.mrf.mxu0
  %v3361 = vadd.f32 0.0, %v3360
  %3362 = vdwg.mxu0
  %3363 = vmatpush.bf16.msra.mxu0 0
  %3364 = vmatpush.bf16.msra.mxu0 0
  %3365 = vmatpush.bf16.msra.mxu0 0
  %3366 = vmatpush.bf16.msra.mxu0 0
  %3367 = vmatpush.bf16.msra.mxu0 0
  %3368 = vmatpush.bf16.msra.mxu0 0
  %3369 = vmatpush.bf16.msra.mxu0 %v3302
  %3370 = vmatpush.bf16.msra.mxu0 %v3298
  %3371 = vmatmul.bf16.gmra.mxu0 %v3320
  %v3372 = vpop.f32.mrf.mxu0
  %v3373 = vadd.f32 0.0, %v3372
  %v3374 = vpop.f32.mrf.mxu0
  %v3375 = vadd.f32 0.0, %v3374
  %3376 = vmatmul.bf16.gmra.mxu0 %v3323
  %v3377 = vpop.f32.mrf.mxu0
  %v3378 = vadd.f32 0.0, %v3377
  %v3379 = vpop.f32.mrf.mxu0
  %v3380 = vadd.f32 0.0, %v3379
  %3381 = vdwg.mxu0
  %3382 = vmatpush.bf16.msra.mxu0 0
  %3383 = vmatpush.bf16.msra.mxu0 0
  %3384 = vmatpush.bf16.msra.mxu0 0
  %3385 = vmatpush.bf16.msra.mxu0 0
  %3386 = vmatpush.bf16.msra.mxu0 0
  %3387 = vmatpush.bf16.msra.mxu0 0
  %3388 = vmatpush.bf16.msra.mxu0 %v3303
  %3389 = vmatpush.bf16.msra.mxu0 %v3299
  %3390 = vmatmul.bf16.gmra.mxu0 %v3320
  %v3391 = vpop.f32.mrf.mxu0
  %v3392 = vadd.f32 0.0, %v3391
  %v3393 = vpop.f32.mrf.mxu0
  %v3394 = vadd.f32 0.0, %v3393
  %3395 = vmatmul.bf16.gmra.mxu0 %v3323
  %v3396 = vpop.f32.mrf.mxu0
  %v3397 = vadd.f32 0.0, %v3396
  %v3398 = vpop.f32.mrf.mxu0
  %v3399 = vadd.f32 0.0, %v3398
  %3400 = vdwg.mxu0
  %v3401 = vadd.f32 %v3206, %v3335
  %v3402 = vadd.f32 %v3207, %v3354
  %v3403 = vadd.f32 %v3208, %v3373
  %v3404 = vadd.f32 %v3209, %v3392
  %v3405 = vadd.f32 %v3210, %v3337
  %v3406 = vadd.f32 %v3211, %v3356
  %v3407 = vadd.f32 %v3212, %v3375
  %v3408 = vadd.f32 %v3213, %v3394
  %v3409 = vadd.f32 %v3214, %v3340
  %v3410 = vadd.f32 %v3215, %v3359
  %v3411 = vadd.f32 %v3216, %v3378
  %v3412 = vadd.f32 %v3217, %v3397
  %v3413 = vadd.f32 %v3218, %v3342
  %v3414 = vadd.f32 %v3219, %v3361
  %v3415 = vadd.f32 %v3220, %v3380
  %v3416 = vadd.f32 %v3221, %v3399
  %3417 = vrot.lane.b32.xlu0 %v2066, 96
  %v3418 = vpop.permute.xlu0 %3417
  %3419 = vrot.lane.b32.xlu0 %v2068, 96
  %v3420 = vpop.permute.xlu0 %3419
  %3421 = vrot.lane.b32.xlu0 %v2071, 96
  %v3422 = vpop.permute.xlu0 %3421
  %3423 = vrot.lane.b32.xlu0 %v2073, 96
  %v3424 = vpop.permute.xlu0 %3423
  %3425 = vrot.lane.b32.xlu0 %v2085, 96
  %v3426 = vpop.permute.xlu0 %3425
  %3427 = vrot.lane.b32.xlu0 %v2087, 96
  %v3428 = vpop.permute.xlu0 %3427
  %3429 = vrot.lane.b32.xlu0 %v2090, 96
  %v3430 = vpop.permute.xlu0 %3429
  %3431 = vrot.lane.b32.xlu0 %v2092, 96
  %v3432 = vpop.permute.xlu0 %3431
  %3433 = vrot.lane.b32.xlu0 %v2104, 96
  %v3434 = vpop.permute.xlu0 %3433
  %3435 = vrot.lane.b32.xlu0 %v2106, 96
  %v3436 = vpop.permute.xlu0 %3435
  %3437 = vrot.lane.b32.xlu0 %v2109, 96
  %v3438 = vpop.permute.xlu0 %3437
  %3439 = vrot.lane.b32.xlu0 %v2111, 96
  %v3440 = vpop.permute.xlu0 %3439
  %3441 = vrot.lane.b32.xlu0 %v2123, 96
  %v3442 = vpop.permute.xlu0 %3441
  %3443 = vrot.lane.b32.xlu0 %v2125, 96
  %v3444 = vpop.permute.xlu0 %3443
  %3445 = vrot.lane.b32.xlu0 %v2128, 96
  %v3446 = vpop.permute.xlu0 %3445
  %3447 = vrot.lane.b32.xlu0 %v2130, 96
  %v3448 = vpop.permute.xlu0 %3447
  %v3449 = vsel %vm1491, %v3434, %v3442
  %v3450 = vsel %vm1491, %v3436, %v3444
  %v3451 = vsel %vm1491, %v3438, %v3446
  %v3452 = vsel %vm1491, %v3440, %v3448
  %v3453 = vsel %vm1491, %v3426, %v3434
  %v3454 = vsel %vm1491, %v3428, %v3436
  %v3455 = vsel %vm1491, %v3430, %v3438
  %v3456 = vsel %vm1491, %v3432, %v3440
  %v3457 = vsel %vm1491, %v3418, %v3426
  %v3458 = vsel %vm1491, %v3420, %v3428
  %v3459 = vsel %vm1491, %v3422, %v3430
  %v3460 = vsel %vm1491, %v3424, %v3432
  %v3461 = vsel %vm1491, %v3442, %v3418
  %v3462 = vsel %vm1491, %v3444, %v3420
  %v3463 = vsel %vm1491, %v3446, %v3422
  %v3464 = vsel %vm1491, %v3448, %v3424
  %v3465 = vld [vmem:[%s1508] sm:$0xf]
  %v3467 = vperm.slane %v3465, 0
  %v3468 = vperm.slane %v3465, 1
  %v3469 = vperm.slane %v3465, 2
  %v3470 = vperm.slane %v3465, 3
  %v3475 = vmul.f32 %v3457, %v3467
  %v3476 = vmul.f32 %v3453, %v3468
  %v3477 = vmul.f32 %v3449, %v3469
  %v3478 = vmul.f32 %v3461, %v3470
  %v3479 = vmul.f32 %v3458, %v3467
  %v3480 = vmul.f32 %v3454, %v3468
  %v3481 = vmul.f32 %v3450, %v3469
  %v3482 = vmul.f32 %v3462, %v3470
  %v3483 = vmul.f32 %v3459, %v3467
  %v3484 = vmul.f32 %v3455, %v3468
  %v3485 = vmul.f32 %v3451, %v3469
  %v3486 = vmul.f32 %v3463, %v3470
  %v3487 = vmul.f32 %v3460, %v3467
  %v3488 = vmul.f32 %v3456, %v3468
  %v3489 = vmul.f32 %v3452, %v3469
  %v3490 = vmul.f32 %v3464, %v3470
  %v3491 = vpack.c.bf16 %v3479, %v3475
  %v3492 = vpack.c.bf16 %v3480, %v3476
  %v3493 = vpack.c.bf16 %v3481, %v3477
  %v3494 = vpack.c.bf16 %v3482, %v3478
  %v3495 = vpack.c.bf16 %v3487, %v3483
  %v3496 = vpack.c.bf16 %v3488, %v3484
  %v3497 = vpack.c.bf16 %v3489, %v3485
  %v3498 = vpack.c.bf16 %v3490, %v3486
  %s3499 = scalar_lea.vmem %s5, 256
  %v3500 = vld [vmem:[%s3499] sm:$0xf]
  %v3501 = vld [vmem:[%s3499 + $0x4] sm:$0xf]
  %v3502 = vld [vmem:[%s3499 + $0x8] sm:$0xf]
  %v3503 = vld [vmem:[%s3499 + $0xc] sm:$0xf]
  %v3508 = vunpack.c.l.b16 %v3500
  %v3509 = vunpack.c.l.b16 %v3501
  %v3510 = vunpack.c.l.b16 %v3502
  %v3511 = vunpack.c.l.b16 %v3503
  %v3512 = vpack.c.b16 %v3509, %v3508
  %v3513 = vpack.c.b16 %v3511, %v3510
  %v3515 = vsel %vm78, %v3512, 0
  %v3518 = vsel %vm78, %v3513, 0
  %3520 = vmatpush.bf16.msra.mxu0 0
  %3521 = vmatpush.bf16.msra.mxu0 0
  %3522 = vmatpush.bf16.msra.mxu0 0
  %3523 = vmatpush.bf16.msra.mxu0 0
  %3524 = vmatpush.bf16.msra.mxu0 0
  %3525 = vmatpush.bf16.msra.mxu0 0
  %3526 = vmatpush.bf16.msra.mxu0 %v3495
  %3527 = vmatpush.bf16.msra.mxu0 %v3491
  %3528 = vmatmul.bf16.gmra.mxu0 %v3515
  %v3529 = vpop.f32.mrf.mxu0
  %v3530 = vadd.f32 0.0, %v3529
  %v3531 = vpop.f32.mrf.mxu0
  %v3532 = vadd.f32 0.0, %v3531
  %3533 = vmatmul.bf16.gmra.mxu0 %v3518
  %v3534 = vpop.f32.mrf.mxu0
  %v3535 = vadd.f32 0.0, %v3534
  %v3536 = vpop.f32.mrf.mxu0
  %v3537 = vadd.f32 0.0, %v3536
  %3538 = vdwg.mxu0
  %3539 = vmatpush.bf16.msra.mxu0 0
  %3540 = vmatpush.bf16.msra.mxu0 0
  %3541 = vmatpush.bf16.msra.mxu0 0
  %3542 = vmatpush.bf16.msra.mxu0 0
  %3543 = vmatpush.bf16.msra.mxu0 0
  %3544 = vmatpush.bf16.msra.mxu0 0
  %3545 = vmatpush.bf16.msra.mxu0 %v3496
  %3546 = vmatpush.bf16.msra.mxu0 %v3492
  %3547 = vmatmul.bf16.gmra.mxu0 %v3515
  %v3548 = vpop.f32.mrf.mxu0
  %v3549 = vadd.f32 0.0, %v3548
  %v3550 = vpop.f32.mrf.mxu0
  %v3551 = vadd.f32 0.0, %v3550
  %3552 = vmatmul.bf16.gmra.mxu0 %v3518
  %v3553 = vpop.f32.mrf.mxu0
  %v3554 = vadd.f32 0.0, %v3553
  %v3555 = vpop.f32.mrf.mxu0
  %v3556 = vadd.f32 0.0, %v3555
  %3557 = vdwg.mxu0
  %3558 = vmatpush.bf16.msra.mxu0 0
  %3559 = vmatpush.bf16.msra.mxu0 0
  %3560 = vmatpush.bf16.msra.mxu0 0
  %3561 = vmatpush.bf16.msra.mxu0 0
  %3562 = vmatpush.bf16.msra.mxu0 0
  %3563 = vmatpush.bf16.msra.mxu0 0
  %3564 = vmatpush.bf16.msra.mxu0 %v3497
  %3565 = vmatpush.bf16.msra.mxu0 %v3493
  %3566 = vmatmul.bf16.gmra.mxu0 %v3515
  %v3567 = vpop.f32.mrf.mxu0
  %v3568 = vadd.f32 0.0, %v3567
  %v3569 = vpop.f32.mrf.mxu0
  %v3570 = vadd.f32 0.0, %v3569
  %3571 = vmatmul.bf16.gmra.mxu0 %v3518
  %v3572 = vpop.f32.mrf.mxu0
  %v3573 = vadd.f32 0.0, %v3572
  %v3574 = vpop.f32.mrf.mxu0
  %v3575 = vadd.f32 0.0, %v3574
  %3576 = vdwg.mxu0
  %3577 = vmatpush.bf16.msra.mxu0 0
  %3578 = vmatpush.bf16.msra.mxu0 0
  %3579 = vmatpush.bf16.msra.mxu0 0
  %3580 = vmatpush.bf16.msra.mxu0 0
  %3581 = vmatpush.bf16.msra.mxu0 0
  %3582 = vmatpush.bf16.msra.mxu0 0
  %3583 = vmatpush.bf16.msra.mxu0 %v3498
  %3584 = vmatpush.bf16.msra.mxu0 %v3494
  %3585 = vmatmul.bf16.gmra.mxu0 %v3515
  %v3586 = vpop.f32.mrf.mxu0
  %v3587 = vadd.f32 0.0, %v3586
  %v3588 = vpop.f32.mrf.mxu0
  %v3589 = vadd.f32 0.0, %v3588
  %3590 = vmatmul.bf16.gmra.mxu0 %v3518
  %v3591 = vpop.f32.mrf.mxu0
  %v3592 = vadd.f32 0.0, %v3591
  %v3593 = vpop.f32.mrf.mxu0
  %v3594 = vadd.f32 0.0, %v3593
  %3595 = vdwg.mxu0
  %v3596 = vadd.f32 %v3401, %v3530
  %v3597 = vadd.f32 %v3402, %v3549
  %v3598 = vadd.f32 %v3403, %v3568
  %v3599 = vadd.f32 %v3404, %v3587
  %v3600 = vadd.f32 %v3405, %v3532
  %v3601 = vadd.f32 %v3406, %v3551
  %v3602 = vadd.f32 %v3407, %v3570
  %v3603 = vadd.f32 %v3408, %v3589
  %v3604 = vadd.f32 %v3409, %v3535
  %v3605 = vadd.f32 %v3410, %v3554
  %v3606 = vadd.f32 %v3411, %v3573
  %v3607 = vadd.f32 %v3412, %v3592
  %v3608 = vadd.f32 %v3413, %v3537
  %v3609 = vadd.f32 %v3414, %v3556
  %v3610 = vadd.f32 %v3415, %v3575
  %v3611 = vadd.f32 %v3416, %v3594
  %3612 = vrot.lane.b32.xlu0 %v2066, 94
  %v3613 = vpop.permute.xlu0 %3612
  %3614 = vrot.lane.b32.xlu0 %v2068, 94
  %v3615 = vpop.permute.xlu0 %3614
  %3616 = vrot.lane.b32.xlu0 %v2071, 94
  %v3617 = vpop.permute.xlu0 %3616
  %3618 = vrot.lane.b32.xlu0 %v2073, 94
  %v3619 = vpop.permute.xlu0 %3618
  %3620 = vrot.lane.b32.xlu0 %v2085, 94
  %v3621 = vpop.permute.xlu0 %3620
  %3622 = vrot.lane.b32.xlu0 %v2087, 94
  %v3623 = vpop.permute.xlu0 %3622
  %3624 = vrot.lane.b32.xlu0 %v2090, 94
  %v3625 = vpop.permute.xlu0 %3624
  %3626 = vrot.lane.b32.xlu0 %v2092, 94
  %v3627 = vpop.permute.xlu0 %3626
  %3628 = vrot.lane.b32.xlu0 %v2104, 94
  %v3629 = vpop.permute.xlu0 %3628
  %3630 = vrot.lane.b32.xlu0 %v2106, 94
  %v3631 = vpop.permute.xlu0 %3630
  %3632 = vrot.lane.b32.xlu0 %v2109, 94
  %v3633 = vpop.permute.xlu0 %3632
  %3634 = vrot.lane.b32.xlu0 %v2111, 94
  %v3635 = vpop.permute.xlu0 %3634
  %3636 = vrot.lane.b32.xlu0 %v2123, 94
  %v3637 = vpop.permute.xlu0 %3636
  %3638 = vrot.lane.b32.xlu0 %v2125, 94
  %v3639 = vpop.permute.xlu0 %3638
  %3640 = vrot.lane.b32.xlu0 %v2128, 94
  %v3641 = vpop.permute.xlu0 %3640
  %3642 = vrot.lane.b32.xlu0 %v2130, 94
  %v3643 = vpop.permute.xlu0 %3642
  %v3644 = vsel %vm1688, %v3629, %v3637
  %v3645 = vsel %vm1688, %v3631, %v3639
  %v3646 = vsel %vm1688, %v3633, %v3641
  %v3647 = vsel %vm1688, %v3635, %v3643
  %v3648 = vsel %vm1688, %v3621, %v3629
  %v3649 = vsel %vm1688, %v3623, %v3631
  %v3650 = vsel %vm1688, %v3625, %v3633
  %v3651 = vsel %vm1688, %v3627, %v3635
  %v3652 = vsel %vm1688, %v3613, %v3621
  %v3653 = vsel %vm1688, %v3615, %v3623
  %v3654 = vsel %vm1688, %v3617, %v3625
  %v3655 = vsel %vm1688, %v3619, %v3627
  %v3656 = vsel %vm1688, %v3637, %v3613
  %v3657 = vsel %vm1688, %v3639, %v3615
  %v3658 = vsel %vm1688, %v3641, %v3617
  %v3659 = vsel %vm1688, %v3643, %v3619
  %v3660 = vld [vmem:[%s1705] sm:$0xf]
  %v3662 = vperm.slane %v3660, 0
  %v3663 = vperm.slane %v3660, 1
  %v3664 = vperm.slane %v3660, 2
  %v3665 = vperm.slane %v3660, 3
  %v3670 = vmul.f32 %v3652, %v3662
  %v3671 = vmul.f32 %v3648, %v3663
  %v3672 = vmul.f32 %v3644, %v3664
  %v3673 = vmul.f32 %v3656, %v3665
  %v3674 = vmul.f32 %v3653, %v3662
  %v3675 = vmul.f32 %v3649, %v3663
  %v3676 = vmul.f32 %v3645, %v3664
  %v3677 = vmul.f32 %v3657, %v3665
  %v3678 = vmul.f32 %v3654, %v3662
  %v3679 = vmul.f32 %v3650, %v3663
  %v3680 = vmul.f32 %v3646, %v3664
  %v3681 = vmul.f32 %v3658, %v3665
  %v3682 = vmul.f32 %v3655, %v3662
  %v3683 = vmul.f32 %v3651, %v3663
  %v3684 = vmul.f32 %v3647, %v3664
  %v3685 = vmul.f32 %v3659, %v3665
  %v3686 = vpack.c.bf16 %v3674, %v3670
  %v3687 = vpack.c.bf16 %v3675, %v3671
  %v3688 = vpack.c.bf16 %v3676, %v3672
  %v3689 = vpack.c.bf16 %v3677, %v3673
  %v3690 = vpack.c.bf16 %v3682, %v3678
  %v3691 = vpack.c.bf16 %v3683, %v3679
  %v3692 = vpack.c.bf16 %v3684, %v3680
  %v3693 = vpack.c.bf16 %v3685, %v3681
  %s3694 = scalar_lea.vmem %s5, 272
  %v3695 = vld [vmem:[%s3694] sm:$0xf]
  %v3696 = vld [vmem:[%s3694 + $0x4] sm:$0xf]
  %v3697 = vld [vmem:[%s3694 + $0x8] sm:$0xf]
  %v3698 = vld [vmem:[%s3694 + $0xc] sm:$0xf]
  %v3703 = vunpack.c.l.b16 %v3695
  %v3704 = vunpack.c.l.b16 %v3696
  %v3705 = vunpack.c.l.b16 %v3697
  %v3706 = vunpack.c.l.b16 %v3698
  %v3707 = vpack.c.b16 %v3704, %v3703
  %v3708 = vpack.c.b16 %v3706, %v3705
  %v3710 = vsel %vm78, %v3707, 0
  %v3713 = vsel %vm78, %v3708, 0
  %3715 = vmatpush.bf16.msra.mxu0 0
  %3716 = vmatpush.bf16.msra.mxu0 0
  %3717 = vmatpush.bf16.msra.mxu0 0
  %3718 = vmatpush.bf16.msra.mxu0 0
  %3719 = vmatpush.bf16.msra.mxu0 0
  %3720 = vmatpush.bf16.msra.mxu0 0
  %3721 = vmatpush.bf16.msra.mxu0 %v3690
  %3722 = vmatpush.bf16.msra.mxu0 %v3686
  %3723 = vmatmul.bf16.gmra.mxu0 %v3710
  %v3724 = vpop.f32.mrf.mxu0
  %v3725 = vadd.f32 0.0, %v3724
  %v3726 = vpop.f32.mrf.mxu0
  %v3727 = vadd.f32 0.0, %v3726
  %3728 = vmatmul.bf16.gmra.mxu0 %v3713
  %v3729 = vpop.f32.mrf.mxu0
  %v3730 = vadd.f32 0.0, %v3729
  %v3731 = vpop.f32.mrf.mxu0
  %v3732 = vadd.f32 0.0, %v3731
  %3733 = vdwg.mxu0
  %3734 = vmatpush.bf16.msra.mxu0 0
  %3735 = vmatpush.bf16.msra.mxu0 0
  %3736 = vmatpush.bf16.msra.mxu0 0
  %3737 = vmatpush.bf16.msra.mxu0 0
  %3738 = vmatpush.bf16.msra.mxu0 0
  %3739 = vmatpush.bf16.msra.mxu0 0
  %3740 = vmatpush.bf16.msra.mxu0 %v3691
  %3741 = vmatpush.bf16.msra.mxu0 %v3687
  %3742 = vmatmul.bf16.gmra.mxu0 %v3710
  %v3743 = vpop.f32.mrf.mxu0
  %v3744 = vadd.f32 0.0, %v3743
  %v3745 = vpop.f32.mrf.mxu0
  %v3746 = vadd.f32 0.0, %v3745
  %3747 = vmatmul.bf16.gmra.mxu0 %v3713
  %v3748 = vpop.f32.mrf.mxu0
  %v3749 = vadd.f32 0.0, %v3748
  %v3750 = vpop.f32.mrf.mxu0
  %v3751 = vadd.f32 0.0, %v3750
  %3752 = vdwg.mxu0
  %3753 = vmatpush.bf16.msra.mxu0 0
  %3754 = vmatpush.bf16.msra.mxu0 0
  %3755 = vmatpush.bf16.msra.mxu0 0
  %3756 = vmatpush.bf16.msra.mxu0 0
  %3757 = vmatpush.bf16.msra.mxu0 0
  %3758 = vmatpush.bf16.msra.mxu0 0
  %3759 = vmatpush.bf16.msra.mxu0 %v3692
  %3760 = vmatpush.bf16.msra.mxu0 %v3688
  %3761 = vmatmul.bf16.gmra.mxu0 %v3710
  %v3762 = vpop.f32.mrf.mxu0
  %v3763 = vadd.f32 0.0, %v3762
  %v3764 = vpop.f32.mrf.mxu0
  %v3765 = vadd.f32 0.0, %v3764
  %3766 = vmatmul.bf16.gmra.mxu0 %v3713
  %v3767 = vpop.f32.mrf.mxu0
  %v3768 = vadd.f32 0.0, %v3767
  %v3769 = vpop.f32.mrf.mxu0
  %v3770 = vadd.f32 0.0, %v3769
  %3771 = vdwg.mxu0
  %3772 = vmatpush.bf16.msra.mxu0 0
  %3773 = vmatpush.bf16.msra.mxu0 0
  %3774 = vmatpush.bf16.msra.mxu0 0
  %3775 = vmatpush.bf16.msra.mxu0 0
  %3776 = vmatpush.bf16.msra.mxu0 0
  %3777 = vmatpush.bf16.msra.mxu0 0
  %3778 = vmatpush.bf16.msra.mxu0 %v3693
  %3779 = vmatpush.bf16.msra.mxu0 %v3689
  %3780 = vmatmul.bf16.gmra.mxu0 %v3710
  %v3781 = vpop.f32.mrf.mxu0
  %v3782 = vadd.f32 0.0, %v3781
  %v3783 = vpop.f32.mrf.mxu0
  %v3784 = vadd.f32 0.0, %v3783
  %3785 = vmatmul.bf16.gmra.mxu0 %v3713
  %v3786 = vpop.f32.mrf.mxu0
  %v3787 = vadd.f32 0.0, %v3786
  %v3788 = vpop.f32.mrf.mxu0
  %v3789 = vadd.f32 0.0, %v3788
  %3790 = vdwg.mxu0
  %v3791 = vadd.f32 %v3596, %v3725
  %v3792 = vadd.f32 %v3597, %v3744
  %v3793 = vadd.f32 %v3598, %v3763
  %v3794 = vadd.f32 %v3599, %v3782
  %v3795 = vadd.f32 %v3600, %v3727
  %v3796 = vadd.f32 %v3601, %v3746
  %v3797 = vadd.f32 %v3602, %v3765
  %v3798 = vadd.f32 %v3603, %v3784
  %v3799 = vadd.f32 %v3604, %v3730
  %v3800 = vadd.f32 %v3605, %v3749
  %v3801 = vadd.f32 %v3606, %v3768
  %v3802 = vadd.f32 %v3607, %v3787
  %v3803 = vadd.f32 %v3608, %v3732
  %v3804 = vadd.f32 %v3609, %v3751
  %v3805 = vadd.f32 %v3610, %v3770
  %v3806 = vadd.f32 %v3611, %v3789
  %s3807 = scalar_lea.vmem %s4, 48
  %v3808 = vld [vmem:[%s3807] sm:$0xf]
  %v3809 = vld [vmem:[%s3807 + $0x4] sm:$0xf]
  %v3810 = vld [vmem:[%s3807 + $0x8] sm:$0xf]
  %v3811 = vld [vmem:[%s3807 + $0xc] sm:$0xf]
  %v3812 = vpack.c.bf16 %v3795, %v3791
  %v3813 = vpack.c.bf16 %v3796, %v3792
  %v3814 = vpack.c.bf16 %v3797, %v3793
  %v3815 = vpack.c.bf16 %v3798, %v3794
  %v3816 = vpack.c.bf16 %v3803, %v3799
  %v3817 = vpack.c.bf16 %v3804, %v3800
  %v3818 = vpack.c.bf16 %v3805, %v3801
  %v3819 = vpack.c.bf16 %v3806, %v3802
  %v3824 = vunpack.c.l.b16 %v3808
  %v3825 = vunpack.c.l.b16 %v3809
  %v3826 = vunpack.c.l.b16 %v3810
  %v3827 = vunpack.c.l.b16 %v3811
  %v3828 = vpack.c.b16 %v3825, %v3824
  %v3829 = vpack.c.b16 %v3827, %v3826
  %v3831 = vsel %vm78, %v3828, 0
  %v3834 = vsel %vm78, %v3829, 0
  %3836 = vmatpush.bf16.msra.mxu0 0
  %3837 = vmatpush.bf16.msra.mxu0 0
  %3838 = vmatpush.bf16.msra.mxu0 0
  %3839 = vmatpush.bf16.msra.mxu0 0
  %3840 = vmatpush.bf16.msra.mxu0 0
  %3841 = vmatpush.bf16.msra.mxu0 0
  %3842 = vmatpush.bf16.msra.mxu0 %v3816
  %3843 = vmatpush.bf16.msra.mxu0 %v3812
  %3844 = vmatmul.bf16.gmra.mxu0 %v3831
  %v3845 = vpop.f32.mrf.mxu0
  %v3846 = vadd.f32 0.0, %v3845
  %v3847 = vpop.f32.mrf.mxu0
  %v3848 = vadd.f32 0.0, %v3847
  %3849 = vmatmul.bf16.gmra.mxu0 %v3834
  %v3850 = vpop.f32.mrf.mxu0
  %v3851 = vadd.f32 0.0, %v3850
  %v3852 = vpop.f32.mrf.mxu0
  %v3853 = vadd.f32 0.0, %v3852
  %3854 = vdwg.mxu0
  %3855 = vmatpush.bf16.msra.mxu0 0
  %3856 = vmatpush.bf16.msra.mxu0 0
  %3857 = vmatpush.bf16.msra.mxu0 0
  %3858 = vmatpush.bf16.msra.mxu0 0
  %3859 = vmatpush.bf16.msra.mxu0 0
  %3860 = vmatpush.bf16.msra.mxu0 0
  %3861 = vmatpush.bf16.msra.mxu0 %v3817
  %3862 = vmatpush.bf16.msra.mxu0 %v3813
  %3863 = vmatmul.bf16.gmra.mxu0 %v3831
  %v3864 = vpop.f32.mrf.mxu0
  %v3865 = vadd.f32 0.0, %v3864
  %v3866 = vpop.f32.mrf.mxu0
  %v3867 = vadd.f32 0.0, %v3866
  %3868 = vmatmul.bf16.gmra.mxu0 %v3834
  %v3869 = vpop.f32.mrf.mxu0
  %v3870 = vadd.f32 0.0, %v3869
  %v3871 = vpop.f32.mrf.mxu0
  %v3872 = vadd.f32 0.0, %v3871
  %3873 = vdwg.mxu0
  %3874 = vmatpush.bf16.msra.mxu0 0
  %3875 = vmatpush.bf16.msra.mxu0 0
  %3876 = vmatpush.bf16.msra.mxu0 0
  %3877 = vmatpush.bf16.msra.mxu0 0
  %3878 = vmatpush.bf16.msra.mxu0 0
  %3879 = vmatpush.bf16.msra.mxu0 0
  %3880 = vmatpush.bf16.msra.mxu0 %v3818
  %3881 = vmatpush.bf16.msra.mxu0 %v3814
  %3882 = vmatmul.bf16.gmra.mxu0 %v3831
  %v3883 = vpop.f32.mrf.mxu0
  %v3884 = vadd.f32 0.0, %v3883
  %v3885 = vpop.f32.mrf.mxu0
  %v3886 = vadd.f32 0.0, %v3885
  %3887 = vmatmul.bf16.gmra.mxu0 %v3834
  %v3888 = vpop.f32.mrf.mxu0
  %v3889 = vadd.f32 0.0, %v3888
  %v3890 = vpop.f32.mrf.mxu0
  %v3891 = vadd.f32 0.0, %v3890
  %3892 = vdwg.mxu0
  %3893 = vmatpush.bf16.msra.mxu0 0
  %3894 = vmatpush.bf16.msra.mxu0 0
  %3895 = vmatpush.bf16.msra.mxu0 0
  %3896 = vmatpush.bf16.msra.mxu0 0
  %3897 = vmatpush.bf16.msra.mxu0 0
  %3898 = vmatpush.bf16.msra.mxu0 0
  %3899 = vmatpush.bf16.msra.mxu0 %v3819
  %3900 = vmatpush.bf16.msra.mxu0 %v3815
  %3901 = vmatmul.bf16.gmra.mxu0 %v3831
  %v3902 = vpop.f32.mrf.mxu0
  %v3903 = vadd.f32 0.0, %v3902
  %v3904 = vpop.f32.mrf.mxu0
  %v3905 = vadd.f32 0.0, %v3904
  %3906 = vmatmul.bf16.gmra.mxu0 %v3834
  %v3907 = vpop.f32.mrf.mxu0
  %v3908 = vadd.f32 0.0, %v3907
  %v3909 = vpop.f32.mrf.mxu0
  %v3910 = vadd.f32 0.0, %v3909
  %3911 = vdwg.mxu0
  %v3912 = vmul.f32 %v3846, %v1958
  %v3913 = vmul.f32 %v3865, %v1959
  %v3914 = vmul.f32 %v3884, %v1960
  %v3915 = vmul.f32 %v3903, %v1961
  %v3916 = vmul.f32 %v3848, %v1958
  %v3917 = vmul.f32 %v3867, %v1959
  %v3918 = vmul.f32 %v3886, %v1960
  %v3919 = vmul.f32 %v3905, %v1961
  %v3920 = vmul.f32 %v3851, %v1958
  %v3921 = vmul.f32 %v3870, %v1959
  %v3922 = vmul.f32 %v3889, %v1960
  %v3923 = vmul.f32 %v3908, %v1961
  %v3924 = vmul.f32 %v3853, %v1958
  %v3925 = vmul.f32 %v3872, %v1959
  %v3926 = vmul.f32 %v3891, %v1960
  %v3927 = vmul.f32 %v3910, %v1961
  %v3928 = vadd.f32 %v3912, %v2010
  %v3929 = vadd.f32 %v3913, %v2011
  %v3930 = vadd.f32 %v3914, %v2019
  %v3931 = vadd.f32 %v3915, %v2020
  %v3932 = vadd.f32 %v3916, %v2012
  %v3933 = vadd.f32 %v3917, %v2013
  %v3934 = vadd.f32 %v3918, %v2021
  %v3935 = vadd.f32 %v3919, %v2022
  %v3936 = vadd.f32 %v3920, %v2014
  %v3937 = vadd.f32 %v3921, %v2015
  %v3938 = vadd.f32 %v3922, %v2023
  %v3939 = vadd.f32 %v3923, %v2024
  %v3940 = vadd.f32 %v3924, %v2016
  %v3941 = vadd.f32 %v3925, %v2017
  %v3942 = vadd.f32 %v3926, %v2025
  %v3943 = vadd.f32 %v3927, %v2026
  %v3944 = vld [vmem:[#allocation2] sm:$0xff]
  %v3945 = vld [vmem:[#allocation2 + $0x8] sm:$0xff]
  %v3946 = vld [vmem:[#allocation2 + $0x10] sm:$0xff]
  %v3947 = vld [vmem:[#allocation2 + $0x18] sm:$0xff]
  %v3948 = vld [vmem:[#allocation2 + $0x20] sm:$0xff]
  %v3949 = vld [vmem:[#allocation2 + $0x28] sm:$0xff]
  %v3950 = vld [vmem:[#allocation2 + $0x30] sm:$0xff]
  %v3951 = vld [vmem:[#allocation2 + $0x38] sm:$0xff]
  %v3952 = vld [vmem:[#allocation2 + $0x40] sm:$0xff]
  %v3953 = vld [vmem:[#allocation2 + $0x48] sm:$0xff]
  %v3954 = vld [vmem:[#allocation2 + $0x50] sm:$0xff]
  %v3955 = vld [vmem:[#allocation2 + $0x58] sm:$0xff]
  %v3956 = vld [vmem:[#allocation2 + $0x60] sm:$0xff]
  %v3957 = vld [vmem:[#allocation2 + $0x68] sm:$0xff]
  %v3958 = vld [vmem:[#allocation2 + $0x70] sm:$0xff]
  %v3959 = vld [vmem:[#allocation2 + $0x78] sm:$0xff]
  %v3960 = vmax.f32 %v3944, 0.0
  %v3961 = vmax.f32 %v3945, 0.0
  %v3962 = vmax.f32 %v3946, 0.0
  %v3963 = vmax.f32 %v3947, 0.0
  %v3964 = vmax.f32 %v3948, 0.0
  %v3965 = vmax.f32 %v3949, 0.0
  %v3966 = vmax.f32 %v3950, 0.0
  %v3967 = vmax.f32 %v3951, 0.0
  %v3968 = vmax.f32 %v3952, 0.0
  %v3969 = vmax.f32 %v3953, 0.0
  %v3970 = vmax.f32 %v3954, 0.0
  %v3971 = vmax.f32 %v3955, 0.0
  %v3972 = vmax.f32 %v3956, 0.0
  %v3973 = vmax.f32 %v3957, 0.0
  %v3974 = vmax.f32 %v3958, 0.0
  %v3975 = vmax.f32 %v3959, 0.0
  %v3976 = vmin.f32 %v3928, 0.0
  %v3977 = vmin.f32 %v3929, 0.0
  %v3978 = vmin.f32 %v3930, 0.0
  %v3979 = vmin.f32 %v3931, 0.0
  %v3980 = vmin.f32 %v3932, 0.0
  %v3981 = vmin.f32 %v3933, 0.0
  %v3982 = vmin.f32 %v3934, 0.0
  %v3983 = vmin.f32 %v3935, 0.0
  %v3984 = vmin.f32 %v3936, 0.0
  %v3985 = vmin.f32 %v3937, 0.0
  %v3986 = vmin.f32 %v3938, 0.0
  %v3987 = vmin.f32 %v3939, 0.0
  %v3988 = vmin.f32 %v3940, 0.0
  %v3989 = vmin.f32 %v3941, 0.0
  %v3990 = vmin.f32 %v3942, 0.0
  %v3991 = vmin.f32 %v3943, 0.0
  %v3992 = vadd.f32 %v3960, %v3976
  %v3993 = vadd.f32 %v3961, %v3977
  %v3994 = vadd.f32 %v3962, %v3978
  %v3995 = vadd.f32 %v3963, %v3979
  %v3996 = vadd.f32 %v3964, %v3980
  %v3997 = vadd.f32 %v3965, %v3981
  %v3998 = vadd.f32 %v3966, %v3982
  %v3999 = vadd.f32 %v3967, %v3983
  %v4000 = vadd.f32 %v3968, %v3984
  %v4001 = vadd.f32 %v3969, %v3985
  %v4002 = vadd.f32 %v3970, %v3986
  %v4003 = vadd.f32 %v3971, %v3987
  %v4004 = vadd.f32 %v3972, %v3988
  %v4005 = vadd.f32 %v3973, %v3989
  %v4006 = vadd.f32 %v3974, %v3990
  %v4007 = vadd.f32 %v3975, %v3991
  %v4008 = vmax.f32 %v3928, 0.0
  %v4009 = vmax.f32 %v3929, 0.0
  %v4010 = vmax.f32 %v3930, 0.0
  %v4011 = vmax.f32 %v3931, 0.0
  %v4012 = vmax.f32 %v3932, 0.0
  %v4013 = vmax.f32 %v3933, 0.0
  %v4014 = vmax.f32 %v3934, 0.0
  %v4015 = vmax.f32 %v3935, 0.0
  %v4016 = vmax.f32 %v3936, 0.0
  %v4017 = vmax.f32 %v3937, 0.0
  %v4018 = vmax.f32 %v3938, 0.0
  %v4019 = vmax.f32 %v3939, 0.0
  %v4020 = vmax.f32 %v3940, 0.0
  %v4021 = vmax.f32 %v3941, 0.0
  %v4022 = vmax.f32 %v3942, 0.0
  %v4023 = vmax.f32 %v3943, 0.0
  %v4024 = vmin.f32 %v3944, 0.0
  %v4025 = vmin.f32 %v3945, 0.0
  %v4026 = vmin.f32 %v3946, 0.0
  %v4027 = vmin.f32 %v3947, 0.0
  %v4028 = vmin.f32 %v3948, 0.0
  %v4029 = vmin.f32 %v3949, 0.0
  %v4030 = vmin.f32 %v3950, 0.0
  %v4031 = vmin.f32 %v3951, 0.0
  %v4032 = vmin.f32 %v3952, 0.0
  %v4033 = vmin.f32 %v3953, 0.0
  %v4034 = vmin.f32 %v3954, 0.0
  %v4035 = vmin.f32 %v3955, 0.0
  %v4036 = vmin.f32 %v3956, 0.0
  %v4037 = vmin.f32 %v3957, 0.0
  %v4038 = vmin.f32 %v3958, 0.0
  %v4039 = vmin.f32 %v3959, 0.0
  %v4040 = vadd.f32 %v4008, %v4024
  %v4041 = vadd.f32 %v4009, %v4025
  %v4042 = vadd.f32 %v4010, %v4026
  %v4043 = vadd.f32 %v4011, %v4027
  %v4044 = vadd.f32 %v4012, %v4028
  %v4045 = vadd.f32 %v4013, %v4029
  %v4046 = vadd.f32 %v4014, %v4030
  %v4047 = vadd.f32 %v4015, %v4031
  %v4048 = vadd.f32 %v4016, %v4032
  %v4049 = vadd.f32 %v4017, %v4033
  %v4050 = vadd.f32 %v4018, %v4034
  %v4051 = vadd.f32 %v4019, %v4035
  %v4052 = vadd.f32 %v4020, %v4036
  %v4053 = vadd.f32 %v4021, %v4037
  %v4054 = vadd.f32 %v4022, %v4038
  %v4055 = vadd.f32 %v4023, %v4039
  %4056 = vst [vmem:[%s6] sm:$0xff] %v3992
  %4057 = vst [vmem:[%s6 + $0x8] sm:$0xff] %v3993
  %4058 = vst [vmem:[%s6 + $0x10] sm:$0xff] %v3996
  %4059 = vst [vmem:[%s6 + $0x18] sm:$0xff] %v3997
  %4060 = vst [vmem:[%s6 + $0x20] sm:$0xff] %v4000
  %4061 = vst [vmem:[%s6 + $0x28] sm:$0xff] %v4001
  %4062 = vst [vmem:[%s6 + $0x30] sm:$0xff] %v4004
  %4063 = vst [vmem:[%s6 + $0x38] sm:$0xff] %v4005
  %4064 = vst [vmem:[%s7] sm:$0xff] %v4040
  %4065 = vst [vmem:[%s7 + $0x8] sm:$0xff] %v4041
  %4066 = vst [vmem:[%s7 + $0x10] sm:$0xff] %v4044
  %4067 = vst [vmem:[%s7 + $0x18] sm:$0xff] %v4045
  %4068 = vst [vmem:[%s7 + $0x20] sm:$0xff] %v4048
  %4069 = vst [vmem:[%s7 + $0x28] sm:$0xff] %v4049
  %4070 = vst [vmem:[%s7 + $0x30] sm:$0xff] %v4052
  %4071 = vst [vmem:[%s7 + $0x38] sm:$0xff] %v4053
  %s4072 = scalar_lea.vmem %s6, 64
  %4073 = vst [vmem:[%s4072] sm:$0xff] %v3994
  %4074 = vst [vmem:[%s4072 + $0x8] sm:$0xff] %v3995
  %4075 = vst [vmem:[%s4072 + $0x10] sm:$0xff] %v3998
  %4076 = vst [vmem:[%s4072 + $0x18] sm:$0xff] %v3999
  %4077 = vst [vmem:[%s4072 + $0x20] sm:$0xff] %v4002
  %4078 = vst [vmem:[%s4072 + $0x28] sm:$0xff] %v4003
  %4079 = vst [vmem:[%s4072 + $0x30] sm:$0xff] %v4006
  %4080 = vst [vmem:[%s4072 + $0x38] sm:$0xff] %v4007
  %s4081 = scalar_lea.vmem %s7, 64
  %4082 = vst [vmem:[%s4081] sm:$0xff] %v4042
  %4083 = vst [vmem:[%s4081 + $0x8] sm:$0xff] %v4043
  %4084 = vst [vmem:[%s4081 + $0x10] sm:$0xff] %v4046
  %4085 = vst [vmem:[%s4081 + $0x18] sm:$0xff] %v4047
  %4086 = vst [vmem:[%s4081 + $0x20] sm:$0xff] %v4050
  %4087 = vst [vmem:[%s4081 + $0x28] sm:$0xff] %v4051
  %4088 = vst [vmem:[%s4081 + $0x30] sm:$0xff] %v4054
  %4089 = vst [vmem:[%s4081 + $0x38] sm:$0xff] %v4055
  // Predicated region
  $region26: #{ytmt_att_relu_forward.1} parent=0 // pred_check
    _
  $region27: #{ytmt_att_relu_forward.1} parent=0 // pred_check_branch
    %4091 = sbr.rel (0) target = $region29
  $region28: #{ytmt_att_relu_forward.1} parent=0 // pred_region
    _
  $region29: #{ytmt_att_relu_forward.1} parent=0 // pred_fallthru
    _
  // Predicated region
  $region30: #{ytmt_att_relu_forward.1} parent=0 // pred_check
    _
  $region31: #{ytmt_att_relu_forward.1} parent=0 // pred_check_branch
    %4093 = sbr.rel (0) target = $region33
  $region32: #{ytmt_att_relu_forward.1} parent=0 // pred_region
    _
  $region33: #{ytmt_att_relu_forward.1} parent=0 // pred_fallthru
    _
  // Predicated region
  $region34: #{ytmt_att_relu_forward.1} parent=0 // pred_check
    _
  $region35: #{ytmt_att_relu_forward.1} parent=0 // pred_check_branch
    %4095 = sbr.rel (0) target = $region37
  $region36: #{ytmt_att_relu_forward.1} parent=0 // pred_region
    _
  $region37: #{ytmt_att_relu_forward.1} parent=0 // pred_fallthru
    _
  // Predicated region
  $region38: #{ytmt_att_relu_forward.1} parent=0 // pred_check
    _
  $region39: #{ytmt_att_relu_forward.1} parent=0 // pred_check_branch
    %4097 = sbr.rel (0) target = $region41
  $region40: #{ytmt_att_relu_forward.1} parent=0 // pred_region
    _
  $region41: #{ytmt_att_relu_forward.1} parent=0 // pred_fallthru
    _

</llo_original>
